<compile_context>
chip_gen: v7x
topology: tpu7x:2x2x1
jax: 0.10.0
libtpu: 0.0.40
codegen_flags: <defaults>
</compile_context>

<pallas_src>
import jax
import jax.numpy as jnp
from jax.experimental import pallas as pl
from jax.experimental.pallas import tpu as pltpu


def gcl_kernel(row_ref, col_ref, eattr_ref, emask_ref, x_ref,
               w1s_ref, w1t_ref, w1a_ref, b1_ref,
               w2_ref, b2_ref,
               w3x_ref, w3a_ref, b3_ref,
               w4_ref, b4_ref,
               xout_ref, efeat_ref,
               agg_ref):
    step = pl.program_id(0)
    nsteps = pl.num_programs(0)
    te = row_ref.shape[0]
    n = x_ref.shape[0]

    @pl.when(step == 0)
    def _init():
        agg_ref[...] = jnp.zeros_like(agg_ref)

    # ---- in-kernel one-hot gather tiles (0/1 is exact in bf16): [TE, N] ----
    lane_nodes = jax.lax.broadcasted_iota(jnp.int32, (te, n), 1)
    oh_src = (lane_nodes == row_ref[...]).astype(jnp.bfloat16)   # row tile is (TE, 1)
    oh_tgt = (lane_nodes == col_ref[...]).astype(jnp.bfloat16)

    x_bf = x_ref[...]                                            # resident bf16 [N, F]
    src = jnp.dot(oh_src, x_bf,
                  preferred_element_type=jnp.float32).astype(jnp.bfloat16)  # x[row] tile
    tgt = jnp.dot(oh_tgt, x_bf,
                  preferred_element_type=jnp.float32).astype(jnp.bfloat16)  # x[col] tile

    # ---- edge model: ReLU(Linear(cat[src, tgt, edge_attr])) -> ReLU(Linear) ----
    h = (jnp.dot(src, w1s_ref[...], preferred_element_type=jnp.float32)
         + jnp.dot(tgt, w1t_ref[...], preferred_element_type=jnp.float32)
         + jnp.dot(eattr_ref[...], w1a_ref[...], preferred_element_type=jnp.float32))
    # bf16 elementwise tail (native on v6e/v7x VALUs; values feed bf16 matmuls anyway)
    h = jnp.maximum(h.astype(jnp.bfloat16) + b1_ref[...], 0)
    ef = jnp.dot(h, w2_ref[...], preferred_element_type=jnp.float32)
    ef = jnp.maximum(ef.astype(jnp.bfloat16) + b2_ref[...], 0)
    ef = ef * emask_ref[...]                 # [TE, H] * [TE, 1]; padded edges -> 0
    efeat_ref[...] = ef                      # bf16 writeback (dominant HBM output)

    # ---- segment-sum over `row`: oh_scat == oh_src^T, so use the transpose
    # contraction of the gather one-hot (no second iota/compare, no extra input).
    agg_ref[...] += jax.lax.dot_general(
        oh_src, ef,
        dimension_numbers=(((0,), (0,)), ((), ())),
        preferred_element_type=jnp.float32)

    # ---- node model: Linear(ReLU(Linear(cat[x, agg]))) on the last edge tile ----
    @pl.when(step == nsteps - 1)
    def _finalize():
        agg_bf = agg_ref[...].astype(jnp.bfloat16)
        nh = (jnp.dot(x_bf, w3x_ref[...], preferred_element_type=jnp.float32)
              + jnp.dot(agg_bf, w3a_ref[...], preferred_element_type=jnp.float32))
        nh = jnp.maximum(nh.astype(jnp.bfloat16) + b3_ref[...], 0)
        xout_ref[...] = (jnp.dot(nh, w4_ref[...], preferred_element_type=jnp.float32)
                         + b4_ref[...])


def gcl_forward(x, edge_index, edge_mask, edge_attr, params, *, edge_tile=512):
    """x: [N, F], edge_index: (row, col) int32 [E] each, edge_mask: [E, 1],
    edge_attr: [E, A]. Returns (x_out [N, H_out] f32, edge_feat [E, H] bf16)."""
    row, col = edge_index
    n, f = x.shape
    e = row.shape[0]
    a = edge_attr.shape[1]
    h = params["w2"].shape[1]
    h_out = params["w4"].shape[1]

    te = edge_tile
    n_tiles = pl.cdiv(e, te)
    e_pad = n_tiles * te
    pad = e_pad - e

    # Pad edges to a multiple of TE; padded edges get mask=0 so they contribute
    # nothing to the aggregation (and their rows are sliced off edge_feat).
    row_p = jnp.pad(row.astype(jnp.int32), (0, pad)).reshape(e_pad, 1)
    col_p = jnp.pad(col.astype(jnp.int32), (0, pad)).reshape(e_pad, 1)
    emask_p = jnp.pad(edge_mask, ((0, pad), (0, 0))).astype(jnp.bfloat16)  # 0/1 exact
    eattr_p = jnp.pad(edge_attr, ((0, pad), (0, 0))).astype(jnp.bfloat16)

    x_bf = x.astype(jnp.bfloat16)
    bf = lambda w: w.astype(jnp.bfloat16)

    def edge_spec(d):
        return pl.BlockSpec((te, d), lambda i: (i, 0))

    def resident(shape):
        # Constant index_map: block stays resident in VMEM across the whole grid.
        return pl.BlockSpec(shape, lambda i: (0, 0))

    flops = (2 * e_pad * (2 * n * f + 2 * f * h + a * h + h * h + n * h)
             + 2 * n * (f * h + h * h + h * h_out))
    bytes_accessed = (2 * e_pad * 4                              # row/col indices
                      + e_pad * (a + 1) * 2                      # edge_attr + mask (bf16)
                      + n * f * 2                                # x (bf16)
                      + e_pad * h * 2 + n * h_out * 4            # outputs
                      + sum(int(v.size) * 2 for v in params.values()))

    x_out, ef_pad = pl.pallas_call(
        gcl_kernel,
        out_shape=(jax.ShapeDtypeStruct((n, h_out), jnp.float32),
                   jax.ShapeDtypeStruct((e_pad, h), jnp.bfloat16)),
        grid_spec=pltpu.PrefetchScalarGridSpec(
            num_scalar_prefetch=0,
            grid=(n_tiles,),
            in_specs=[
                edge_spec(1),                                    # row
                edge_spec(1),                                    # col
                edge_spec(a),                                    # edge_attr
                edge_spec(1),                                    # edge_mask
                resident((n, f)),                                # x (resident)
                resident((f, h)), resident((f, h)), resident((a, h)), resident((1, h)),
                resident((h, h)), resident((1, h)),
                resident((f, h)), resident((h, h)), resident((1, h)),
                resident((h, h_out)), resident((1, h_out)),
            ],
            out_specs=(resident((n, h_out)),                     # x_out (written at last step)
                       edge_spec(h)),                            # edge_feat tiles (bf16)
            scratch_shapes=[pltpu.VMEM((n, h), jnp.float32)],    # segment-sum accumulator
        ),
        compiler_params=pltpu.CompilerParams(
            dimension_semantics=("arbitrary",),                  # sequential reduction axis
            vmem_limit_bytes=32 * 1024 * 1024,
        ),
        cost_estimate=pl.CostEstimate(flops=flops, transcendentals=0,
                                      bytes_accessed=bytes_accessed),
    )(row_p, col_p, eattr_p, emask_p, x_bf,
      bf(params["w1s"]), bf(params["w1t"]), bf(params["w1a"]), bf(params["b1"]),
      bf(params["w2"]), bf(params["b2"]),
      bf(params["w3x"]), bf(params["w3a"]), bf(params["b3"]),
      bf(params["w4"]), params["b4"])

    return x_out, ef_pad[:e]


def make_params(key, nf, ea, hidden, out_nf):
    ks = jax.random.split(key, 8)
    s = 0.1
    return {
        # edge MLP layer 1: cat[src(nf), tgt(nf), edge_attr(ea)] -> hidden
        "w1s": s * jax.random.normal(ks[0], (nf, hidden), jnp.float32),
        "w1t": s * jax.random.normal(ks[1], (nf, hidden), jnp.float32),
        "w1a": s * jax.random.normal(ks[2], (ea, hidden), jnp.float32),
        "b1":  jnp.zeros((1, hidden), jnp.float32),
        # edge MLP layer 2: hidden -> hidden
        "w2":  s * jax.random.normal(ks[3], (hidden, hidden), jnp.float32),
        "b2":  jnp.zeros((1, hidden), jnp.float32),
        # node MLP layer 1: cat[x(nf), agg(hidden)] -> hidden
        "w3x": s * jax.random.normal(ks[4], (nf, hidden), jnp.float32),
        "w3a": s * jax.random.normal(ks[5], (hidden, hidden), jnp.float32),
        "b3":  jnp.zeros((1, hidden), jnp.float32),
        # node MLP layer 2: hidden -> out_nf
        "w4":  s * jax.random.normal(ks[6], (hidden, out_nf), jnp.float32),
        "b4":  jnp.zeros((1, out_nf), jnp.float32),
    }


def gcl_reference(x, edge_index, edge_mask, edge_attr, params):
    """Plain-JAX f32 reference mirroring the PyTorch forward semantics."""
    row, col = edge_index
    src, tgt = x[row], x[col]
    e_in1 = (src @ params["w1s"] + tgt @ params["w1t"]
             + edge_attr @ params["w1a"] + params["b1"])
    h = jnp.maximum(e_in1, 0.0)
    ef = jnp.maximum(h @ params["w2"] + params["b2"], 0.0)
    ef = ef * edge_mask
    agg = jax.ops.segment_sum(ef, row, num_segments=x.shape[0])
    nh = jnp.maximum(x @ params["w3x"] + agg @ params["w3a"] + params["b3"], 0.0)
    x_out = nh @ params["w4"] + params["b4"]
    return x_out, ef


if __name__ == "__main__":
    key = jax.random.PRNGKey(0)
    k_x, k_ea, k_m, k_p = jax.random.split(key, 4)

    # Small but lane-friendly sizes: hidden/out dims = 128 so the MXU/outputs
    # are lane-dense; N stays small (graph nodes) as in qm9.
    N, nf, hidden, out_nf, ea_dim = 32, 32, 128, 128, 4

    # fully-connected graph without self loops: E = N*(N-1) = 992 (padded to 1024)
    rows, cols = [], []
    for i in range(N):
        for j in range(N):
            if i != j:
                rows.append(i)
                cols.append(j)
    row = jnp.array(rows, dtype=jnp.int32)
    col = jnp.array(cols, dtype=jnp.int32)
    E = row.shape[0]

    x = jax.random.normal(k_x, (N, nf), jnp.float32)
    edge_attr = jax.random.normal(k_ea, (E, ea_dim), jnp.float32)
    edge_mask = (jax.random.uniform(k_m, (E, 1)) > 0.2).astype(jnp.float32)
    params = make_params(k_p, nf, ea_dim, hidden, out_nf)

    x_out, edge_feat = gcl_forward(x, (row, col), edge_mask, edge_attr, params,
                                   edge_tile=512)
    jax.block_until_ready((x_out, edge_feat))

    x_ref, ef_ref = gcl_reference(x, (row, col), edge_mask, edge_attr, params)

    def rel_err(got, want):
        got = got.astype(jnp.float32)
        return float(jnp.max(jnp.abs(got - want)) / (jnp.max(jnp.abs(want)) + 1e-6))

    assert x_out.shape == x_ref.shape and edge_feat.shape == ef_ref.shape
    # bf16-matmul/bf16-elementwise kernel vs f32 reference: max error normalized
    # by output scale.
    assert rel_err(x_out, x_ref) < 3e-2, rel_err(x_out, x_ref)
    assert rel_err(edge_feat, ef_ref) < 3e-2, rel_err(edge_feat, ef_ref)
    print("KERNEL_OK")
</pallas_src>

<mosaic_0001>
module attributes {stable_mosaic.version = 11 : i64} {
  func.func @gcl_kernel(%arg0: i32, %arg1: memref<512x1xi32, #tpu.memory_space<vmem>>, %arg2: memref<512x1xi32, #tpu.memory_space<vmem>>, %arg3: memref<512x4xbf16, #tpu.memory_space<vmem>>, %arg4: memref<512x1xbf16, #tpu.memory_space<vmem>>, %arg5: memref<32x32xbf16, #tpu.memory_space<vmem>>, %arg6: memref<32x128xbf16, #tpu.memory_space<vmem>>, %arg7: memref<32x128xbf16, #tpu.memory_space<vmem>>, %arg8: memref<4x128xbf16, #tpu.memory_space<vmem>>, %arg9: memref<1x128xbf16, #tpu.memory_space<vmem>>, %arg10: memref<128x128xbf16, #tpu.memory_space<vmem>>, %arg11: memref<1x128xbf16, #tpu.memory_space<vmem>>, %arg12: memref<32x128xbf16, #tpu.memory_space<vmem>>, %arg13: memref<128x128xbf16, #tpu.memory_space<vmem>>, %arg14: memref<1x128xbf16, #tpu.memory_space<vmem>>, %arg15: memref<128x128xbf16, #tpu.memory_space<vmem>>, %arg16: memref<1x128xf32, #tpu.memory_space<vmem>>, %arg17: memref<32x128xf32, #tpu.memory_space<vmem>>, %arg18: memref<512x128xbf16, #tpu.memory_space<vmem>>, %arg19: memref<32x128xf32, #tpu.memory_space<vmem>>) attributes {dimension_semantics = [#tpu.dimension_semantics<arbitrary>], iteration_bounds = array<i64: 2>, scalar_prefetch = 0 : i64, scratch_operands = 1 : i64, tpu.core_type = #tpu.core_type<tc>, window_params = [{transform_indices = @transform_0, window_bounds = array<i64: 512, 1>}, {transform_indices = @transform_1, window_bounds = array<i64: 512, 1>}, {transform_indices = @transform_2, window_bounds = array<i64: 512, 4>}, {transform_indices = @transform_3, window_bounds = array<i64: 512, 1>}, {pipeline_mode = #tpu.pipeline_mode<synchronous>, transform_indices = @transform_4, window_bounds = array<i64: 32, 32>}, {pipeline_mode = #tpu.pipeline_mode<synchronous>, transform_indices = @transform_5, window_bounds = array<i64: 32, 128>}, {pipeline_mode = #tpu.pipeline_mode<synchronous>, transform_indices = @transform_6, window_bounds = array<i64: 32, 128>}, {pipeline_mode = #tpu.pipeline_mode<synchronous>, transform_indices = @transform_7, window_bounds = array<i64: 4, 128>}, {pipeline_mode = #tpu.pipeline_mode<synchronous>, transform_indices = @transform_8, window_bounds = array<i64: 1, 128>}, {pipeline_mode = #tpu.pipeline_mode<synchronous>, transform_indices = @transform_9, window_bounds = array<i64: 128, 128>}, {pipeline_mode = #tpu.pipeline_mode<synchronous>, transform_indices = @transform_10, window_bounds = array<i64: 1, 128>}, {pipeline_mode = #tpu.pipeline_mode<synchronous>, transform_indices = @transform_11, window_bounds = array<i64: 32, 128>}, {pipeline_mode = #tpu.pipeline_mode<synchronous>, transform_indices = @transform_12, window_bounds = array<i64: 128, 128>}, {pipeline_mode = #tpu.pipeline_mode<synchronous>, transform_indices = @transform_13, window_bounds = array<i64: 1, 128>}, {pipeline_mode = #tpu.pipeline_mode<synchronous>, transform_indices = @transform_14, window_bounds = array<i64: 128, 128>}, {pipeline_mode = #tpu.pipeline_mode<synchronous>, transform_indices = @transform_15, window_bounds = array<i64: 1, 128>}, {pipeline_mode = #tpu.pipeline_mode<synchronous>, transform_indices = @transform_16, window_bounds = array<i64: 32, 128>}, {transform_indices = @transform_17, window_bounds = array<i64: 512, 128>}]} {
    %c0_i32 = arith.constant 0 : i32
    %0 = arith.cmpi eq, %arg0, %c0_i32 : i32
    %1 = arith.extui %0 : i1 to i32
    %c0_i32_0 = arith.constant 0 : i32
    %2 = arith.cmpi ne, %1, %c0_i32_0 : i32
    scf.if %2 {
      %cst_37 = arith.constant 0.000000e+00 : f32
      %55 = vector.broadcast %cst_37 : f32 to vector<32x128xf32>
      %c0_38 = arith.constant 0 : index
      %c0_39 = arith.constant 0 : index
      %56 = vector.load %arg19[%c0_38, %c0_39] : memref<32x128xf32, #tpu.memory_space<vmem>>, vector<32x128xf32>
      tpu.vector_store %arg19[%c0_38, %c0_39], %55 {strides = array<i32>} : memref<32x128xf32, #tpu.memory_space<vmem>>, vector<32x128xf32>,
    } else {
    }
    %3 = tpu.iota {dimensions = array<i32: 1>} : vector<512x32xi32>
    %c0 = arith.constant 0 : index
    %c0_1 = arith.constant 0 : index
    %4 = vector.load %arg1[%c0, %c0_1] : memref<512x1xi32, #tpu.memory_space<vmem>>, vector<512x1xi32>
    %5 = vector.broadcast %4 : vector<512x1xi32> to vector<512x32xi32>
    %6 = arith.cmpi eq, %3, %5 : vector<512x32xi32>
    %7 = arith.extui %6 : vector<512x32xi1> to vector<512x32xi32>
    %8 = arith.sitofp %7 : vector<512x32xi32> to vector<512x32xf32>
    %9 = arith.truncf %8 : vector<512x32xf32> to vector<512x32xbf16>
    %c0_2 = arith.constant 0 : index
    %c0_3 = arith.constant 0 : index
    %10 = vector.load %arg2[%c0_2, %c0_3] : memref<512x1xi32, #tpu.memory_space<vmem>>, vector<512x1xi32>
    %11 = vector.broadcast %10 : vector<512x1xi32> to vector<512x32xi32>
    %12 = arith.cmpi eq, %3, %11 : vector<512x32xi32>
    %13 = arith.extui %12 : vector<512x32xi1> to vector<512x32xi32>
    %14 = arith.sitofp %13 : vector<512x32xi32> to vector<512x32xf32>
    %15 = arith.truncf %14 : vector<512x32xf32> to vector<512x32xbf16>
    %c0_4 = arith.constant 0 : index
    %c0_5 = arith.constant 0 : index
    %16 = vector.load %arg5[%c0_4, %c0_5] : memref<32x32xbf16, #tpu.memory_space<vmem>>, vector<32x32xbf16>
    %cst = arith.constant dense<0.000000e+00> : vector<512x32xf32>
    %17 = tpu.matmul %9, %16, %cst {dimension_numbers = #tpu.dot_dimension_numbers<[1], [0], [0], [1], [0, 0, 1, 1], [], []>} : vector<512x32xbf16>, vector<32x32xbf16>, vector<512x32xf32> -> vector<512x32xf32>
    %18 = arith.truncf %17 : vector<512x32xf32> to vector<512x32xbf16>
    %cst_6 = arith.constant dense<0.000000e+00> : vector<512x32xf32>
    %19 = tpu.matmul %15, %16, %cst_6 {dimension_numbers = #tpu.dot_dimension_numbers<[1], [0], [0], [1], [0, 0, 1, 1], [], []>} : vector<512x32xbf16>, vector<32x32xbf16>, vector<512x32xf32> -> vector<512x32xf32>
    %20 = arith.truncf %19 : vector<512x32xf32> to vector<512x32xbf16>
    %c0_7 = arith.constant 0 : index
    %c0_8 = arith.constant 0 : index
    %21 = vector.load %arg6[%c0_7, %c0_8] : memref<32x128xbf16, #tpu.memory_space<vmem>>, vector<32x128xbf16>
    %cst_9 = arith.constant dense<0.000000e+00> : vector<512x128xf32>
    %22 = tpu.matmul %18, %21, %cst_9 {dimension_numbers = #tpu.dot_dimension_numbers<[1], [0], [0], [1], [0, 0, 1, 1], [], []>} : vector<512x32xbf16>, vector<32x128xbf16>, vector<512x128xf32> -> vector<512x128xf32>
    %c0_10 = arith.constant 0 : index
    %c0_11 = arith.constant 0 : index
    %23 = vector.load %arg7[%c0_10, %c0_11] : memref<32x128xbf16, #tpu.memory_space<vmem>>, vector<32x128xbf16>
    %cst_12 = arith.constant dense<0.000000e+00> : vector<512x128xf32>
    %24 = tpu.matmul %20, %23, %cst_12 {dimension_numbers = #tpu.dot_dimension_numbers<[1], [0], [0], [1], [0, 0, 1, 1], [], []>} : vector<512x32xbf16>, vector<32x128xbf16>, vector<512x128xf32> -> vector<512x128xf32>
    %25 = arith.addf %22, %24 : vector<512x128xf32>
    %c0_13 = arith.constant 0 : index
    %c0_14 = arith.constant 0 : index
    %26 = vector.load %arg3[%c0_13, %c0_14] : memref<512x4xbf16, #tpu.memory_space<vmem>>, vector<512x4xbf16>
    %c0_15 = arith.constant 0 : index
    %c0_16 = arith.constant 0 : index
    %27 = vector.load %arg8[%c0_15, %c0_16] : memref<4x128xbf16, #tpu.memory_space<vmem>>, vector<4x128xbf16>
    %cst_17 = arith.constant dense<0.000000e+00> : vector<512x128xf32>
    %28 = tpu.matmul %26, %27, %cst_17 {dimension_numbers = #tpu.dot_dimension_numbers<[1], [0], [0], [1], [0, 0, 1, 1], [], []>} : vector<512x4xbf16>, vector<4x128xbf16>, vector<512x128xf32> -> vector<512x128xf32>
    %29 = arith.addf %25, %28 : vector<512x128xf32>
    %30 = arith.truncf %29 : vector<512x128xf32> to vector<512x128xbf16>
    %c0_18 = arith.constant 0 : index
    %c0_19 = arith.constant 0 : index
    %31 = vector.load %arg9[%c0_18, %c0_19] : memref<1x128xbf16, #tpu.memory_space<vmem>>, vector<1x128xbf16>
    %32 = vector.broadcast %31 : vector<1x128xbf16> to vector<512x128xbf16>
    %33 = arith.addf %30, %32 : vector<512x128xbf16>
    %cst_20 = arith.constant 0.000000e+00 : bf16
    %34 = vector.broadcast %cst_20 : bf16 to vector<512x128xbf16>
    %35 = arith.maximumf %33, %34 : vector<512x128xbf16>
    %c0_21 = arith.constant 0 : index
    %c0_22 = arith.constant 0 : index
    %36 = vector.load %arg10[%c0_21, %c0_22] : memref<128x128xbf16, #tpu.memory_space<vmem>>, vector<128x128xbf16>
    %cst_23 = arith.constant dense<0.000000e+00> : vector<512x128xf32>
    %37 = tpu.matmul %35, %36, %cst_23 {dimension_numbers = #tpu.dot_dimension_numbers<[1], [0], [0], [1], [0, 0, 1, 1], [], []>} : vector<512x128xbf16>, vector<128x128xbf16>, vector<512x128xf32> -> vector<512x128xf32>
    %38 = arith.truncf %37 : vector<512x128xf32> to vector<512x128xbf16>
    %c0_24 = arith.constant 0 : index
    %c0_25 = arith.constant 0 : index
    %39 = vector.load %arg11[%c0_24, %c0_25] : memref<1x128xbf16, #tpu.memory_space<vmem>>, vector<1x128xbf16>
    %40 = vector.broadcast %39 : vector<1x128xbf16> to vector<512x128xbf16>
    %41 = arith.addf %38, %40 : vector<512x128xbf16>
    %cst_26 = arith.constant 0.000000e+00 : bf16
    %42 = vector.broadcast %cst_26 : bf16 to vector<512x128xbf16>
    %43 = arith.maximumf %41, %42 : vector<512x128xbf16>
    %c0_27 = arith.constant 0 : index
    %c0_28 = arith.constant 0 : index
    %44 = vector.load %arg4[%c0_27, %c0_28] : memref<512x1xbf16, #tpu.memory_space<vmem>>, vector<512x1xbf16>
    %45 = vector.broadcast %44 : vector<512x1xbf16> to vector<512x128xbf16>
    %46 = arith.mulf %43, %45 : vector<512x128xbf16>
    %c0_29 = arith.constant 0 : index
    %c0_30 = arith.constant 0 : index
    %47 = vector.load %arg18[%c0_29, %c0_30] : memref<512x128xbf16, #tpu.memory_space<vmem>>, vector<512x128xbf16>
    tpu.vector_store %arg18[%c0_29, %c0_30], %46 {strides = array<i32>} : memref<512x128xbf16, #tpu.memory_space<vmem>>, vector<512x128xbf16>,
    %c0_31 = arith.constant 0 : index
    %c0_32 = arith.constant 0 : index
    %48 = vector.load %arg19[%c0_31, %c0_32] : memref<32x128xf32, #tpu.memory_space<vmem>>, vector<32x128xf32>
    %cst_33 = arith.constant dense<0.000000e+00> : vector<32x128xf32>
    %49 = tpu.matmul %9, %46, %cst_33 {dimension_numbers = #tpu.dot_dimension_numbers<[0], [0], [1], [1], [0, 1, 1, 1], [], []>} : vector<512x32xbf16>, vector<512x128xbf16>, vector<32x128xf32> -> vector<32x128xf32>
    %50 = arith.addf %48, %49 : vector<32x128xf32>
    %c0_34 = arith.constant 0 : index
    %c0_35 = arith.constant 0 : index
    %51 = vector.load %arg19[%c0_34, %c0_35] : memref<32x128xf32, #tpu.memory_space<vmem>>, vector<32x128xf32>
    tpu.vector_store %arg19[%c0_34, %c0_35], %50 {strides = array<i32>} : memref<32x128xf32, #tpu.memory_space<vmem>>, vector<32x128xf32>,
    %c1_i32 = arith.constant 1 : i32
    %52 = arith.cmpi eq, %arg0, %c1_i32 : i32
    %53 = arith.extui %52 : i1 to i32
    %c0_i32_36 = arith.constant 0 : i32
    %54 = arith.cmpi ne, %53, %c0_i32_36 : i32
    scf.if %54 {
      %c0_37 = arith.constant 0 : index
      %c0_38 = arith.constant 0 : index
      %55 = vector.load %arg19[%c0_37, %c0_38] : memref<32x128xf32, #tpu.memory_space<vmem>>, vector<32x128xf32>
      %56 = arith.truncf %55 : vector<32x128xf32> to vector<32x128xbf16>
      %c0_39 = arith.constant 0 : index
      %c0_40 = arith.constant 0 : index
      %57 = vector.load %arg12[%c0_39, %c0_40] : memref<32x128xbf16, #tpu.memory_space<vmem>>, vector<32x128xbf16>
      %cst_41 = arith.constant dense<0.000000e+00> : vector<32x128xf32>
      %58 = tpu.matmul %16, %57, %cst_41 {dimension_numbers = #tpu.dot_dimension_numbers<[1], [0], [0], [1], [0, 0, 1, 1], [], []>} : vector<32x32xbf16>, vector<32x128xbf16>, vector<32x128xf32> -> vector<32x128xf32>
      %c0_42 = arith.constant 0 : index
      %c0_43 = arith.constant 0 : index
      %59 = vector.load %arg13[%c0_42, %c0_43] : memref<128x128xbf16, #tpu.memory_space<vmem>>, vector<128x128xbf16>
      %cst_44 = arith.constant dense<0.000000e+00> : vector<32x128xf32>
      %60 = tpu.matmul %56, %59, %cst_44 {dimension_numbers = #tpu.dot_dimension_numbers<[1], [0], [0], [1], [0, 0, 1, 1], [], []>} : vector<32x128xbf16>, vector<128x128xbf16>, vector<32x128xf32> -> vector<32x128xf32>
      %61 = arith.addf %58, %60 : vector<32x128xf32>
      %62 = arith.truncf %61 : vector<32x128xf32> to vector<32x128xbf16>
      %c0_45 = arith.constant 0 : index
      %c0_46 = arith.constant 0 : index
      %63 = vector.load %arg14[%c0_45, %c0_46] : memref<1x128xbf16, #tpu.memory_space<vmem>>, vector<1x128xbf16>
      %64 = vector.broadcast %63 : vector<1x128xbf16> to vector<32x128xbf16>
      %65 = arith.addf %62, %64 : vector<32x128xbf16>
      %cst_47 = arith.constant 0.000000e+00 : bf16
      %66 = vector.broadcast %cst_47 : bf16 to vector<32x128xbf16>
      %67 = arith.maximumf %65, %66 : vector<32x128xbf16>
      %c0_48 = arith.constant 0 : index
      %c0_49 = arith.constant 0 : index
      %68 = vector.load %arg15[%c0_48, %c0_49] : memref<128x128xbf16, #tpu.memory_space<vmem>>, vector<128x128xbf16>
      %cst_50 = arith.constant dense<0.000000e+00> : vector<32x128xf32>
      %69 = tpu.matmul %67, %68, %cst_50 {dimension_numbers = #tpu.dot_dimension_numbers<[1], [0], [0], [1], [0, 0, 1, 1], [], []>} : vector<32x128xbf16>, vector<128x128xbf16>, vector<32x128xf32> -> vector<32x128xf32>
      %c0_51 = arith.constant 0 : index
      %c0_52 = arith.constant 0 : index
      %70 = vector.load %arg16[%c0_51, %c0_52] : memref<1x128xf32, #tpu.memory_space<vmem>>, vector<1x128xf32>
      %71 = vector.broadcast %70 : vector<1x128xf32> to vector<32x128xf32>
      %72 = arith.addf %69, %71 : vector<32x128xf32>
      %c0_53 = arith.constant 0 : index
      %c0_54 = arith.constant 0 : index
      %73 = vector.load %arg17[%c0_53, %c0_54] : memref<32x128xf32, #tpu.memory_space<vmem>>, vector<32x128xf32>
      tpu.vector_store %arg17[%c0_53, %c0_54], %72 {strides = array<i32>} : memref<32x128xf32, #tpu.memory_space<vmem>>, vector<32x128xf32>,
    } else {
    }
    return
  }
  func.func @transform_0(%arg0: i32) -> (i32, i32) {
    %c0_i32 = arith.constant 0 : i32
    %c0_i32_0 = arith.constant 0 : i32
    return %arg0, %c0_i32 : i32, i32
  }
  func.func @transform_1(%arg0: i32) -> (i32, i32) {
    %c0_i32 = arith.constant 0 : i32
    %c0_i32_0 = arith.constant 0 : i32
    return %arg0, %c0_i32 : i32, i32
  }
  func.func @transform_2(%arg0: i32) -> (i32, i32) {
    %c0_i32 = arith.constant 0 : i32
    %c0_i32_0 = arith.constant 0 : i32
    return %arg0, %c0_i32 : i32, i32
  }
  func.func @transform_3(%arg0: i32) -> (i32, i32) {
    %c0_i32 = arith.constant 0 : i32
    %c0_i32_0 = arith.constant 0 : i32
    return %arg0, %c0_i32 : i32, i32
  }
  func.func @transform_4(%arg0: i32) -> (i32, i32) {
    %c0_i32 = arith.constant 0 : i32
    %c0_i32_0 = arith.constant 0 : i32
    %c0_i32_1 = arith.constant 0 : i32
    return %c0_i32, %c0_i32_0 : i32, i32
  }
  func.func @transform_5(%arg0: i32) -> (i32, i32) {
    %c0_i32 = arith.constant 0 : i32
    %c0_i32_0 = arith.constant 0 : i32
    %c0_i32_1 = arith.constant 0 : i32
    return %c0_i32, %c0_i32_0 : i32, i32
  }
  func.func @transform_6(%arg0: i32) -> (i32, i32) {
    %c0_i32 = arith.constant 0 : i32
    %c0_i32_0 = arith.constant 0 : i32
    %c0_i32_1 = arith.constant 0 : i32
    return %c0_i32, %c0_i32_0 : i32, i32
  }
  func.func @transform_7(%arg0: i32) -> (i32, i32) {
    %c0_i32 = arith.constant 0 : i32
    %c0_i32_0 = arith.constant 0 : i32
    %c0_i32_1 = arith.constant 0 : i32
    return %c0_i32, %c0_i32_0 : i32, i32
  }
  func.func @transform_8(%arg0: i32) -> (i32, i32) {
    %c0_i32 = arith.constant 0 : i32
    %c0_i32_0 = arith.constant 0 : i32
    %c0_i32_1 = arith.constant 0 : i32
    return %c0_i32, %c0_i32_0 : i32, i32
  }
  func.func @transform_9(%arg0: i32) -> (i32, i32) {
    %c0_i32 = arith.constant 0 : i32
    %c0_i32_0 = arith.constant 0 : i32
    %c0_i32_1 = arith.constant 0 : i32
    return %c0_i32, %c0_i32_0 : i32, i32
  }
  func.func @transform_10(%arg0: i32) -> (i32, i32) {
    %c0_i32 = arith.constant 0 : i32
    %c0_i32_0 = arith.constant 0 : i32
    %c0_i32_1 = arith.constant 0 : i32
    return %c0_i32, %c0_i32_0 : i32, i32
  }
  func.func @transform_11(%arg0: i32) -> (i32, i32) {
    %c0_i32 = arith.constant 0 : i32
    %c0_i32_0 = arith.constant 0 : i32
    %c0_i32_1 = arith.constant 0 : i32
    return %c0_i32, %c0_i32_0 : i32, i32
  }
  func.func @transform_12(%arg0: i32) -> (i32, i32) {
    %c0_i32 = arith.constant 0 : i32
    %c0_i32_0 = arith.constant 0 : i32
    %c0_i32_1 = arith.constant 0 : i32
    return %c0_i32, %c0_i32_0 : i32, i32
  }
  func.func @transform_13(%arg0: i32) -> (i32, i32) {
    %c0_i32 = arith.constant 0 : i32
    %c0_i32_0 = arith.constant 0 : i32
    %c0_i32_1 = arith.constant 0 : i32
    return %c0_i32, %c0_i32_0 : i32, i32
  }
  func.func @transform_14(%arg0: i32) -> (i32, i32) {
    %c0_i32 = arith.constant 0 : i32
    %c0_i32_0 = arith.constant 0 : i32
    %c0_i32_1 = arith.constant 0 : i32
    return %c0_i32, %c0_i32_0 : i32, i32
  }
  func.func @transform_15(%arg0: i32) -> (i32, i32) {
    %c0_i32 = arith.constant 0 : i32
    %c0_i32_0 = arith.constant 0 : i32
    %c0_i32_1 = arith.constant 0 : i32
    return %c0_i32, %c0_i32_0 : i32, i32
  }
  func.func @transform_16(%arg0: i32) -> (i32, i32) {
    %c0_i32 = arith.constant 0 : i32
    %c0_i32_0 = arith.constant 0 : i32
    %c0_i32_1 = arith.constant 0 : i32
    return %c0_i32, %c0_i32_0 : i32, i32
  }
  func.func @transform_17(%arg0: i32) -> (i32, i32) {
    %c0_i32 = arith.constant 0 : i32
    %c0_i32_0 = arith.constant 0 : i32
    return %arg0, %c0_i32 : i32, i32
  }
}

</mosaic_0001>

<llo_original>
// kernel: tpu_custom_call.1
$region0: #{tpu_custom_call.1}
  #allocation0 [shape = 'u32[]', space=smem, size = 0x4, offset = 0x4, fixed_abs, tag = 'smem constant byte address 0x4 - core index']
  #allocation1 [shape = 'u32[144,128]{1,0:T(1,128)}', space=vmem, size = 0x12000, scoped, tag = 'internal scratch']
  #allocation2 [shape = 'f32[32,128]{1,0:T(8,128)}', space=vmem, size = 0x4000, scoped, tag = 'scratch operand']
  %s0 = inlined_call_operand.vmem [shape: s32[1024,1], index: 0, kind: input, shape index: {}]
  %s1 = inlined_call_operand.vmem [shape: s32[1024,1], index: 1, kind: input, shape index: {}]
  %s2 = inlined_call_operand.vmem [shape: bf16[1024,4], index: 2, kind: input, shape index: {}]
  %s3 = inlined_call_operand.vmem [shape: bf16[1024,1], index: 3, kind: input, shape index: {}]
  %s4 = inlined_call_operand.vmem [shape: bf16[32,32], index: 4, kind: input, shape index: {}]
  %s5 = inlined_call_operand.vmem [shape: bf16[32,128], index: 5, kind: input, shape index: {}]
  %s6 = inlined_call_operand.vmem [shape: bf16[32,128], index: 6, kind: input, shape index: {}]
  %s7 = inlined_call_operand.vmem [shape: bf16[4,128], index: 7, kind: input, shape index: {}]
  %s8 = inlined_call_operand.vmem [shape: bf16[1,128], index: 8, kind: input, shape index: {}]
  %s9 = inlined_call_operand.vmem [shape: bf16[128,128], index: 9, kind: input, shape index: {}]
  %s10 = inlined_call_operand.vmem [shape: bf16[1,128], index: 10, kind: input, shape index: {}]
  %s11 = inlined_call_operand.vmem [shape: bf16[32,128], index: 11, kind: input, shape index: {}]
  %s12 = inlined_call_operand.vmem [shape: bf16[128,128], index: 12, kind: input, shape index: {}]
  %s13 = inlined_call_operand.vmem [shape: bf16[1,128], index: 13, kind: input, shape index: {}]
  %s14 = inlined_call_operand.vmem [shape: bf16[128,128], index: 14, kind: input, shape index: {}]
  %s15 = inlined_call_operand.vmem [shape: f32[1,128], index: 15, kind: input, shape index: {}]
  %s16 = inlined_call_operand.hbm [shape: f32[32,128], index: 16, kind: output, shape index: {0}]
  %s17 = inlined_call_operand.hbm [shape: bf16[1024,128], index: 17, kind: output, shape index: {1}]
  %18 = xla_tuple %s16, %s17
  %s19 = sld [smem:[#allocation0]]
  $region113: #{tpu_custom_call.1} parent=0
    _
  %s21 = ssub.s32 1, %s19
  %s22 = scalar_select 0, %s21, %s19
  $region1: #{tpu_custom_call.1} parent=0
    #allocation3 [shape = 'u8[16384]{0}', space=vmem, size = 0x4000, scoped, tag = 'output window, operand 0, single buffered']
    #allocation4 [shape = 's32[2]{0}', space=sflag, size = 0x8, scoped, tag = 'scoped memory for tpu_custom_call.1']
    #allocation5 [shape = 'u8[262144]{0}', space=vmem, size = 0x40000, scoped, tag = 'output window, operand 1']
    #allocation6 [shape = 's32[2]{0}', space=sflag, size = 0x8, scoped, tag = 'scoped memory for tpu_custom_call.1']
    %23 = vsyncpa [#allocation4], 0
    %24 = vsyncpa [#allocation6], 0
    %s25 = scalar_lea.sflag [#allocation6], 1
    %26 = vsyncpa %s25, 0
    loop: start=0, step=1, limit=4
    $region2: #{tpu_custom_call.1} parent=1 // loop_pre_header
      _
    $region3: #{tpu_custom_call.1} parent=1 // loop_header
      %s28 = sphi 0, %s32
      %p29 = scmp.ge.s32.totalorder %s28, 4
      %s38 = sphi 0, %s40
      %s41 = sphi 0, %s38
      %s42 = sphi 0, %s41
      %s58 = sphi 0, %s42
      %s64 = sphi 0, %s66
      %s67 = sphi 0, %s64
      %s68 = sphi 0, %s67
      %s84 = sphi 0, %s68
      %s90 = sphi 0, %s92
      %s93 = sphi 0, %s90
      %s94 = sphi 0, %s93
      %s110 = sphi 0, %s94
      %s116 = sphi 0, %s118
      %s119 = sphi 0, %s116
      %s120 = sphi 0, %s119
      %s136 = sphi 0, %s120
      %s140 = sphi 0, %s140
      %s142 = sphi 0, %s140
      %s143 = sphi 0, %s142
      %s157 = sphi 0, %s143
      %s161 = sphi 0, %s161
      %s163 = sphi 0, %s161
      %s164 = sphi 0, %s163
      %s178 = sphi 0, %s164
      %s182 = sphi 0, %s182
      %s184 = sphi 0, %s182
      %s185 = sphi 0, %s184
      %s199 = sphi 0, %s185
      %s203 = sphi 0, %s203
      %s205 = sphi 0, %s203
      %s206 = sphi 0, %s205
      %s220 = sphi 0, %s206
      %s224 = sphi 0, %s224
      %s226 = sphi 0, %s224
      %s227 = sphi 0, %s226
      %s241 = sphi 0, %s227
      %s245 = sphi 0, %s245
      %s247 = sphi 0, %s245
      %s248 = sphi 0, %s247
      %s262 = sphi 0, %s248
      %s266 = sphi 0, %s266
      %s268 = sphi 0, %s266
      %s269 = sphi 0, %s268
      %s283 = sphi 0, %s269
      %s287 = sphi 0, %s287
      %s289 = sphi 0, %s287
      %s290 = sphi 0, %s289
      %s304 = sphi 0, %s290
      %s308 = sphi 0, %s308
      %s310 = sphi 0, %s308
      %s311 = sphi 0, %s310
      %s325 = sphi 0, %s311
      %s329 = sphi 0, %s329
      %s331 = sphi 0, %s329
      %s332 = sphi 0, %s331
      %s346 = sphi 0, %s332
      %s350 = sphi 0, %s350
      %s352 = sphi 0, %s350
      %s353 = sphi 0, %s352
      %s367 = sphi 0, %s353
      %s371 = sphi 0, %s371
      %s373 = sphi 0, %s371
      %s374 = sphi 0, %s373
      %s388 = sphi 0, %s374
      %s392 = sphi 0, %s392
      %s394 = sphi 0, %s392
      %s395 = sphi 0, %s394
      %s409 = sphi 0, %s395
      %s415 = sphi 0, %s417
      %s418 = sphi 0, %s415
      %s419 = sphi 0, %s418
      %s435 = sphi 0, %s419
    $region4: #{tpu_custom_call.1} parent=1 // loop_header_branch
      %31 = sbr.rel (%p29) target = $region8
    $region5: #{tpu_custom_call.1} parent=1 // loop_body
      %s33 = ssub.s32 %s28, 1
      %s34 = ssub.s32 %s28, 2
      %s35 = sadd.s32 %s28, 1
      %s36 = ssub.s32 %s28, %s35
      %p37 = scmp.eq.s32.totalorder %s36, 0
      %s39 = sadd.s32 %s38, 1
      %s40 = scalar_select %p37, %s38, %s39
      %p43 = pneg %p37
      %p44 = scmp.eq.s32.totalorder %s28, 1
      %p45 = por %p43, %p44
      %p46 = scmp.ne.s32.totalorder %s38, %s41
      %p47 = scmp.eq.s32.totalorder %s28, 0
      %p48 = por %p46, %p47
      %p49 = scmp.ne.s32.totalorder %s38, %s41
      %p50 = scmp.eq.s32.totalorder %s33, 1
      %p51 = por %p49, %p50
      %p52 = scmp.ne.s32.totalorder %s41, %s42
      %p53 = scmp.eq.s32.totalorder %s33, 0
      %p54 = por %p52, %p53
      %p55 = scmp.ne.s32.totalorder %s41, %s42
      %p56 = scmp.eq.s32.totalorder %s34, 1
      %p57 = por %p55, %p56
      %p59 = scmp.ne.s32.totalorder %s42, %s58
      %p60 = scmp.eq.s32.totalorder %s34, 0
      %p61 = por %p59, %p60
      %s62 = ssub.s32 %s28, %s35
      %p63 = scmp.eq.s32.totalorder %s62, 0
      %s65 = sadd.s32 %s64, 1
      %s66 = scalar_select %p63, %s64, %s65
      %p69 = pneg %p63
      %p70 = scmp.eq.s32.totalorder %s28, 1
      %p71 = por %p69, %p70
      %p72 = scmp.ne.s32.totalorder %s64, %s67
      %p73 = scmp.eq.s32.totalorder %s28, 0
      %p74 = por %p72, %p73
      %p75 = scmp.ne.s32.totalorder %s64, %s67
      %p76 = scmp.eq.s32.totalorder %s33, 1
      %p77 = por %p75, %p76
      %p78 = scmp.ne.s32.totalorder %s67, %s68
      %p79 = scmp.eq.s32.totalorder %s33, 0
      %p80 = por %p78, %p79
      %p81 = scmp.ne.s32.totalorder %s67, %s68
      %p82 = scmp.eq.s32.totalorder %s34, 1
      %p83 = por %p81, %p82
      %p85 = scmp.ne.s32.totalorder %s68, %s84
      %p86 = scmp.eq.s32.totalorder %s34, 0
      %p87 = por %p85, %p86
      %s88 = ssub.s32 %s28, %s35
      %p89 = scmp.eq.s32.totalorder %s88, 0
      %s91 = sadd.s32 %s90, 1
      %s92 = scalar_select %p89, %s90, %s91
      %p95 = pneg %p89
      %p96 = scmp.eq.s32.totalorder %s28, 1
      %p97 = por %p95, %p96
      %p98 = scmp.ne.s32.totalorder %s90, %s93
      %p99 = scmp.eq.s32.totalorder %s28, 0
      %p100 = por %p98, %p99
      %p101 = scmp.ne.s32.totalorder %s90, %s93
      %p102 = scmp.eq.s32.totalorder %s33, 1
      %p103 = por %p101, %p102
      %p104 = scmp.ne.s32.totalorder %s93, %s94
      %p105 = scmp.eq.s32.totalorder %s33, 0
      %p106 = por %p104, %p105
      %p107 = scmp.ne.s32.totalorder %s93, %s94
      %p108 = scmp.eq.s32.totalorder %s34, 1
      %p109 = por %p107, %p108
      %p111 = scmp.ne.s32.totalorder %s94, %s110
      %p112 = scmp.eq.s32.totalorder %s34, 0
      %p113 = por %p111, %p112
      %s114 = ssub.s32 %s28, %s35
      %p115 = scmp.eq.s32.totalorder %s114, 0
      %s117 = sadd.s32 %s116, 1
      %s118 = scalar_select %p115, %s116, %s117
      %p121 = pneg %p115
      %p122 = scmp.eq.s32.totalorder %s28, 1
      %p123 = por %p121, %p122
      %p124 = scmp.ne.s32.totalorder %s116, %s119
      %p125 = scmp.eq.s32.totalorder %s28, 0
      %p126 = por %p124, %p125
      %p127 = scmp.ne.s32.totalorder %s116, %s119
      %p128 = scmp.eq.s32.totalorder %s33, 1
      %p129 = por %p127, %p128
      %p130 = scmp.ne.s32.totalorder %s119, %s120
      %p131 = scmp.eq.s32.totalorder %s33, 0
      %p132 = por %p130, %p131
      %p133 = scmp.ne.s32.totalorder %s119, %s120
      %p134 = scmp.eq.s32.totalorder %s34, 1
      %p135 = por %p133, %p134
      %p137 = scmp.ne.s32.totalorder %s120, %s136
      %p138 = scmp.eq.s32.totalorder %s34, 0
      %p139 = por %p137, %p138
      %s141 = sadd.s32 %s140, 1
      %p144 = scmp.eq.s32.totalorder %s28, 1
      %p145 = scmp.ne.s32.totalorder %s140, %s142
      %p146 = scmp.eq.s32.totalorder %s28, 0
      %p147 = por %p145, %p146
      %p148 = scmp.ne.s32.totalorder %s140, %s142
      %p149 = scmp.eq.s32.totalorder %s33, 1
      %p150 = por %p148, %p149
      %p151 = scmp.ne.s32.totalorder %s142, %s143
      %p152 = scmp.eq.s32.totalorder %s33, 0
      %p153 = por %p151, %p152
      %p154 = scmp.ne.s32.totalorder %s142, %s143
      %p155 = scmp.eq.s32.totalorder %s34, 1
      %p156 = por %p154, %p155
      %p158 = scmp.ne.s32.totalorder %s143, %s157
      %p159 = scmp.eq.s32.totalorder %s34, 0
      %p160 = por %p158, %p159
      %s162 = sadd.s32 %s161, 1
      %p165 = scmp.eq.s32.totalorder %s28, 1
      %p166 = scmp.ne.s32.totalorder %s161, %s163
      %p167 = scmp.eq.s32.totalorder %s28, 0
      %p168 = por %p166, %p167
      %p169 = scmp.ne.s32.totalorder %s161, %s163
      %p170 = scmp.eq.s32.totalorder %s33, 1
      %p171 = por %p169, %p170
      %p172 = scmp.ne.s32.totalorder %s163, %s164
      %p173 = scmp.eq.s32.totalorder %s33, 0
      %p174 = por %p172, %p173
      %p175 = scmp.ne.s32.totalorder %s163, %s164
      %p176 = scmp.eq.s32.totalorder %s34, 1
      %p177 = por %p175, %p176
      %p179 = scmp.ne.s32.totalorder %s164, %s178
      %p180 = scmp.eq.s32.totalorder %s34, 0
      %p181 = por %p179, %p180
      %s183 = sadd.s32 %s182, 1
      %p186 = scmp.eq.s32.totalorder %s28, 1
      %p187 = scmp.ne.s32.totalorder %s182, %s184
      %p188 = scmp.eq.s32.totalorder %s28, 0
      %p189 = por %p187, %p188
      %p190 = scmp.ne.s32.totalorder %s182, %s184
      %p191 = scmp.eq.s32.totalorder %s33, 1
      %p192 = por %p190, %p191
      %p193 = scmp.ne.s32.totalorder %s184, %s185
      %p194 = scmp.eq.s32.totalorder %s33, 0
      %p195 = por %p193, %p194
      %p196 = scmp.ne.s32.totalorder %s184, %s185
      %p197 = scmp.eq.s32.totalorder %s34, 1
      %p198 = por %p196, %p197
      %p200 = scmp.ne.s32.totalorder %s185, %s199
      %p201 = scmp.eq.s32.totalorder %s34, 0
      %p202 = por %p200, %p201
      %s204 = sadd.s32 %s203, 1
      %p207 = scmp.eq.s32.totalorder %s28, 1
      %p208 = scmp.ne.s32.totalorder %s203, %s205
      %p209 = scmp.eq.s32.totalorder %s28, 0
      %p210 = por %p208, %p209
      %p211 = scmp.ne.s32.totalorder %s203, %s205
      %p212 = scmp.eq.s32.totalorder %s33, 1
      %p213 = por %p211, %p212
      %p214 = scmp.ne.s32.totalorder %s205, %s206
      %p215 = scmp.eq.s32.totalorder %s33, 0
      %p216 = por %p214, %p215
      %p217 = scmp.ne.s32.totalorder %s205, %s206
      %p218 = scmp.eq.s32.totalorder %s34, 1
      %p219 = por %p217, %p218
      %p221 = scmp.ne.s32.totalorder %s206, %s220
      %p222 = scmp.eq.s32.totalorder %s34, 0
      %p223 = por %p221, %p222
      %s225 = sadd.s32 %s224, 1
      %p228 = scmp.eq.s32.totalorder %s28, 1
      %p229 = scmp.ne.s32.totalorder %s224, %s226
      %p230 = scmp.eq.s32.totalorder %s28, 0
      %p231 = por %p229, %p230
      %p232 = scmp.ne.s32.totalorder %s224, %s226
      %p233 = scmp.eq.s32.totalorder %s33, 1
      %p234 = por %p232, %p233
      %p235 = scmp.ne.s32.totalorder %s226, %s227
      %p236 = scmp.eq.s32.totalorder %s33, 0
      %p237 = por %p235, %p236
      %p238 = scmp.ne.s32.totalorder %s226, %s227
      %p239 = scmp.eq.s32.totalorder %s34, 1
      %p240 = por %p238, %p239
      %p242 = scmp.ne.s32.totalorder %s227, %s241
      %p243 = scmp.eq.s32.totalorder %s34, 0
      %p244 = por %p242, %p243
      %s246 = sadd.s32 %s245, 1
      %p249 = scmp.eq.s32.totalorder %s28, 1
      %p250 = scmp.ne.s32.totalorder %s245, %s247
      %p251 = scmp.eq.s32.totalorder %s28, 0
      %p252 = por %p250, %p251
      %p253 = scmp.ne.s32.totalorder %s245, %s247
      %p254 = scmp.eq.s32.totalorder %s33, 1
      %p255 = por %p253, %p254
      %p256 = scmp.ne.s32.totalorder %s247, %s248
      %p257 = scmp.eq.s32.totalorder %s33, 0
      %p258 = por %p256, %p257
      %p259 = scmp.ne.s32.totalorder %s247, %s248
      %p260 = scmp.eq.s32.totalorder %s34, 1
      %p261 = por %p259, %p260
      %p263 = scmp.ne.s32.totalorder %s248, %s262
      %p264 = scmp.eq.s32.totalorder %s34, 0
      %p265 = por %p263, %p264
      %s267 = sadd.s32 %s266, 1
      %p270 = scmp.eq.s32.totalorder %s28, 1
      %p271 = scmp.ne.s32.totalorder %s266, %s268
      %p272 = scmp.eq.s32.totalorder %s28, 0
      %p273 = por %p271, %p272
      %p274 = scmp.ne.s32.totalorder %s266, %s268
      %p275 = scmp.eq.s32.totalorder %s33, 1
      %p276 = por %p274, %p275
      %p277 = scmp.ne.s32.totalorder %s268, %s269
      %p278 = scmp.eq.s32.totalorder %s33, 0
      %p279 = por %p277, %p278
      %p280 = scmp.ne.s32.totalorder %s268, %s269
      %p281 = scmp.eq.s32.totalorder %s34, 1
      %p282 = por %p280, %p281
      %p284 = scmp.ne.s32.totalorder %s269, %s283
      %p285 = scmp.eq.s32.totalorder %s34, 0
      %p286 = por %p284, %p285
      %s288 = sadd.s32 %s287, 1
      %p291 = scmp.eq.s32.totalorder %s28, 1
      %p292 = scmp.ne.s32.totalorder %s287, %s289
      %p293 = scmp.eq.s32.totalorder %s28, 0
      %p294 = por %p292, %p293
      %p295 = scmp.ne.s32.totalorder %s287, %s289
      %p296 = scmp.eq.s32.totalorder %s33, 1
      %p297 = por %p295, %p296
      %p298 = scmp.ne.s32.totalorder %s289, %s290
      %p299 = scmp.eq.s32.totalorder %s33, 0
      %p300 = por %p298, %p299
      %p301 = scmp.ne.s32.totalorder %s289, %s290
      %p302 = scmp.eq.s32.totalorder %s34, 1
      %p303 = por %p301, %p302
      %p305 = scmp.ne.s32.totalorder %s290, %s304
      %p306 = scmp.eq.s32.totalorder %s34, 0
      %p307 = por %p305, %p306
      %s309 = sadd.s32 %s308, 1
      %p312 = scmp.eq.s32.totalorder %s28, 1
      %p313 = scmp.ne.s32.totalorder %s308, %s310
      %p314 = scmp.eq.s32.totalorder %s28, 0
      %p315 = por %p313, %p314
      %p316 = scmp.ne.s32.totalorder %s308, %s310
      %p317 = scmp.eq.s32.totalorder %s33, 1
      %p318 = por %p316, %p317
      %p319 = scmp.ne.s32.totalorder %s310, %s311
      %p320 = scmp.eq.s32.totalorder %s33, 0
      %p321 = por %p319, %p320
      %p322 = scmp.ne.s32.totalorder %s310, %s311
      %p323 = scmp.eq.s32.totalorder %s34, 1
      %p324 = por %p322, %p323
      %p326 = scmp.ne.s32.totalorder %s311, %s325
      %p327 = scmp.eq.s32.totalorder %s34, 0
      %p328 = por %p326, %p327
      %s330 = sadd.s32 %s329, 1
      %p333 = scmp.eq.s32.totalorder %s28, 1
      %p334 = scmp.ne.s32.totalorder %s329, %s331
      %p335 = scmp.eq.s32.totalorder %s28, 0
      %p336 = por %p334, %p335
      %p337 = scmp.ne.s32.totalorder %s329, %s331
      %p338 = scmp.eq.s32.totalorder %s33, 1
      %p339 = por %p337, %p338
      %p340 = scmp.ne.s32.totalorder %s331, %s332
      %p341 = scmp.eq.s32.totalorder %s33, 0
      %p342 = por %p340, %p341
      %p343 = scmp.ne.s32.totalorder %s331, %s332
      %p344 = scmp.eq.s32.totalorder %s34, 1
      %p345 = por %p343, %p344
      %p347 = scmp.ne.s32.totalorder %s332, %s346
      %p348 = scmp.eq.s32.totalorder %s34, 0
      %p349 = por %p347, %p348
      %s351 = sadd.s32 %s350, 1
      %p354 = scmp.eq.s32.totalorder %s28, 1
      %p355 = scmp.ne.s32.totalorder %s350, %s352
      %p356 = scmp.eq.s32.totalorder %s28, 0
      %p357 = por %p355, %p356
      %p358 = scmp.ne.s32.totalorder %s350, %s352
      %p359 = scmp.eq.s32.totalorder %s33, 1
      %p360 = por %p358, %p359
      %p361 = scmp.ne.s32.totalorder %s352, %s353
      %p362 = scmp.eq.s32.totalorder %s33, 0
      %p363 = por %p361, %p362
      %p364 = scmp.ne.s32.totalorder %s352, %s353
      %p365 = scmp.eq.s32.totalorder %s34, 1
      %p366 = por %p364, %p365
      %p368 = scmp.ne.s32.totalorder %s353, %s367
      %p369 = scmp.eq.s32.totalorder %s34, 0
      %p370 = por %p368, %p369
      %s372 = sadd.s32 %s371, 1
      %p375 = scmp.eq.s32.totalorder %s28, 1
      %p376 = scmp.ne.s32.totalorder %s371, %s373
      %p377 = scmp.eq.s32.totalorder %s28, 0
      %p378 = por %p376, %p377
      %p379 = scmp.ne.s32.totalorder %s371, %s373
      %p380 = scmp.eq.s32.totalorder %s33, 1
      %p381 = por %p379, %p380
      %p382 = scmp.ne.s32.totalorder %s373, %s374
      %p383 = scmp.eq.s32.totalorder %s33, 0
      %p384 = por %p382, %p383
      %p385 = scmp.ne.s32.totalorder %s373, %s374
      %p386 = scmp.eq.s32.totalorder %s34, 1
      %p387 = por %p385, %p386
      %p389 = scmp.ne.s32.totalorder %s374, %s388
      %p390 = scmp.eq.s32.totalorder %s34, 0
      %p391 = por %p389, %p390
      %s393 = sadd.s32 %s392, 1
      %p396 = scmp.eq.s32.totalorder %s28, 1
      %p397 = scmp.ne.s32.totalorder %s392, %s394
      %p398 = scmp.eq.s32.totalorder %s28, 0
      %p399 = por %p397, %p398
      %p400 = scmp.ne.s32.totalorder %s392, %s394
      %p401 = scmp.eq.s32.totalorder %s33, 1
      %p402 = por %p400, %p401
      %p403 = scmp.ne.s32.totalorder %s394, %s395
      %p404 = scmp.eq.s32.totalorder %s33, 0
      %p405 = por %p403, %p404
      %p406 = scmp.ne.s32.totalorder %s394, %s395
      %p407 = scmp.eq.s32.totalorder %s34, 1
      %p408 = por %p406, %p407
      %p410 = scmp.ne.s32.totalorder %s395, %s409
      %p411 = scmp.eq.s32.totalorder %s34, 0
      %p412 = por %p410, %p411
      %s413 = ssub.s32 %s28, %s35
      %p414 = scmp.eq.s32.totalorder %s413, 0
      %s416 = sadd.s32 %s415, 1
      %s417 = scalar_select %p414, %s415, %s416
      %p420 = pneg %p414
      %p421 = scmp.eq.s32.totalorder %s28, 1
      %p422 = por %p420, %p421
      %p423 = scmp.ne.s32.totalorder %s415, %s418
      %p424 = scmp.eq.s32.totalorder %s28, 0
      %p425 = por %p423, %p424
      %p426 = scmp.ne.s32.totalorder %s415, %s418
      %p427 = scmp.eq.s32.totalorder %s33, 1
      %p428 = por %p426, %p427
      %p429 = scmp.ne.s32.totalorder %s418, %s419
      %p430 = scmp.eq.s32.totalorder %s33, 0
      %p431 = por %p429, %p430
      %p432 = scmp.ne.s32.totalorder %s418, %s419
      %p433 = scmp.eq.s32.totalorder %s34, 1
      %p434 = por %p432, %p433
      %p436 = scmp.ne.s32.totalorder %s419, %s435
      %p437 = scmp.eq.s32.totalorder %s34, 0
      %p438 = por %p436, %p437
      %p439 = scmp.le.s32.totalorder 1, %s28
      %p440 = scmp.lt.s32.totalorder %s28, 3
      %p441 = pnand %p439, %p440
      %p442 = pneg %p441
      // Predicated region
      $region9: #{tpu_custom_call.1} parent=5 // pred_check
        _
      $region10: #{tpu_custom_call.1} parent=5 // pred_check_branch
        %444 = sbr.rel (%p441) target = $region12
      $region11: #{tpu_custom_call.1} parent=5 // pred_region
        %s445 = ssub.s32 %s28, 1
        // Predicated region
        $region13: #{tpu_custom_call.1} parent=11 // pred_check
          %p446 = pneg %p153
        $region14: #{tpu_custom_call.1} parent=11 // pred_check_branch
          %448 = sbr.rel (%p446) target = $region16
        $region15: #{tpu_custom_call.1} parent=11 // pred_region
          _
        $region16: #{tpu_custom_call.1} parent=11 // pred_fallthru
          _
        // Predicated region
        $region17: #{tpu_custom_call.1} parent=11 // pred_check
          %p449 = pneg %p174
        $region18: #{tpu_custom_call.1} parent=11 // pred_check_branch
          %451 = sbr.rel (%p449) target = $region20
        $region19: #{tpu_custom_call.1} parent=11 // pred_region
          _
        $region20: #{tpu_custom_call.1} parent=11 // pred_fallthru
          _
        // Predicated region
        $region21: #{tpu_custom_call.1} parent=11 // pred_check
          %p452 = pneg %p195
        $region22: #{tpu_custom_call.1} parent=11 // pred_check_branch
          %454 = sbr.rel (%p452) target = $region24
        $region23: #{tpu_custom_call.1} parent=11 // pred_region
          _
        $region24: #{tpu_custom_call.1} parent=11 // pred_fallthru
          _
        // Predicated region
        $region25: #{tpu_custom_call.1} parent=11 // pred_check
          %p455 = pneg %p216
        $region26: #{tpu_custom_call.1} parent=11 // pred_check_branch
          %457 = sbr.rel (%p455) target = $region28
        $region27: #{tpu_custom_call.1} parent=11 // pred_region
          _
        $region28: #{tpu_custom_call.1} parent=11 // pred_fallthru
          _
        // Predicated region
        $region29: #{tpu_custom_call.1} parent=11 // pred_check
          %p458 = pneg %p237
        $region30: #{tpu_custom_call.1} parent=11 // pred_check_branch
          %460 = sbr.rel (%p458) target = $region32
        $region31: #{tpu_custom_call.1} parent=11 // pred_region
          _
        $region32: #{tpu_custom_call.1} parent=11 // pred_fallthru
          _
        // Predicated region
        $region33: #{tpu_custom_call.1} parent=11 // pred_check
          %p461 = pneg %p258
        $region34: #{tpu_custom_call.1} parent=11 // pred_check_branch
          %463 = sbr.rel (%p461) target = $region36
        $region35: #{tpu_custom_call.1} parent=11 // pred_region
          _
        $region36: #{tpu_custom_call.1} parent=11 // pred_fallthru
          _
        // Predicated region
        $region37: #{tpu_custom_call.1} parent=11 // pred_check
          %p464 = pneg %p279
        $region38: #{tpu_custom_call.1} parent=11 // pred_check_branch
          %466 = sbr.rel (%p464) target = $region40
        $region39: #{tpu_custom_call.1} parent=11 // pred_region
          _
        $region40: #{tpu_custom_call.1} parent=11 // pred_fallthru
          _
        // Predicated region
        $region41: #{tpu_custom_call.1} parent=11 // pred_check
          %p467 = pneg %p300
        $region42: #{tpu_custom_call.1} parent=11 // pred_check_branch
          %469 = sbr.rel (%p467) target = $region44
        $region43: #{tpu_custom_call.1} parent=11 // pred_region
          _
        $region44: #{tpu_custom_call.1} parent=11 // pred_fallthru
          _
        // Predicated region
        $region45: #{tpu_custom_call.1} parent=11 // pred_check
          %p470 = pneg %p321
        $region46: #{tpu_custom_call.1} parent=11 // pred_check_branch
          %472 = sbr.rel (%p470) target = $region48
        $region47: #{tpu_custom_call.1} parent=11 // pred_region
          _
        $region48: #{tpu_custom_call.1} parent=11 // pred_fallthru
          _
        // Predicated region
        $region49: #{tpu_custom_call.1} parent=11 // pred_check
          %p473 = pneg %p342
        $region50: #{tpu_custom_call.1} parent=11 // pred_check_branch
          %475 = sbr.rel (%p473) target = $region52
        $region51: #{tpu_custom_call.1} parent=11 // pred_region
          _
        $region52: #{tpu_custom_call.1} parent=11 // pred_fallthru
          _
        // Predicated region
        $region53: #{tpu_custom_call.1} parent=11 // pred_check
          %p476 = pneg %p363
        $region54: #{tpu_custom_call.1} parent=11 // pred_check_branch
          %478 = sbr.rel (%p476) target = $region56
        $region55: #{tpu_custom_call.1} parent=11 // pred_region
          _
        $region56: #{tpu_custom_call.1} parent=11 // pred_fallthru
          _
        // Predicated region
        $region57: #{tpu_custom_call.1} parent=11 // pred_check
          %p479 = pneg %p384
        $region58: #{tpu_custom_call.1} parent=11 // pred_check_branch
          %481 = sbr.rel (%p479) target = $region60
        $region59: #{tpu_custom_call.1} parent=11 // pred_region
          _
        $region60: #{tpu_custom_call.1} parent=11 // pred_fallthru
          _
      $region12: #{tpu_custom_call.1} parent=5 // pred_fallthru
        _
      %p482 = scmp.lt.s32.totalorder %s28, 2
      // Predicated region
      $region61: #{tpu_custom_call.1} parent=5 // pred_check
        %p483 = pneg %p482
      $region62: #{tpu_custom_call.1} parent=5 // pred_check_branch
        %485 = sbr.rel (%p483) target = $region64
      $region63: #{tpu_custom_call.1} parent=5 // pred_region
        // Predicated region
        $region65: #{tpu_custom_call.1} parent=63 // pred_check
          %p486 = pneg %p48
        $region66: #{tpu_custom_call.1} parent=63 // pred_check_branch
          %488 = sbr.rel (%p486) target = $region68
        $region67: #{tpu_custom_call.1} parent=63 // pred_region
          %s489 = smul.u32 64, %s28
          %p490 = scmp.lt.s32.totalorder %s489, 127
          %s491 = scalar_select %p490, %s489, 127
          %s492 = smul.addr %s491, 8
          %s493 = scalar_lea.vmem %s0, %s492
          %s494 = smul.u32 64, %s28
        $region68: #{tpu_custom_call.1} parent=63 // pred_fallthru
          _
        // Predicated region
        $region69: #{tpu_custom_call.1} parent=63 // pred_check
          %p495 = pneg %p74
        $region70: #{tpu_custom_call.1} parent=63 // pred_check_branch
          %497 = sbr.rel (%p495) target = $region72
        $region71: #{tpu_custom_call.1} parent=63 // pred_region
          %s498 = smul.u32 64, %s28
          %p499 = scmp.lt.s32.totalorder %s498, 127
          %s500 = scalar_select %p499, %s498, 127
          %s501 = smul.addr %s500, 8
          %s502 = scalar_lea.vmem %s1, %s501
          %s503 = smul.u32 64, %s28
        $region72: #{tpu_custom_call.1} parent=63 // pred_fallthru
          _
        // Predicated region
        $region73: #{tpu_custom_call.1} parent=63 // pred_check
          %p504 = pneg %p100
        $region74: #{tpu_custom_call.1} parent=63 // pred_check_branch
          %506 = sbr.rel (%p504) target = $region76
        $region75: #{tpu_custom_call.1} parent=63 // pred_region
          %s507 = smul.u32 64, %s28
          %p508 = scmp.lt.s32.totalorder %s507, 127
          %s509 = scalar_select %p508, %s507, 127
          %s510 = smul.addr %s509, 4
          %s511 = scalar_lea.vmem %s2, %s510
          %s512 = smul.u32 64, %s28
        $region76: #{tpu_custom_call.1} parent=63 // pred_fallthru
          _
        // Predicated region
        $region77: #{tpu_custom_call.1} parent=63 // pred_check
          %p513 = pneg %p126
        $region78: #{tpu_custom_call.1} parent=63 // pred_check_branch
          %515 = sbr.rel (%p513) target = $region80
        $region79: #{tpu_custom_call.1} parent=63 // pred_region
          %s516 = smul.u32 64, %s28
          %p517 = scmp.lt.s32.totalorder %s516, 127
          %s518 = scalar_select %p517, %s516, 127
          %s519 = smul.addr %s518, 4
          %s520 = scalar_lea.vmem %s3, %s519
          %s521 = smul.u32 64, %s28
        $region80: #{tpu_custom_call.1} parent=63 // pred_fallthru
          _
      $region64: #{tpu_custom_call.1} parent=5 // pred_fallthru
        _
      %p522 = scmp.le.s32.totalorder 1, %s28
      %p523 = scmp.lt.s32.totalorder %s28, 3
      %p524 = pnand %p522, %p523
      %p525 = pneg %p524
      // Predicated region
      $region81: #{tpu_custom_call.1} parent=5 // pred_check
        _
      $region82: #{tpu_custom_call.1} parent=5 // pred_check_branch
        %527 = sbr.rel (%p524) target = $region84
      $region83: #{tpu_custom_call.1} parent=5 // pred_region
        %s528 = ssub.s32 %s28, 1
        %s529 = smul.u32 64, %s33
        %p530 = scmp.lt.s32.totalorder %s529, 127
        %s531 = scalar_select %p530, %s529, 127
        %s532 = smul.addr %s531, 8
        %s533 = scalar_lea.vmem %s0, %s532
        %p534 = pneg %p54
        %p535 = pneg %p51
        %s536 = smul.u32 64, %s33
        %p537 = scmp.lt.s32.totalorder %s536, 127
        %s538 = scalar_select %p537, %s536, 127
        %s539 = smul.addr %s538, 8
        %s540 = scalar_lea.vmem %s1, %s539
        %p541 = pneg %p80
        %p542 = pneg %p77
        %s543 = smul.u32 64, %s33
        %p544 = scmp.lt.s32.totalorder %s543, 127
        %s545 = scalar_select %p544, %s543, 127
        %s546 = smul.addr %s545, 4
        %s547 = scalar_lea.vmem %s2, %s546
        %p548 = pneg %p106
        %p549 = pneg %p103
        %s550 = smul.u32 64, %s33
        %p551 = scmp.lt.s32.totalorder %s550, 127
        %s552 = scalar_select %p551, %s550, 127
        %s553 = smul.addr %s552, 4
        %s554 = scalar_lea.vmem %s3, %s553
        %p555 = pneg %p132
        %p556 = pneg %p129
        %p557 = pneg %p153
        %p558 = pneg %p150
        %p559 = pneg %p174
        %p560 = pneg %p171
        %p561 = pneg %p195
        %p562 = pneg %p192
        %p563 = pneg %p216
        %p564 = pneg %p213
        %p565 = pneg %p237
        %p566 = pneg %p234
        %p567 = pneg %p258
        %p568 = pneg %p255
        %p569 = pneg %p279
        %p570 = pneg %p276
        %p571 = pneg %p300
        %p572 = pneg %p297
        %p573 = pneg %p321
        %p574 = pneg %p318
        %p575 = pneg %p342
        %p576 = pneg %p339
        %p577 = pneg %p363
        %p578 = pneg %p360
        %p579 = pneg %p384
        %p580 = pneg %p381
        %p581 = pneg %p405
        %p582 = pneg %p402
        %p583 = pneg %p431
        %p584 = pneg %p428
        %s585 = sand.u32 %s418, 1
        %s586 = scalar_lea.sflag [#allocation6], %s585
        %s587 = sand.u32 %s418, 1
        %s588 = smul.addr %s587, 256
        %s589 = scalar_lea.vmem [#allocation5], %s588
        %s590 = smul.u32 64, %s33
        %p591 = scmp.lt.s32.totalorder %s590, 127
        %s592 = scalar_select %p591, %s590, 127
        %s593 = smul.addr %s592, 8
        %s594 = scalar_lea.vmem %s0, %s593
        %s595 = smul.u32 64, %s33
        %s596 = smul.u32 64, %s33
        %p597 = scmp.lt.s32.totalorder %s596, 127
        %s598 = scalar_select %p597, %s596, 127
        %s599 = smul.addr %s598, 8
        %s600 = scalar_lea.vmem %s1, %s599
        %s601 = smul.u32 64, %s33
        %s602 = smul.u32 64, %s33
        %p603 = scmp.lt.s32.totalorder %s602, 127
        %s604 = scalar_select %p603, %s602, 127
        %s605 = smul.addr %s604, 4
        %s606 = scalar_lea.vmem %s2, %s605
        %s607 = smul.u32 64, %s33
        %s608 = smul.u32 64, %s33
        %p609 = scmp.lt.s32.totalorder %s608, 127
        %s610 = scalar_select %p609, %s608, 127
        %s611 = smul.addr %s610, 4
        %s612 = scalar_lea.vmem %s3, %s611
        %s613 = smul.u32 64, %s33
        %s614 = smul.u32 64, %s33
        %p616 = scmp.eq.s32.totalorder %s33, 0
        // Predicated region
        $region85: #{tpu_custom_call.1} parent=83 // pred_check
          %p617 = pneg %p616
        $region86: #{tpu_custom_call.1} parent=83 // pred_check_branch
          %619 = sbr.rel (%p617) target = $region88
        $region87: #{tpu_custom_call.1} parent=83 // pred_region
          %620 = vst [vmem:[#allocation2] sm:$0xff] 0.0
          %621 = vst [vmem:[#allocation2 + $0x8] sm:$0xff] 0.0
          %622 = vst [vmem:[#allocation2 + $0x10] sm:$0xff] 0.0
          %623 = vst [vmem:[#allocation2 + $0x18] sm:$0xff] 0.0
        $region88: #{tpu_custom_call.1} parent=83 // pred_fallthru
          _
        %v624 = vlaneseq
        %v625 = vand.u32 %v624, 127
        %v626 = vld [vmem:[%s594] sm:$0xff]
        %v627 = vld [vmem:[%s594 + $0x8] sm:$0xff]
        %v628 = vld [vmem:[%s594 + $0x10] sm:$0xff]
        %v629 = vld [vmem:[%s594 + $0x18] sm:$0xff]
        %v630 = vld [vmem:[%s594 + $0x20] sm:$0xff]
        %v631 = vld [vmem:[%s594 + $0x28] sm:$0xff]
        %v632 = vld [vmem:[%s594 + $0x30] sm:$0xff]
        %v633 = vld [vmem:[%s594 + $0x38] sm:$0xff]
        %v634 = vld [vmem:[%s594 + $0x40] sm:$0xff]
        %v635 = vld [vmem:[%s594 + $0x48] sm:$0xff]
        %v636 = vld [vmem:[%s594 + $0x50] sm:$0xff]
        %v637 = vld [vmem:[%s594 + $0x58] sm:$0xff]
        %v638 = vld [vmem:[%s594 + $0x60] sm:$0xff]
        %v639 = vld [vmem:[%s594 + $0x68] sm:$0xff]
        %v640 = vld [vmem:[%s594 + $0x70] sm:$0xff]
        %v641 = vld [vmem:[%s594 + $0x78] sm:$0xff]
        %v642 = vld [vmem:[%s594 + $0x80] sm:$0xff]
        %v643 = vld [vmem:[%s594 + $0x88] sm:$0xff]
        %v644 = vld [vmem:[%s594 + $0x90] sm:$0xff]
        %v645 = vld [vmem:[%s594 + $0x98] sm:$0xff]
        %v646 = vld [vmem:[%s594 + $0xa0] sm:$0xff]
        %v647 = vld [vmem:[%s594 + $0xa8] sm:$0xff]
        %v648 = vld [vmem:[%s594 + $0xb0] sm:$0xff]
        %v649 = vld [vmem:[%s594 + $0xb8] sm:$0xff]
        %v650 = vld [vmem:[%s594 + $0xc0] sm:$0xff]
        %v651 = vld [vmem:[%s594 + $0xc8] sm:$0xff]
        %v652 = vld [vmem:[%s594 + $0xd0] sm:$0xff]
        %v653 = vld [vmem:[%s594 + $0xd8] sm:$0xff]
        %v654 = vld [vmem:[%s594 + $0xe0] sm:$0xff]
        %v655 = vld [vmem:[%s594 + $0xe8] sm:$0xff]
        %v656 = vld [vmem:[%s594 + $0xf0] sm:$0xff]
        %v657 = vld [vmem:[%s594 + $0xf8] sm:$0xff]
        %v658 = vld [vmem:[%s594 + $0x100] sm:$0xff]
        %v659 = vld [vmem:[%s594 + $0x108] sm:$0xff]
        %v660 = vld [vmem:[%s594 + $0x110] sm:$0xff]
        %v661 = vld [vmem:[%s594 + $0x118] sm:$0xff]
        %v662 = vld [vmem:[%s594 + $0x120] sm:$0xff]
        %v663 = vld [vmem:[%s594 + $0x128] sm:$0xff]
        %v664 = vld [vmem:[%s594 + $0x130] sm:$0xff]
        %v665 = vld [vmem:[%s594 + $0x138] sm:$0xff]
        %v666 = vld [vmem:[%s594 + $0x140] sm:$0xff]
        %v667 = vld [vmem:[%s594 + $0x148] sm:$0xff]
        %v668 = vld [vmem:[%s594 + $0x150] sm:$0xff]
        %v669 = vld [vmem:[%s594 + $0x158] sm:$0xff]
        %v670 = vld [vmem:[%s594 + $0x160] sm:$0xff]
        %v671 = vld [vmem:[%s594 + $0x168] sm:$0xff]
        %v672 = vld [vmem:[%s594 + $0x170] sm:$0xff]
        %v673 = vld [vmem:[%s594 + $0x178] sm:$0xff]
        %v674 = vld [vmem:[%s594 + $0x180] sm:$0xff]
        %v675 = vld [vmem:[%s594 + $0x188] sm:$0xff]
        %v676 = vld [vmem:[%s594 + $0x190] sm:$0xff]
        %v677 = vld [vmem:[%s594 + $0x198] sm:$0xff]
        %v678 = vld [vmem:[%s594 + $0x1a0] sm:$0xff]
        %v679 = vld [vmem:[%s594 + $0x1a8] sm:$0xff]
        %v680 = vld [vmem:[%s594 + $0x1b0] sm:$0xff]
        %v681 = vld [vmem:[%s594 + $0x1b8] sm:$0xff]
        %v682 = vld [vmem:[%s594 + $0x1c0] sm:$0xff]
        %v683 = vld [vmem:[%s594 + $0x1c8] sm:$0xff]
        %v684 = vld [vmem:[%s594 + $0x1d0] sm:$0xff]
        %v685 = vld [vmem:[%s594 + $0x1d8] sm:$0xff]
        %v686 = vld [vmem:[%s594 + $0x1e0] sm:$0xff]
        %v687 = vld [vmem:[%s594 + $0x1e8] sm:$0xff]
        %v688 = vld [vmem:[%s594 + $0x1f0] sm:$0xff]
        %v689 = vld [vmem:[%s594 + $0x1f8] sm:$0xff]
        %690 = vset.pattern.permute.xlu0 0
        %691 = vperm.xlu0 %690, %v626
        %v692 = vpop.permute.xlu0 %691
        %693 = vset.pattern.permute.xlu0 0
        %694 = vperm.xlu0 %693, %v627
        %v695 = vpop.permute.xlu0 %694
        %696 = vset.pattern.permute.xlu0 0
        %697 = vperm.xlu0 %696, %v628
        %v698 = vpop.permute.xlu0 %697
        %699 = vset.pattern.permute.xlu0 0
        %700 = vperm.xlu0 %699, %v629
        %v701 = vpop.permute.xlu0 %700
        %702 = vset.pattern.permute.xlu0 0
        %703 = vperm.xlu0 %702, %v630
        %v704 = vpop.permute.xlu0 %703
        %705 = vset.pattern.permute.xlu0 0
        %706 = vperm.xlu0 %705, %v631
        %v707 = vpop.permute.xlu0 %706
        %708 = vset.pattern.permute.xlu0 0
        %709 = vperm.xlu0 %708, %v632
        %v710 = vpop.permute.xlu0 %709
        %711 = vset.pattern.permute.xlu0 0
        %712 = vperm.xlu0 %711, %v633
        %v713 = vpop.permute.xlu0 %712
        %714 = vset.pattern.permute.xlu0 0
        %715 = vperm.xlu0 %714, %v634
        %v716 = vpop.permute.xlu0 %715
        %717 = vset.pattern.permute.xlu0 0
        %718 = vperm.xlu0 %717, %v635
        %v719 = vpop.permute.xlu0 %718
        %720 = vset.pattern.permute.xlu0 0
        %721 = vperm.xlu0 %720, %v636
        %v722 = vpop.permute.xlu0 %721
        %723 = vset.pattern.permute.xlu0 0
        %724 = vperm.xlu0 %723, %v637
        %v725 = vpop.permute.xlu0 %724
        %726 = vset.pattern.permute.xlu0 0
        %727 = vperm.xlu0 %726, %v638
        %v728 = vpop.permute.xlu0 %727
        %729 = vset.pattern.permute.xlu0 0
        %730 = vperm.xlu0 %729, %v639
        %v731 = vpop.permute.xlu0 %730
        %732 = vset.pattern.permute.xlu0 0
        %733 = vperm.xlu0 %732, %v640
        %v734 = vpop.permute.xlu0 %733
        %735 = vset.pattern.permute.xlu0 0
        %736 = vperm.xlu0 %735, %v641
        %v737 = vpop.permute.xlu0 %736
        %738 = vset.pattern.permute.xlu0 0
        %739 = vperm.xlu0 %738, %v642
        %v740 = vpop.permute.xlu0 %739
        %741 = vset.pattern.permute.xlu0 0
        %742 = vperm.xlu0 %741, %v643
        %v743 = vpop.permute.xlu0 %742
        %744 = vset.pattern.permute.xlu0 0
        %745 = vperm.xlu0 %744, %v644
        %v746 = vpop.permute.xlu0 %745
        %747 = vset.pattern.permute.xlu0 0
        %748 = vperm.xlu0 %747, %v645
        %v749 = vpop.permute.xlu0 %748
        %750 = vset.pattern.permute.xlu0 0
        %751 = vperm.xlu0 %750, %v646
        %v752 = vpop.permute.xlu0 %751
        %753 = vset.pattern.permute.xlu0 0
        %754 = vperm.xlu0 %753, %v647
        %v755 = vpop.permute.xlu0 %754
        %756 = vset.pattern.permute.xlu0 0
        %757 = vperm.xlu0 %756, %v648
        %v758 = vpop.permute.xlu0 %757
        %759 = vset.pattern.permute.xlu0 0
        %760 = vperm.xlu0 %759, %v649
        %v761 = vpop.permute.xlu0 %760
        %762 = vset.pattern.permute.xlu0 0
        %763 = vperm.xlu0 %762, %v650
        %v764 = vpop.permute.xlu0 %763
        %765 = vset.pattern.permute.xlu0 0
        %766 = vperm.xlu0 %765, %v651
        %v767 = vpop.permute.xlu0 %766
        %768 = vset.pattern.permute.xlu0 0
        %769 = vperm.xlu0 %768, %v652
        %v770 = vpop.permute.xlu0 %769
        %771 = vset.pattern.permute.xlu0 0
        %772 = vperm.xlu0 %771, %v653
        %v773 = vpop.permute.xlu0 %772
        %774 = vset.pattern.permute.xlu0 0
        %775 = vperm.xlu0 %774, %v654
        %v776 = vpop.permute.xlu0 %775
        %777 = vset.pattern.permute.xlu0 0
        %778 = vperm.xlu0 %777, %v655
        %v779 = vpop.permute.xlu0 %778
        %780 = vset.pattern.permute.xlu0 0
        %781 = vperm.xlu0 %780, %v656
        %v782 = vpop.permute.xlu0 %781
        %783 = vset.pattern.permute.xlu0 0
        %784 = vperm.xlu0 %783, %v657
        %v785 = vpop.permute.xlu0 %784
        %786 = vset.pattern.permute.xlu0 0
        %787 = vperm.xlu0 %786, %v658
        %v788 = vpop.permute.xlu0 %787
        %789 = vset.pattern.permute.xlu0 0
        %790 = vperm.xlu0 %789, %v659
        %v791 = vpop.permute.xlu0 %790
        %792 = vset.pattern.permute.xlu0 0
        %793 = vperm.xlu0 %792, %v660
        %v794 = vpop.permute.xlu0 %793
        %795 = vset.pattern.permute.xlu0 0
        %796 = vperm.xlu0 %795, %v661
        %v797 = vpop.permute.xlu0 %796
        %798 = vset.pattern.permute.xlu0 0
        %799 = vperm.xlu0 %798, %v662
        %v800 = vpop.permute.xlu0 %799
        %801 = vset.pattern.permute.xlu0 0
        %802 = vperm.xlu0 %801, %v663
        %v803 = vpop.permute.xlu0 %802
        %804 = vset.pattern.permute.xlu0 0
        %805 = vperm.xlu0 %804, %v664
        %v806 = vpop.permute.xlu0 %805
        %807 = vset.pattern.permute.xlu0 0
        %808 = vperm.xlu0 %807, %v665
        %v809 = vpop.permute.xlu0 %808
        %810 = vset.pattern.permute.xlu0 0
        %811 = vperm.xlu0 %810, %v666
        %v812 = vpop.permute.xlu0 %811
        %813 = vset.pattern.permute.xlu0 0
        %814 = vperm.xlu0 %813, %v667
        %v815 = vpop.permute.xlu0 %814
        %816 = vset.pattern.permute.xlu0 0
        %817 = vperm.xlu0 %816, %v668
        %v818 = vpop.permute.xlu0 %817
        %819 = vset.pattern.permute.xlu0 0
        %820 = vperm.xlu0 %819, %v669
        %v821 = vpop.permute.xlu0 %820
        %822 = vset.pattern.permute.xlu0 0
        %823 = vperm.xlu0 %822, %v670
        %v824 = vpop.permute.xlu0 %823
        %825 = vset.pattern.permute.xlu0 0
        %826 = vperm.xlu0 %825, %v671
        %v827 = vpop.permute.xlu0 %826
        %828 = vset.pattern.permute.xlu0 0
        %829 = vperm.xlu0 %828, %v672
        %v830 = vpop.permute.xlu0 %829
        %831 = vset.pattern.permute.xlu0 0
        %832 = vperm.xlu0 %831, %v673
        %v833 = vpop.permute.xlu0 %832
        %834 = vset.pattern.permute.xlu0 0
        %835 = vperm.xlu0 %834, %v674
        %v836 = vpop.permute.xlu0 %835
        %837 = vset.pattern.permute.xlu0 0
        %838 = vperm.xlu0 %837, %v675
        %v839 = vpop.permute.xlu0 %838
        %840 = vset.pattern.permute.xlu0 0
        %841 = vperm.xlu0 %840, %v676
        %v842 = vpop.permute.xlu0 %841
        %843 = vset.pattern.permute.xlu0 0
        %844 = vperm.xlu0 %843, %v677
        %v845 = vpop.permute.xlu0 %844
        %846 = vset.pattern.permute.xlu0 0
        %847 = vperm.xlu0 %846, %v678
        %v848 = vpop.permute.xlu0 %847
        %849 = vset.pattern.permute.xlu0 0
        %850 = vperm.xlu0 %849, %v679
        %v851 = vpop.permute.xlu0 %850
        %852 = vset.pattern.permute.xlu0 0
        %853 = vperm.xlu0 %852, %v680
        %v854 = vpop.permute.xlu0 %853
        %855 = vset.pattern.permute.xlu0 0
        %856 = vperm.xlu0 %855, %v681
        %v857 = vpop.permute.xlu0 %856
        %858 = vset.pattern.permute.xlu0 0
        %859 = vperm.xlu0 %858, %v682
        %v860 = vpop.permute.xlu0 %859
        %861 = vset.pattern.permute.xlu0 0
        %862 = vperm.xlu0 %861, %v683
        %v863 = vpop.permute.xlu0 %862
        %864 = vset.pattern.permute.xlu0 0
        %865 = vperm.xlu0 %864, %v684
        %v866 = vpop.permute.xlu0 %865
        %867 = vset.pattern.permute.xlu0 0
        %868 = vperm.xlu0 %867, %v685
        %v869 = vpop.permute.xlu0 %868
        %870 = vset.pattern.permute.xlu0 0
        %871 = vperm.xlu0 %870, %v686
        %v872 = vpop.permute.xlu0 %871
        %873 = vset.pattern.permute.xlu0 0
        %874 = vperm.xlu0 %873, %v687
        %v875 = vpop.permute.xlu0 %874
        %876 = vset.pattern.permute.xlu0 0
        %877 = vperm.xlu0 %876, %v688
        %v878 = vpop.permute.xlu0 %877
        %879 = vset.pattern.permute.xlu0 0
        %880 = vperm.xlu0 %879, %v689
        %v881 = vpop.permute.xlu0 %880
        %vm882 = vcmp.eq.s32.totalorder %v625, %v692
        %vm883 = vcmp.eq.s32.totalorder %v625, %v695
        %vm884 = vcmp.eq.s32.totalorder %v625, %v698
        %vm885 = vcmp.eq.s32.totalorder %v625, %v701
        %vm886 = vcmp.eq.s32.totalorder %v625, %v704
        %vm887 = vcmp.eq.s32.totalorder %v625, %v707
        %vm888 = vcmp.eq.s32.totalorder %v625, %v710
        %vm889 = vcmp.eq.s32.totalorder %v625, %v713
        %vm890 = vcmp.eq.s32.totalorder %v625, %v716
        %vm891 = vcmp.eq.s32.totalorder %v625, %v719
        %vm892 = vcmp.eq.s32.totalorder %v625, %v722
        %vm893 = vcmp.eq.s32.totalorder %v625, %v725
        %vm894 = vcmp.eq.s32.totalorder %v625, %v728
        %vm895 = vcmp.eq.s32.totalorder %v625, %v731
        %vm896 = vcmp.eq.s32.totalorder %v625, %v734
        %vm897 = vcmp.eq.s32.totalorder %v625, %v737
        %vm898 = vcmp.eq.s32.totalorder %v625, %v740
        %vm899 = vcmp.eq.s32.totalorder %v625, %v743
        %vm900 = vcmp.eq.s32.totalorder %v625, %v746
        %vm901 = vcmp.eq.s32.totalorder %v625, %v749
        %vm902 = vcmp.eq.s32.totalorder %v625, %v752
        %vm903 = vcmp.eq.s32.totalorder %v625, %v755
        %vm904 = vcmp.eq.s32.totalorder %v625, %v758
        %vm905 = vcmp.eq.s32.totalorder %v625, %v761
        %vm906 = vcmp.eq.s32.totalorder %v625, %v764
        %vm907 = vcmp.eq.s32.totalorder %v625, %v767
        %vm908 = vcmp.eq.s32.totalorder %v625, %v770
        %vm909 = vcmp.eq.s32.totalorder %v625, %v773
        %vm910 = vcmp.eq.s32.totalorder %v625, %v776
        %vm911 = vcmp.eq.s32.totalorder %v625, %v779
        %vm912 = vcmp.eq.s32.totalorder %v625, %v782
        %vm913 = vcmp.eq.s32.totalorder %v625, %v785
        %vm914 = vcmp.eq.s32.totalorder %v625, %v788
        %vm915 = vcmp.eq.s32.totalorder %v625, %v791
        %vm916 = vcmp.eq.s32.totalorder %v625, %v794
        %vm917 = vcmp.eq.s32.totalorder %v625, %v797
        %vm918 = vcmp.eq.s32.totalorder %v625, %v800
        %vm919 = vcmp.eq.s32.totalorder %v625, %v803
        %vm920 = vcmp.eq.s32.totalorder %v625, %v806
        %vm921 = vcmp.eq.s32.totalorder %v625, %v809
        %vm922 = vcmp.eq.s32.totalorder %v625, %v812
        %vm923 = vcmp.eq.s32.totalorder %v625, %v815
        %vm924 = vcmp.eq.s32.totalorder %v625, %v818
        %vm925 = vcmp.eq.s32.totalorder %v625, %v821
        %vm926 = vcmp.eq.s32.totalorder %v625, %v824
        %vm927 = vcmp.eq.s32.totalorder %v625, %v827
        %vm928 = vcmp.eq.s32.totalorder %v625, %v830
        %vm929 = vcmp.eq.s32.totalorder %v625, %v833
        %vm930 = vcmp.eq.s32.totalorder %v625, %v836
        %vm931 = vcmp.eq.s32.totalorder %v625, %v839
        %vm932 = vcmp.eq.s32.totalorder %v625, %v842
        %vm933 = vcmp.eq.s32.totalorder %v625, %v845
        %vm934 = vcmp.eq.s32.totalorder %v625, %v848
        %vm935 = vcmp.eq.s32.totalorder %v625, %v851
        %vm936 = vcmp.eq.s32.totalorder %v625, %v854
        %vm937 = vcmp.eq.s32.totalorder %v625, %v857
        %vm938 = vcmp.eq.s32.totalorder %v625, %v860
        %vm939 = vcmp.eq.s32.totalorder %v625, %v863
        %vm940 = vcmp.eq.s32.totalorder %v625, %v866
        %vm941 = vcmp.eq.s32.totalorder %v625, %v869
        %vm942 = vcmp.eq.s32.totalorder %v625, %v872
        %vm943 = vcmp.eq.s32.totalorder %v625, %v875
        %vm944 = vcmp.eq.s32.totalorder %v625, %v878
        %vm945 = vcmp.eq.s32.totalorder %v625, %v881
        %v946 = vsel %vm882, 1, 0
        %v947 = vsel %vm883, 1, 0
        %v948 = vsel %vm884, 1, 0
        %v949 = vsel %vm885, 1, 0
        %v950 = vsel %vm886, 1, 0
        %v951 = vsel %vm887, 1, 0
        %v952 = vsel %vm888, 1, 0
        %v953 = vsel %vm889, 1, 0
        %v954 = vsel %vm890, 1, 0
        %v955 = vsel %vm891, 1, 0
        %v956 = vsel %vm892, 1, 0
        %v957 = vsel %vm893, 1, 0
        %v958 = vsel %vm894, 1, 0
        %v959 = vsel %vm895, 1, 0
        %v960 = vsel %vm896, 1, 0
        %v961 = vsel %vm897, 1, 0
        %v962 = vsel %vm898, 1, 0
        %v963 = vsel %vm899, 1, 0
        %v964 = vsel %vm900, 1, 0
        %v965 = vsel %vm901, 1, 0
        %v966 = vsel %vm902, 1, 0
        %v967 = vsel %vm903, 1, 0
        %v968 = vsel %vm904, 1, 0
        %v969 = vsel %vm905, 1, 0
        %v970 = vsel %vm906, 1, 0
        %v971 = vsel %vm907, 1, 0
        %v972 = vsel %vm908, 1, 0
        %v973 = vsel %vm909, 1, 0
        %v974 = vsel %vm910, 1, 0
        %v975 = vsel %vm911, 1, 0
        %v976 = vsel %vm912, 1, 0
        %v977 = vsel %vm913, 1, 0
        %v978 = vsel %vm914, 1, 0
        %v979 = vsel %vm915, 1, 0
        %v980 = vsel %vm916, 1, 0
        %v981 = vsel %vm917, 1, 0
        %v982 = vsel %vm918, 1, 0
        %v983 = vsel %vm919, 1, 0
        %v984 = vsel %vm920, 1, 0
        %v985 = vsel %vm921, 1, 0
        %v986 = vsel %vm922, 1, 0
        %v987 = vsel %vm923, 1, 0
        %v988 = vsel %vm924, 1, 0
        %v989 = vsel %vm925, 1, 0
        %v990 = vsel %vm926, 1, 0
        %v991 = vsel %vm927, 1, 0
        %v992 = vsel %vm928, 1, 0
        %v993 = vsel %vm929, 1, 0
        %v994 = vsel %vm930, 1, 0
        %v995 = vsel %vm931, 1, 0
        %v996 = vsel %vm932, 1, 0
        %v997 = vsel %vm933, 1, 0
        %v998 = vsel %vm934, 1, 0
        %v999 = vsel %vm935, 1, 0
        %v1000 = vsel %vm936, 1, 0
        %v1001 = vsel %vm937, 1, 0
        %v1002 = vsel %vm938, 1, 0
        %v1003 = vsel %vm939, 1, 0
        %v1004 = vsel %vm940, 1, 0
        %v1005 = vsel %vm941, 1, 0
        %v1006 = vsel %vm942, 1, 0
        %v1007 = vsel %vm943, 1, 0
        %v1008 = vsel %vm944, 1, 0
        %v1009 = vsel %vm945, 1, 0
        %v1010 = vcvt.s32.f32 %v946
        %v1011 = vcvt.s32.f32 %v947
        %v1012 = vcvt.s32.f32 %v948
        %v1013 = vcvt.s32.f32 %v949
        %v1014 = vcvt.s32.f32 %v950
        %v1015 = vcvt.s32.f32 %v951
        %v1016 = vcvt.s32.f32 %v952
        %v1017 = vcvt.s32.f32 %v953
        %v1018 = vcvt.s32.f32 %v954
        %v1019 = vcvt.s32.f32 %v955
        %v1020 = vcvt.s32.f32 %v956
        %v1021 = vcvt.s32.f32 %v957
        %v1022 = vcvt.s32.f32 %v958
        %v1023 = vcvt.s32.f32 %v959
        %v1024 = vcvt.s32.f32 %v960
        %v1025 = vcvt.s32.f32 %v961
        %v1026 = vcvt.s32.f32 %v962
        %v1027 = vcvt.s32.f32 %v963
        %v1028 = vcvt.s32.f32 %v964
        %v1029 = vcvt.s32.f32 %v965
        %v1030 = vcvt.s32.f32 %v966
        %v1031 = vcvt.s32.f32 %v967
        %v1032 = vcvt.s32.f32 %v968
        %v1033 = vcvt.s32.f32 %v969
        %v1034 = vcvt.s32.f32 %v970
        %v1035 = vcvt.s32.f32 %v971
        %v1036 = vcvt.s32.f32 %v972
        %v1037 = vcvt.s32.f32 %v973
        %v1038 = vcvt.s32.f32 %v974
        %v1039 = vcvt.s32.f32 %v975
        %v1040 = vcvt.s32.f32 %v976
        %v1041 = vcvt.s32.f32 %v977
        %v1042 = vcvt.s32.f32 %v978
        %v1043 = vcvt.s32.f32 %v979
        %v1044 = vcvt.s32.f32 %v980
        %v1045 = vcvt.s32.f32 %v981
        %v1046 = vcvt.s32.f32 %v982
        %v1047 = vcvt.s32.f32 %v983
        %v1048 = vcvt.s32.f32 %v984
        %v1049 = vcvt.s32.f32 %v985
        %v1050 = vcvt.s32.f32 %v986
        %v1051 = vcvt.s32.f32 %v987
        %v1052 = vcvt.s32.f32 %v988
        %v1053 = vcvt.s32.f32 %v989
        %v1054 = vcvt.s32.f32 %v990
        %v1055 = vcvt.s32.f32 %v991
        %v1056 = vcvt.s32.f32 %v992
        %v1057 = vcvt.s32.f32 %v993
        %v1058 = vcvt.s32.f32 %v994
        %v1059 = vcvt.s32.f32 %v995
        %v1060 = vcvt.s32.f32 %v996
        %v1061 = vcvt.s32.f32 %v997
        %v1062 = vcvt.s32.f32 %v998
        %v1063 = vcvt.s32.f32 %v999
        %v1064 = vcvt.s32.f32 %v1000
        %v1065 = vcvt.s32.f32 %v1001
        %v1066 = vcvt.s32.f32 %v1002
        %v1067 = vcvt.s32.f32 %v1003
        %v1068 = vcvt.s32.f32 %v1004
        %v1069 = vcvt.s32.f32 %v1005
        %v1070 = vcvt.s32.f32 %v1006
        %v1071 = vcvt.s32.f32 %v1007
        %v1072 = vcvt.s32.f32 %v1008
        %v1073 = vcvt.s32.f32 %v1009
        %v1074 = vpack.c.bf16 %v1011, %v1010
        %v1075 = vpack.c.bf16 %v1013, %v1012
        %v1076 = vpack.c.bf16 %v1015, %v1014
        %v1077 = vpack.c.bf16 %v1017, %v1016
        %v1078 = vpack.c.bf16 %v1019, %v1018
        %v1079 = vpack.c.bf16 %v1021, %v1020
        %v1080 = vpack.c.bf16 %v1023, %v1022
        %v1081 = vpack.c.bf16 %v1025, %v1024
        %v1082 = vpack.c.bf16 %v1027, %v1026
        %v1083 = vpack.c.bf16 %v1029, %v1028
        %v1084 = vpack.c.bf16 %v1031, %v1030
        %v1085 = vpack.c.bf16 %v1033, %v1032
        %v1086 = vpack.c.bf16 %v1035, %v1034
        %v1087 = vpack.c.bf16 %v1037, %v1036
        %v1088 = vpack.c.bf16 %v1039, %v1038
        %v1089 = vpack.c.bf16 %v1041, %v1040
        %v1090 = vpack.c.bf16 %v1043, %v1042
        %v1091 = vpack.c.bf16 %v1045, %v1044
        %v1092 = vpack.c.bf16 %v1047, %v1046
        %v1093 = vpack.c.bf16 %v1049, %v1048
        %v1094 = vpack.c.bf16 %v1051, %v1050
        %v1095 = vpack.c.bf16 %v1053, %v1052
        %v1096 = vpack.c.bf16 %v1055, %v1054
        %v1097 = vpack.c.bf16 %v1057, %v1056
        %v1098 = vpack.c.bf16 %v1059, %v1058
        %v1099 = vpack.c.bf16 %v1061, %v1060
        %v1100 = vpack.c.bf16 %v1063, %v1062
        %v1101 = vpack.c.bf16 %v1065, %v1064
        %v1102 = vpack.c.bf16 %v1067, %v1066
        %v1103 = vpack.c.bf16 %v1069, %v1068
        %v1104 = vpack.c.bf16 %v1071, %v1070
        %v1105 = vpack.c.bf16 %v1073, %v1072
        %v1106 = vld [vmem:[%s600] sm:$0xff]
        %v1107 = vld [vmem:[%s600 + $0x8] sm:$0xff]
        %v1108 = vld [vmem:[%s600 + $0x10] sm:$0xff]
        %v1109 = vld [vmem:[%s600 + $0x18] sm:$0xff]
        %v1110 = vld [vmem:[%s600 + $0x20] sm:$0xff]
        %v1111 = vld [vmem:[%s600 + $0x28] sm:$0xff]
        %v1112 = vld [vmem:[%s600 + $0x30] sm:$0xff]
        %v1113 = vld [vmem:[%s600 + $0x38] sm:$0xff]
        %v1114 = vld [vmem:[%s600 + $0x40] sm:$0xff]
        %v1115 = vld [vmem:[%s600 + $0x48] sm:$0xff]
        %v1116 = vld [vmem:[%s600 + $0x50] sm:$0xff]
        %v1117 = vld [vmem:[%s600 + $0x58] sm:$0xff]
        %v1118 = vld [vmem:[%s600 + $0x60] sm:$0xff]
        %v1119 = vld [vmem:[%s600 + $0x68] sm:$0xff]
        %v1120 = vld [vmem:[%s600 + $0x70] sm:$0xff]
        %v1121 = vld [vmem:[%s600 + $0x78] sm:$0xff]
        %v1122 = vld [vmem:[%s600 + $0x80] sm:$0xff]
        %v1123 = vld [vmem:[%s600 + $0x88] sm:$0xff]
        %v1124 = vld [vmem:[%s600 + $0x90] sm:$0xff]
        %v1125 = vld [vmem:[%s600 + $0x98] sm:$0xff]
        %v1126 = vld [vmem:[%s600 + $0xa0] sm:$0xff]
        %v1127 = vld [vmem:[%s600 + $0xa8] sm:$0xff]
        %v1128 = vld [vmem:[%s600 + $0xb0] sm:$0xff]
        %v1129 = vld [vmem:[%s600 + $0xb8] sm:$0xff]
        %v1130 = vld [vmem:[%s600 + $0xc0] sm:$0xff]
        %v1131 = vld [vmem:[%s600 + $0xc8] sm:$0xff]
        %v1132 = vld [vmem:[%s600 + $0xd0] sm:$0xff]
        %v1133 = vld [vmem:[%s600 + $0xd8] sm:$0xff]
        %v1134 = vld [vmem:[%s600 + $0xe0] sm:$0xff]
        %v1135 = vld [vmem:[%s600 + $0xe8] sm:$0xff]
        %v1136 = vld [vmem:[%s600 + $0xf0] sm:$0xff]
        %v1137 = vld [vmem:[%s600 + $0xf8] sm:$0xff]
        %v1138 = vld [vmem:[%s600 + $0x100] sm:$0xff]
        %v1139 = vld [vmem:[%s600 + $0x108] sm:$0xff]
        %v1140 = vld [vmem:[%s600 + $0x110] sm:$0xff]
        %v1141 = vld [vmem:[%s600 + $0x118] sm:$0xff]
        %v1142 = vld [vmem:[%s600 + $0x120] sm:$0xff]
        %v1143 = vld [vmem:[%s600 + $0x128] sm:$0xff]
        %v1144 = vld [vmem:[%s600 + $0x130] sm:$0xff]
        %v1145 = vld [vmem:[%s600 + $0x138] sm:$0xff]
        %v1146 = vld [vmem:[%s600 + $0x140] sm:$0xff]
        %v1147 = vld [vmem:[%s600 + $0x148] sm:$0xff]
        %v1148 = vld [vmem:[%s600 + $0x150] sm:$0xff]
        %v1149 = vld [vmem:[%s600 + $0x158] sm:$0xff]
        %v1150 = vld [vmem:[%s600 + $0x160] sm:$0xff]
        %v1151 = vld [vmem:[%s600 + $0x168] sm:$0xff]
        %v1152 = vld [vmem:[%s600 + $0x170] sm:$0xff]
        %v1153 = vld [vmem:[%s600 + $0x178] sm:$0xff]
        %v1154 = vld [vmem:[%s600 + $0x180] sm:$0xff]
        %v1155 = vld [vmem:[%s600 + $0x188] sm:$0xff]
        %v1156 = vld [vmem:[%s600 + $0x190] sm:$0xff]
        %v1157 = vld [vmem:[%s600 + $0x198] sm:$0xff]
        %v1158 = vld [vmem:[%s600 + $0x1a0] sm:$0xff]
        %v1159 = vld [vmem:[%s600 + $0x1a8] sm:$0xff]
        %v1160 = vld [vmem:[%s600 + $0x1b0] sm:$0xff]
        %v1161 = vld [vmem:[%s600 + $0x1b8] sm:$0xff]
        %v1162 = vld [vmem:[%s600 + $0x1c0] sm:$0xff]
        %v1163 = vld [vmem:[%s600 + $0x1c8] sm:$0xff]
        %v1164 = vld [vmem:[%s600 + $0x1d0] sm:$0xff]
        %v1165 = vld [vmem:[%s600 + $0x1d8] sm:$0xff]
        %v1166 = vld [vmem:[%s600 + $0x1e0] sm:$0xff]
        %v1167 = vld [vmem:[%s600 + $0x1e8] sm:$0xff]
        %v1168 = vld [vmem:[%s600 + $0x1f0] sm:$0xff]
        %v1169 = vld [vmem:[%s600 + $0x1f8] sm:$0xff]
        %1170 = vset.pattern.permute.xlu0 0
        %1171 = vperm.xlu0 %1170, %v1106
        %v1172 = vpop.permute.xlu0 %1171
        %1173 = vset.pattern.permute.xlu0 0
        %1174 = vperm.xlu0 %1173, %v1107
        %v1175 = vpop.permute.xlu0 %1174
        %1176 = vset.pattern.permute.xlu0 0
        %1177 = vperm.xlu0 %1176, %v1108
        %v1178 = vpop.permute.xlu0 %1177
        %1179 = vset.pattern.permute.xlu0 0
        %1180 = vperm.xlu0 %1179, %v1109
        %v1181 = vpop.permute.xlu0 %1180
        %1182 = vset.pattern.permute.xlu0 0
        %1183 = vperm.xlu0 %1182, %v1110
        %v1184 = vpop.permute.xlu0 %1183
        %1185 = vset.pattern.permute.xlu0 0
        %1186 = vperm.xlu0 %1185, %v1111
        %v1187 = vpop.permute.xlu0 %1186
        %1188 = vset.pattern.permute.xlu0 0
        %1189 = vperm.xlu0 %1188, %v1112
        %v1190 = vpop.permute.xlu0 %1189
        %1191 = vset.pattern.permute.xlu0 0
        %1192 = vperm.xlu0 %1191, %v1113
        %v1193 = vpop.permute.xlu0 %1192
        %1194 = vset.pattern.permute.xlu0 0
        %1195 = vperm.xlu0 %1194, %v1114
        %v1196 = vpop.permute.xlu0 %1195
        %1197 = vset.pattern.permute.xlu0 0
        %1198 = vperm.xlu0 %1197, %v1115
        %v1199 = vpop.permute.xlu0 %1198
        %1200 = vset.pattern.permute.xlu0 0
        %1201 = vperm.xlu0 %1200, %v1116
        %v1202 = vpop.permute.xlu0 %1201
        %1203 = vset.pattern.permute.xlu0 0
        %1204 = vperm.xlu0 %1203, %v1117
        %v1205 = vpop.permute.xlu0 %1204
        %1206 = vset.pattern.permute.xlu0 0
        %1207 = vperm.xlu0 %1206, %v1118
        %v1208 = vpop.permute.xlu0 %1207
        %1209 = vset.pattern.permute.xlu0 0
        %1210 = vperm.xlu0 %1209, %v1119
        %v1211 = vpop.permute.xlu0 %1210
        %1212 = vset.pattern.permute.xlu0 0
        %1213 = vperm.xlu0 %1212, %v1120
        %v1214 = vpop.permute.xlu0 %1213
        %1215 = vset.pattern.permute.xlu0 0
        %1216 = vperm.xlu0 %1215, %v1121
        %v1217 = vpop.permute.xlu0 %1216
        %1218 = vset.pattern.permute.xlu0 0
        %1219 = vperm.xlu0 %1218, %v1122
        %v1220 = vpop.permute.xlu0 %1219
        %1221 = vset.pattern.permute.xlu0 0
        %1222 = vperm.xlu0 %1221, %v1123
        %v1223 = vpop.permute.xlu0 %1222
        %1224 = vset.pattern.permute.xlu0 0
        %1225 = vperm.xlu0 %1224, %v1124
        %v1226 = vpop.permute.xlu0 %1225
        %1227 = vset.pattern.permute.xlu0 0
        %1228 = vperm.xlu0 %1227, %v1125
        %v1229 = vpop.permute.xlu0 %1228
        %1230 = vset.pattern.permute.xlu0 0
        %1231 = vperm.xlu0 %1230, %v1126
        %v1232 = vpop.permute.xlu0 %1231
        %1233 = vset.pattern.permute.xlu0 0
        %1234 = vperm.xlu0 %1233, %v1127
        %v1235 = vpop.permute.xlu0 %1234
        %1236 = vset.pattern.permute.xlu0 0
        %1237 = vperm.xlu0 %1236, %v1128
        %v1238 = vpop.permute.xlu0 %1237
        %1239 = vset.pattern.permute.xlu0 0
        %1240 = vperm.xlu0 %1239, %v1129
        %v1241 = vpop.permute.xlu0 %1240
        %1242 = vset.pattern.permute.xlu0 0
        %1243 = vperm.xlu0 %1242, %v1130
        %v1244 = vpop.permute.xlu0 %1243
        %1245 = vset.pattern.permute.xlu0 0
        %1246 = vperm.xlu0 %1245, %v1131
        %v1247 = vpop.permute.xlu0 %1246
        %1248 = vset.pattern.permute.xlu0 0
        %1249 = vperm.xlu0 %1248, %v1132
        %v1250 = vpop.permute.xlu0 %1249
        %1251 = vset.pattern.permute.xlu0 0
        %1252 = vperm.xlu0 %1251, %v1133
        %v1253 = vpop.permute.xlu0 %1252
        %1254 = vset.pattern.permute.xlu0 0
        %1255 = vperm.xlu0 %1254, %v1134
        %v1256 = vpop.permute.xlu0 %1255
        %1257 = vset.pattern.permute.xlu0 0
        %1258 = vperm.xlu0 %1257, %v1135
        %v1259 = vpop.permute.xlu0 %1258
        %1260 = vset.pattern.permute.xlu0 0
        %1261 = vperm.xlu0 %1260, %v1136
        %v1262 = vpop.permute.xlu0 %1261
        %1263 = vset.pattern.permute.xlu0 0
        %1264 = vperm.xlu0 %1263, %v1137
        %v1265 = vpop.permute.xlu0 %1264
        %1266 = vset.pattern.permute.xlu0 0
        %1267 = vperm.xlu0 %1266, %v1138
        %v1268 = vpop.permute.xlu0 %1267
        %1269 = vset.pattern.permute.xlu0 0
        %1270 = vperm.xlu0 %1269, %v1139
        %v1271 = vpop.permute.xlu0 %1270
        %1272 = vset.pattern.permute.xlu0 0
        %1273 = vperm.xlu0 %1272, %v1140
        %v1274 = vpop.permute.xlu0 %1273
        %1275 = vset.pattern.permute.xlu0 0
        %1276 = vperm.xlu0 %1275, %v1141
        %v1277 = vpop.permute.xlu0 %1276
        %1278 = vset.pattern.permute.xlu0 0
        %1279 = vperm.xlu0 %1278, %v1142
        %v1280 = vpop.permute.xlu0 %1279
        %1281 = vset.pattern.permute.xlu0 0
        %1282 = vperm.xlu0 %1281, %v1143
        %v1283 = vpop.permute.xlu0 %1282
        %1284 = vset.pattern.permute.xlu0 0
        %1285 = vperm.xlu0 %1284, %v1144
        %v1286 = vpop.permute.xlu0 %1285
        %1287 = vset.pattern.permute.xlu0 0
        %1288 = vperm.xlu0 %1287, %v1145
        %v1289 = vpop.permute.xlu0 %1288
        %1290 = vset.pattern.permute.xlu0 0
        %1291 = vperm.xlu0 %1290, %v1146
        %v1292 = vpop.permute.xlu0 %1291
        %1293 = vset.pattern.permute.xlu0 0
        %1294 = vperm.xlu0 %1293, %v1147
        %v1295 = vpop.permute.xlu0 %1294
        %1296 = vset.pattern.permute.xlu0 0
        %1297 = vperm.xlu0 %1296, %v1148
        %v1298 = vpop.permute.xlu0 %1297
        %1299 = vset.pattern.permute.xlu0 0
        %1300 = vperm.xlu0 %1299, %v1149
        %v1301 = vpop.permute.xlu0 %1300
        %1302 = vset.pattern.permute.xlu0 0
        %1303 = vperm.xlu0 %1302, %v1150
        %v1304 = vpop.permute.xlu0 %1303
        %1305 = vset.pattern.permute.xlu0 0
        %1306 = vperm.xlu0 %1305, %v1151
        %v1307 = vpop.permute.xlu0 %1306
        %1308 = vset.pattern.permute.xlu0 0
        %1309 = vperm.xlu0 %1308, %v1152
        %v1310 = vpop.permute.xlu0 %1309
        %1311 = vset.pattern.permute.xlu0 0
        %1312 = vperm.xlu0 %1311, %v1153
        %v1313 = vpop.permute.xlu0 %1312
        %1314 = vset.pattern.permute.xlu0 0
        %1315 = vperm.xlu0 %1314, %v1154
        %v1316 = vpop.permute.xlu0 %1315
        %1317 = vset.pattern.permute.xlu0 0
        %1318 = vperm.xlu0 %1317, %v1155
        %v1319 = vpop.permute.xlu0 %1318
        %1320 = vset.pattern.permute.xlu0 0
        %1321 = vperm.xlu0 %1320, %v1156
        %v1322 = vpop.permute.xlu0 %1321
        %1323 = vset.pattern.permute.xlu0 0
        %1324 = vperm.xlu0 %1323, %v1157
        %v1325 = vpop.permute.xlu0 %1324
        %1326 = vset.pattern.permute.xlu0 0
        %1327 = vperm.xlu0 %1326, %v1158
        %v1328 = vpop.permute.xlu0 %1327
        %1329 = vset.pattern.permute.xlu0 0
        %1330 = vperm.xlu0 %1329, %v1159
        %v1331 = vpop.permute.xlu0 %1330
        %1332 = vset.pattern.permute.xlu0 0
        %1333 = vperm.xlu0 %1332, %v1160
        %v1334 = vpop.permute.xlu0 %1333
        %1335 = vset.pattern.permute.xlu0 0
        %1336 = vperm.xlu0 %1335, %v1161
        %v1337 = vpop.permute.xlu0 %1336
        %1338 = vset.pattern.permute.xlu0 0
        %1339 = vperm.xlu0 %1338, %v1162
        %v1340 = vpop.permute.xlu0 %1339
        %1341 = vset.pattern.permute.xlu0 0
        %1342 = vperm.xlu0 %1341, %v1163
        %v1343 = vpop.permute.xlu0 %1342
        %1344 = vset.pattern.permute.xlu0 0
        %1345 = vperm.xlu0 %1344, %v1164
        %v1346 = vpop.permute.xlu0 %1345
        %1347 = vset.pattern.permute.xlu0 0
        %1348 = vperm.xlu0 %1347, %v1165
        %v1349 = vpop.permute.xlu0 %1348
        %1350 = vset.pattern.permute.xlu0 0
        %1351 = vperm.xlu0 %1350, %v1166
        %v1352 = vpop.permute.xlu0 %1351
        %1353 = vset.pattern.permute.xlu0 0
        %1354 = vperm.xlu0 %1353, %v1167
        %v1355 = vpop.permute.xlu0 %1354
        %1356 = vset.pattern.permute.xlu0 0
        %1357 = vperm.xlu0 %1356, %v1168
        %v1358 = vpop.permute.xlu0 %1357
        %1359 = vset.pattern.permute.xlu0 0
        %1360 = vperm.xlu0 %1359, %v1169
        %v1361 = vpop.permute.xlu0 %1360
        %vm1362 = vcmp.eq.s32.totalorder %v625, %v1172
        %vm1363 = vcmp.eq.s32.totalorder %v625, %v1175
        %vm1364 = vcmp.eq.s32.totalorder %v625, %v1178
        %vm1365 = vcmp.eq.s32.totalorder %v625, %v1181
        %vm1366 = vcmp.eq.s32.totalorder %v625, %v1184
        %vm1367 = vcmp.eq.s32.totalorder %v625, %v1187
        %vm1368 = vcmp.eq.s32.totalorder %v625, %v1190
        %vm1369 = vcmp.eq.s32.totalorder %v625, %v1193
        %vm1370 = vcmp.eq.s32.totalorder %v625, %v1196
        %vm1371 = vcmp.eq.s32.totalorder %v625, %v1199
        %vm1372 = vcmp.eq.s32.totalorder %v625, %v1202
        %vm1373 = vcmp.eq.s32.totalorder %v625, %v1205
        %vm1374 = vcmp.eq.s32.totalorder %v625, %v1208
        %vm1375 = vcmp.eq.s32.totalorder %v625, %v1211
        %vm1376 = vcmp.eq.s32.totalorder %v625, %v1214
        %vm1377 = vcmp.eq.s32.totalorder %v625, %v1217
        %vm1378 = vcmp.eq.s32.totalorder %v625, %v1220
        %vm1379 = vcmp.eq.s32.totalorder %v625, %v1223
        %vm1380 = vcmp.eq.s32.totalorder %v625, %v1226
        %vm1381 = vcmp.eq.s32.totalorder %v625, %v1229
        %vm1382 = vcmp.eq.s32.totalorder %v625, %v1232
        %vm1383 = vcmp.eq.s32.totalorder %v625, %v1235
        %vm1384 = vcmp.eq.s32.totalorder %v625, %v1238
        %vm1385 = vcmp.eq.s32.totalorder %v625, %v1241
        %vm1386 = vcmp.eq.s32.totalorder %v625, %v1244
        %vm1387 = vcmp.eq.s32.totalorder %v625, %v1247
        %vm1388 = vcmp.eq.s32.totalorder %v625, %v1250
        %vm1389 = vcmp.eq.s32.totalorder %v625, %v1253
        %vm1390 = vcmp.eq.s32.totalorder %v625, %v1256
        %vm1391 = vcmp.eq.s32.totalorder %v625, %v1259
        %vm1392 = vcmp.eq.s32.totalorder %v625, %v1262
        %vm1393 = vcmp.eq.s32.totalorder %v625, %v1265
        %vm1394 = vcmp.eq.s32.totalorder %v625, %v1268
        %vm1395 = vcmp.eq.s32.totalorder %v625, %v1271
        %vm1396 = vcmp.eq.s32.totalorder %v625, %v1274
        %vm1397 = vcmp.eq.s32.totalorder %v625, %v1277
        %vm1398 = vcmp.eq.s32.totalorder %v625, %v1280
        %vm1399 = vcmp.eq.s32.totalorder %v625, %v1283
        %vm1400 = vcmp.eq.s32.totalorder %v625, %v1286
        %vm1401 = vcmp.eq.s32.totalorder %v625, %v1289
        %vm1402 = vcmp.eq.s32.totalorder %v625, %v1292
        %vm1403 = vcmp.eq.s32.totalorder %v625, %v1295
        %vm1404 = vcmp.eq.s32.totalorder %v625, %v1298
        %vm1405 = vcmp.eq.s32.totalorder %v625, %v1301
        %vm1406 = vcmp.eq.s32.totalorder %v625, %v1304
        %vm1407 = vcmp.eq.s32.totalorder %v625, %v1307
        %vm1408 = vcmp.eq.s32.totalorder %v625, %v1310
        %vm1409 = vcmp.eq.s32.totalorder %v625, %v1313
        %vm1410 = vcmp.eq.s32.totalorder %v625, %v1316
        %vm1411 = vcmp.eq.s32.totalorder %v625, %v1319
        %vm1412 = vcmp.eq.s32.totalorder %v625, %v1322
        %vm1413 = vcmp.eq.s32.totalorder %v625, %v1325
        %vm1414 = vcmp.eq.s32.totalorder %v625, %v1328
        %vm1415 = vcmp.eq.s32.totalorder %v625, %v1331
        %vm1416 = vcmp.eq.s32.totalorder %v625, %v1334
        %vm1417 = vcmp.eq.s32.totalorder %v625, %v1337
        %vm1418 = vcmp.eq.s32.totalorder %v625, %v1340
        %vm1419 = vcmp.eq.s32.totalorder %v625, %v1343
        %vm1420 = vcmp.eq.s32.totalorder %v625, %v1346
        %vm1421 = vcmp.eq.s32.totalorder %v625, %v1349
        %vm1422 = vcmp.eq.s32.totalorder %v625, %v1352
        %vm1423 = vcmp.eq.s32.totalorder %v625, %v1355
        %vm1424 = vcmp.eq.s32.totalorder %v625, %v1358
        %vm1425 = vcmp.eq.s32.totalorder %v625, %v1361
        %v1426 = vsel %vm1362, 1, 0
        %v1427 = vsel %vm1363, 1, 0
        %v1428 = vsel %vm1364, 1, 0
        %v1429 = vsel %vm1365, 1, 0
        %v1430 = vsel %vm1366, 1, 0
        %v1431 = vsel %vm1367, 1, 0
        %v1432 = vsel %vm1368, 1, 0
        %v1433 = vsel %vm1369, 1, 0
        %v1434 = vsel %vm1370, 1, 0
        %v1435 = vsel %vm1371, 1, 0
        %v1436 = vsel %vm1372, 1, 0
        %v1437 = vsel %vm1373, 1, 0
        %v1438 = vsel %vm1374, 1, 0
        %v1439 = vsel %vm1375, 1, 0
        %v1440 = vsel %vm1376, 1, 0
        %v1441 = vsel %vm1377, 1, 0
        %v1442 = vsel %vm1378, 1, 0
        %v1443 = vsel %vm1379, 1, 0
        %v1444 = vsel %vm1380, 1, 0
        %v1445 = vsel %vm1381, 1, 0
        %v1446 = vsel %vm1382, 1, 0
        %v1447 = vsel %vm1383, 1, 0
        %v1448 = vsel %vm1384, 1, 0
        %v1449 = vsel %vm1385, 1, 0
        %v1450 = vsel %vm1386, 1, 0
        %v1451 = vsel %vm1387, 1, 0
        %v1452 = vsel %vm1388, 1, 0
        %v1453 = vsel %vm1389, 1, 0
        %v1454 = vsel %vm1390, 1, 0
        %v1455 = vsel %vm1391, 1, 0
        %v1456 = vsel %vm1392, 1, 0
        %v1457 = vsel %vm1393, 1, 0
        %v1458 = vsel %vm1394, 1, 0
        %v1459 = vsel %vm1395, 1, 0
        %v1460 = vsel %vm1396, 1, 0
        %v1461 = vsel %vm1397, 1, 0
        %v1462 = vsel %vm1398, 1, 0
        %v1463 = vsel %vm1399, 1, 0
        %v1464 = vsel %vm1400, 1, 0
        %v1465 = vsel %vm1401, 1, 0
        %v1466 = vsel %vm1402, 1, 0
        %v1467 = vsel %vm1403, 1, 0
        %v1468 = vsel %vm1404, 1, 0
        %v1469 = vsel %vm1405, 1, 0
        %v1470 = vsel %vm1406, 1, 0
        %v1471 = vsel %vm1407, 1, 0
        %v1472 = vsel %vm1408, 1, 0
        %v1473 = vsel %vm1409, 1, 0
        %v1474 = vsel %vm1410, 1, 0
        %v1475 = vsel %vm1411, 1, 0
        %v1476 = vsel %vm1412, 1, 0
        %v1477 = vsel %vm1413, 1, 0
        %v1478 = vsel %vm1414, 1, 0
        %v1479 = vsel %vm1415, 1, 0
        %v1480 = vsel %vm1416, 1, 0
        %v1481 = vsel %vm1417, 1, 0
        %v1482 = vsel %vm1418, 1, 0
        %v1483 = vsel %vm1419, 1, 0
        %v1484 = vsel %vm1420, 1, 0
        %v1485 = vsel %vm1421, 1, 0
        %v1486 = vsel %vm1422, 1, 0
        %v1487 = vsel %vm1423, 1, 0
        %v1488 = vsel %vm1424, 1, 0
        %v1489 = vsel %vm1425, 1, 0
        %v1490 = vcvt.s32.f32 %v1426
        %v1491 = vcvt.s32.f32 %v1427
        %v1492 = vcvt.s32.f32 %v1428
        %v1493 = vcvt.s32.f32 %v1429
        %v1494 = vcvt.s32.f32 %v1430
        %v1495 = vcvt.s32.f32 %v1431
        %v1496 = vcvt.s32.f32 %v1432
        %v1497 = vcvt.s32.f32 %v1433
        %v1498 = vcvt.s32.f32 %v1434
        %v1499 = vcvt.s32.f32 %v1435
        %v1500 = vcvt.s32.f32 %v1436
        %v1501 = vcvt.s32.f32 %v1437
        %v1502 = vcvt.s32.f32 %v1438
        %v1503 = vcvt.s32.f32 %v1439
        %v1504 = vcvt.s32.f32 %v1440
        %v1505 = vcvt.s32.f32 %v1441
        %v1506 = vcvt.s32.f32 %v1442
        %v1507 = vcvt.s32.f32 %v1443
        %v1508 = vcvt.s32.f32 %v1444
        %v1509 = vcvt.s32.f32 %v1445
        %v1510 = vcvt.s32.f32 %v1446
        %v1511 = vcvt.s32.f32 %v1447
        %v1512 = vcvt.s32.f32 %v1448
        %v1513 = vcvt.s32.f32 %v1449
        %v1514 = vcvt.s32.f32 %v1450
        %v1515 = vcvt.s32.f32 %v1451
        %v1516 = vcvt.s32.f32 %v1452
        %v1517 = vcvt.s32.f32 %v1453
        %v1518 = vcvt.s32.f32 %v1454
        %v1519 = vcvt.s32.f32 %v1455
        %v1520 = vcvt.s32.f32 %v1456
        %v1521 = vcvt.s32.f32 %v1457
        %v1522 = vcvt.s32.f32 %v1458
        %v1523 = vcvt.s32.f32 %v1459
        %v1524 = vcvt.s32.f32 %v1460
        %v1525 = vcvt.s32.f32 %v1461
        %v1526 = vcvt.s32.f32 %v1462
        %v1527 = vcvt.s32.f32 %v1463
        %v1528 = vcvt.s32.f32 %v1464
        %v1529 = vcvt.s32.f32 %v1465
        %v1530 = vcvt.s32.f32 %v1466
        %v1531 = vcvt.s32.f32 %v1467
        %v1532 = vcvt.s32.f32 %v1468
        %v1533 = vcvt.s32.f32 %v1469
        %v1534 = vcvt.s32.f32 %v1470
        %v1535 = vcvt.s32.f32 %v1471
        %v1536 = vcvt.s32.f32 %v1472
        %v1537 = vcvt.s32.f32 %v1473
        %v1538 = vcvt.s32.f32 %v1474
        %v1539 = vcvt.s32.f32 %v1475
        %v1540 = vcvt.s32.f32 %v1476
        %v1541 = vcvt.s32.f32 %v1477
        %v1542 = vcvt.s32.f32 %v1478
        %v1543 = vcvt.s32.f32 %v1479
        %v1544 = vcvt.s32.f32 %v1480
        %v1545 = vcvt.s32.f32 %v1481
        %v1546 = vcvt.s32.f32 %v1482
        %v1547 = vcvt.s32.f32 %v1483
        %v1548 = vcvt.s32.f32 %v1484
        %v1549 = vcvt.s32.f32 %v1485
        %v1550 = vcvt.s32.f32 %v1486
        %v1551 = vcvt.s32.f32 %v1487
        %v1552 = vcvt.s32.f32 %v1488
        %v1553 = vcvt.s32.f32 %v1489
        %v1554 = vpack.c.bf16 %v1491, %v1490
        %v1555 = vpack.c.bf16 %v1493, %v1492
        %v1556 = vpack.c.bf16 %v1495, %v1494
        %v1557 = vpack.c.bf16 %v1497, %v1496
        %v1558 = vpack.c.bf16 %v1499, %v1498
        %v1559 = vpack.c.bf16 %v1501, %v1500
        %v1560 = vpack.c.bf16 %v1503, %v1502
        %v1561 = vpack.c.bf16 %v1505, %v1504
        %v1562 = vpack.c.bf16 %v1507, %v1506
        %v1563 = vpack.c.bf16 %v1509, %v1508
        %v1564 = vpack.c.bf16 %v1511, %v1510
        %v1565 = vpack.c.bf16 %v1513, %v1512
        %v1566 = vpack.c.bf16 %v1515, %v1514
        %v1567 = vpack.c.bf16 %v1517, %v1516
        %v1568 = vpack.c.bf16 %v1519, %v1518
        %v1569 = vpack.c.bf16 %v1521, %v1520
        %v1570 = vpack.c.bf16 %v1523, %v1522
        %v1571 = vpack.c.bf16 %v1525, %v1524
        %v1572 = vpack.c.bf16 %v1527, %v1526
        %v1573 = vpack.c.bf16 %v1529, %v1528
        %v1574 = vpack.c.bf16 %v1531, %v1530
        %v1575 = vpack.c.bf16 %v1533, %v1532
        %v1576 = vpack.c.bf16 %v1535, %v1534
        %v1577 = vpack.c.bf16 %v1537, %v1536
        %v1578 = vpack.c.bf16 %v1539, %v1538
        %v1579 = vpack.c.bf16 %v1541, %v1540
        %v1580 = vpack.c.bf16 %v1543, %v1542
        %v1581 = vpack.c.bf16 %v1545, %v1544
        %v1582 = vpack.c.bf16 %v1547, %v1546
        %v1583 = vpack.c.bf16 %v1549, %v1548
        %v1584 = vpack.c.bf16 %v1551, %v1550
        %v1585 = vpack.c.bf16 %v1553, %v1552
        %v1586 = vld [vmem:[%s4] sm:$0xf]
        %v1587 = vld [vmem:[%s4 + $0x4] sm:$0xf]
        %v1588 = vld [vmem:[%s4 + $0x8] sm:$0xf]
        %v1589 = vld [vmem:[%s4 + $0xc] sm:$0xf]
        %v1594 = vunpack.c.l.b16 %v1586
        %v1595 = vunpack.c.l.b16 %v1587
        %v1596 = vunpack.c.l.b16 %v1588
        %v1597 = vunpack.c.l.b16 %v1589
        %v1598 = vpack.c.b16 %v1595, %v1594
        %v1599 = vpack.c.b16 %v1597, %v1596
        %vm1602 = vcmask 261120
        %v1604 = vsel %vm1602, %v1074, 0
        %v1607 = vsel %vm1602, %v1075, 0
        %v1610 = vsel %vm1602, %v1076, 0
        %v1613 = vsel %vm1602, %v1077, 0
        %v1616 = vsel %vm1602, %v1078, 0
        %v1619 = vsel %vm1602, %v1079, 0
        %v1622 = vsel %vm1602, %v1080, 0
        %v1625 = vsel %vm1602, %v1081, 0
        %v1628 = vsel %vm1602, %v1082, 0
        %v1631 = vsel %vm1602, %v1083, 0
        %v1634 = vsel %vm1602, %v1084, 0
        %v1637 = vsel %vm1602, %v1085, 0
        %v1640 = vsel %vm1602, %v1086, 0
        %v1643 = vsel %vm1602, %v1087, 0
        %v1646 = vsel %vm1602, %v1088, 0
        %v1649 = vsel %vm1602, %v1089, 0
        %v1652 = vsel %vm1602, %v1090, 0
        %v1655 = vsel %vm1602, %v1091, 0
        %v1658 = vsel %vm1602, %v1092, 0
        %v1661 = vsel %vm1602, %v1093, 0
        %v1664 = vsel %vm1602, %v1094, 0
        %v1667 = vsel %vm1602, %v1095, 0
        %v1670 = vsel %vm1602, %v1096, 0
        %v1673 = vsel %vm1602, %v1097, 0
        %v1676 = vsel %vm1602, %v1098, 0
        %v1679 = vsel %vm1602, %v1099, 0
        %v1682 = vsel %vm1602, %v1100, 0
        %v1685 = vsel %vm1602, %v1101, 0
        %v1688 = vsel %vm1602, %v1102, 0
        %v1691 = vsel %vm1602, %v1103, 0
        %v1694 = vsel %vm1602, %v1104, 0
        %v1697 = vsel %vm1602, %v1105, 0
        %1699 = vmatprep.subr.bf16.mxu0 0
        %1700 = vmatpush1.bf16.msra.mxu0 %v1598
        %1701 = vmatprep.subr.bf16.mxu0 0
        %1702 = vmatpush1.bf16.msra.mxu0 %v1599
        %1703 = vmatprep.subr.bf16.mxu0 0
        %1704 = vmatpush1.bf16.msra.mxu0 0
        %1705 = vmatprep.subr.bf16.mxu0 0
        %1706 = vmatpush1.bf16.msra.mxu0 0
        %1707 = vmatprep.subr.bf16.mxu0 0
        %1708 = vmatpush1.bf16.msra.mxu0 0
        %1709 = vmatprep.subr.bf16.mxu0 0
        %1710 = vmatpush1.bf16.msra.mxu0 0
        %1711 = vmatprep.subr.bf16.mxu0 0
        %1712 = vmatpush1.bf16.msra.mxu0 0
        %1713 = vmatprep.subr.bf16.mxu0 0
        %1714 = vmatpush1.bf16.msra.mxu0 0
        %1715 = vmatprep.subr.bf16.mxu0 0
        %1716 = vmatpush1.bf16.msra.mxu0 0
        %1717 = vmatprep.subr.bf16.mxu0 0
        %1718 = vmatpush1.bf16.msra.mxu0 0
        %1719 = vmatprep.subr.bf16.mxu0 0
        %1720 = vmatpush1.bf16.msra.mxu0 0
        %1721 = vmatprep.subr.bf16.mxu0 0
        %1722 = vmatpush1.bf16.msra.mxu0 0
        %1723 = vmatprep.subr.bf16.mxu0 0
        %1724 = vmatpush1.bf16.msra.mxu0 0
        %1725 = vmatprep.subr.bf16.mxu0 0
        %1726 = vmatpush1.bf16.msra.mxu0 0
        %1727 = vmatprep.subr.bf16.mxu0 0
        %1728 = vmatpush1.bf16.msra.mxu0 0
        %1729 = vmatprep.subr.bf16.mxu0 0
        %1730 = vmatpush1.bf16.msra.mxu0 0
        %1731 = vmatprep.mubr.bf16.mxu0 0
        %1732 = vmatmul.mubr.bf16.gmra.mrb[0].mxu0 %v1604
        %v1733 = vpop.f32.mrb[0].mxu0
        %v1734 = vadd.f32 0.0, %v1733
        %v1735 = vpop.f32.mrb[0].mxu0
        %v1736 = vpop.f32.mrb[0].mxu0
        %v1737 = vadd.f32 0.0, %v1736
        %v1738 = vpop.f32.mrb[0].mxu0
        %1739 = vmatprep.mubr.bf16.mxu0 0
        %1740 = vmatmul.mubr.bf16.gmra.mrb[0].mxu0 %v1607
        %v1741 = vpop.f32.mrb[0].mxu0
        %v1742 = vadd.f32 0.0, %v1741
        %v1743 = vpop.f32.mrb[0].mxu0
        %v1744 = vpop.f32.mrb[0].mxu0
        %v1745 = vadd.f32 0.0, %v1744
        %v1746 = vpop.f32.mrb[0].mxu0
        %1747 = vmatprep.mubr.bf16.mxu0 0
        %1748 = vmatmul.mubr.bf16.gmra.mrb[0].mxu0 %v1610
        %v1749 = vpop.f32.mrb[0].mxu0
        %v1750 = vadd.f32 0.0, %v1749
        %v1751 = vpop.f32.mrb[0].mxu0
        %v1752 = vpop.f32.mrb[0].mxu0
        %v1753 = vadd.f32 0.0, %v1752
        %v1754 = vpop.f32.mrb[0].mxu0
        %1755 = vmatprep.mubr.bf16.mxu0 0
        %1756 = vmatmul.mubr.bf16.gmra.mrb[0].mxu0 %v1613
        %v1757 = vpop.f32.mrb[0].mxu0
        %v1758 = vadd.f32 0.0, %v1757
        %v1759 = vpop.f32.mrb[0].mxu0
        %v1760 = vpop.f32.mrb[0].mxu0
        %v1761 = vadd.f32 0.0, %v1760
        %v1762 = vpop.f32.mrb[0].mxu0
        %1763 = vmatprep.mubr.bf16.mxu0 0
        %1764 = vmatmul.mubr.bf16.gmra.mrb[0].mxu0 %v1616
        %v1765 = vpop.f32.mrb[0].mxu0
        %v1766 = vadd.f32 0.0, %v1765
        %v1767 = vpop.f32.mrb[0].mxu0
        %v1768 = vpop.f32.mrb[0].mxu0
        %v1769 = vadd.f32 0.0, %v1768
        %v1770 = vpop.f32.mrb[0].mxu0
        %1771 = vmatprep.mubr.bf16.mxu0 0
        %1772 = vmatmul.mubr.bf16.gmra.mrb[0].mxu0 %v1619
        %v1773 = vpop.f32.mrb[0].mxu0
        %v1774 = vadd.f32 0.0, %v1773
        %v1775 = vpop.f32.mrb[0].mxu0
        %v1776 = vpop.f32.mrb[0].mxu0
        %v1777 = vadd.f32 0.0, %v1776
        %v1778 = vpop.f32.mrb[0].mxu0
        %1779 = vmatprep.mubr.bf16.mxu0 0
        %1780 = vmatmul.mubr.bf16.gmra.mrb[0].mxu0 %v1622
        %v1781 = vpop.f32.mrb[0].mxu0
        %v1782 = vadd.f32 0.0, %v1781
        %v1783 = vpop.f32.mrb[0].mxu0
        %v1784 = vpop.f32.mrb[0].mxu0
        %v1785 = vadd.f32 0.0, %v1784
        %v1786 = vpop.f32.mrb[0].mxu0
        %1787 = vmatprep.mubr.bf16.mxu0 0
        %1788 = vmatmul.mubr.bf16.gmra.mrb[0].mxu0 %v1625
        %v1789 = vpop.f32.mrb[0].mxu0
        %v1790 = vadd.f32 0.0, %v1789
        %v1791 = vpop.f32.mrb[0].mxu0
        %v1792 = vpop.f32.mrb[0].mxu0
        %v1793 = vadd.f32 0.0, %v1792
        %v1794 = vpop.f32.mrb[0].mxu0
        %1795 = vmatprep.mubr.bf16.mxu0 0
        %1796 = vmatmul.mubr.bf16.gmra.mrb[0].mxu0 %v1628
        %v1797 = vpop.f32.mrb[0].mxu0
        %v1798 = vadd.f32 0.0, %v1797
        %v1799 = vpop.f32.mrb[0].mxu0
        %v1800 = vpop.f32.mrb[0].mxu0
        %v1801 = vadd.f32 0.0, %v1800
        %v1802 = vpop.f32.mrb[0].mxu0
        %1803 = vmatprep.mubr.bf16.mxu0 0
        %1804 = vmatmul.mubr.bf16.gmra.mrb[0].mxu0 %v1631
        %v1805 = vpop.f32.mrb[0].mxu0
        %v1806 = vadd.f32 0.0, %v1805
        %v1807 = vpop.f32.mrb[0].mxu0
        %v1808 = vpop.f32.mrb[0].mxu0
        %v1809 = vadd.f32 0.0, %v1808
        %v1810 = vpop.f32.mrb[0].mxu0
        %1811 = vmatprep.mubr.bf16.mxu0 0
        %1812 = vmatmul.mubr.bf16.gmra.mrb[0].mxu0 %v1634
        %v1813 = vpop.f32.mrb[0].mxu0
        %v1814 = vadd.f32 0.0, %v1813
        %v1815 = vpop.f32.mrb[0].mxu0
        %v1816 = vpop.f32.mrb[0].mxu0
        %v1817 = vadd.f32 0.0, %v1816
        %v1818 = vpop.f32.mrb[0].mxu0
        %1819 = vmatprep.mubr.bf16.mxu0 0
        %1820 = vmatmul.mubr.bf16.gmra.mrb[0].mxu0 %v1637
        %v1821 = vpop.f32.mrb[0].mxu0
        %v1822 = vadd.f32 0.0, %v1821
        %v1823 = vpop.f32.mrb[0].mxu0
        %v1824 = vpop.f32.mrb[0].mxu0
        %v1825 = vadd.f32 0.0, %v1824
        %v1826 = vpop.f32.mrb[0].mxu0
        %1827 = vmatprep.mubr.bf16.mxu0 0
        %1828 = vmatmul.mubr.bf16.gmra.mrb[0].mxu0 %v1640
        %v1829 = vpop.f32.mrb[0].mxu0
        %v1830 = vadd.f32 0.0, %v1829
        %v1831 = vpop.f32.mrb[0].mxu0
        %v1832 = vpop.f32.mrb[0].mxu0
        %v1833 = vadd.f32 0.0, %v1832
        %v1834 = vpop.f32.mrb[0].mxu0
        %1835 = vmatprep.mubr.bf16.mxu0 0
        %1836 = vmatmul.mubr.bf16.gmra.mrb[0].mxu0 %v1643
        %v1837 = vpop.f32.mrb[0].mxu0
        %v1838 = vadd.f32 0.0, %v1837
        %v1839 = vpop.f32.mrb[0].mxu0
        %v1840 = vpop.f32.mrb[0].mxu0
        %v1841 = vadd.f32 0.0, %v1840
        %v1842 = vpop.f32.mrb[0].mxu0
        %1843 = vmatprep.mubr.bf16.mxu0 0
        %1844 = vmatmul.mubr.bf16.gmra.mrb[0].mxu0 %v1646
        %v1845 = vpop.f32.mrb[0].mxu0
        %v1846 = vadd.f32 0.0, %v1845
        %v1847 = vpop.f32.mrb[0].mxu0
        %v1848 = vpop.f32.mrb[0].mxu0
        %v1849 = vadd.f32 0.0, %v1848
        %v1850 = vpop.f32.mrb[0].mxu0
        %1851 = vmatprep.mubr.bf16.mxu0 0
        %1852 = vmatmul.mubr.bf16.gmra.mrb[0].mxu0 %v1649
        %v1853 = vpop.f32.mrb[0].mxu0
        %v1854 = vadd.f32 0.0, %v1853
        %v1855 = vpop.f32.mrb[0].mxu0
        %v1856 = vpop.f32.mrb[0].mxu0
        %v1857 = vadd.f32 0.0, %v1856
        %v1858 = vpop.f32.mrb[0].mxu0
        %1859 = vmatprep.mubr.bf16.mxu0 0
        %1860 = vmatmul.mubr.bf16.gmra.mrb[0].mxu0 %v1652
        %v1861 = vpop.f32.mrb[0].mxu0
        %v1862 = vadd.f32 0.0, %v1861
        %v1863 = vpop.f32.mrb[0].mxu0
        %v1864 = vpop.f32.mrb[0].mxu0
        %v1865 = vadd.f32 0.0, %v1864
        %v1866 = vpop.f32.mrb[0].mxu0
        %1867 = vmatprep.mubr.bf16.mxu0 0
        %1868 = vmatmul.mubr.bf16.gmra.mrb[0].mxu0 %v1655
        %v1869 = vpop.f32.mrb[0].mxu0
        %v1870 = vadd.f32 0.0, %v1869
        %v1871 = vpop.f32.mrb[0].mxu0
        %v1872 = vpop.f32.mrb[0].mxu0
        %v1873 = vadd.f32 0.0, %v1872
        %v1874 = vpop.f32.mrb[0].mxu0
        %1875 = vmatprep.mubr.bf16.mxu0 0
        %1876 = vmatmul.mubr.bf16.gmra.mrb[0].mxu0 %v1658
        %v1877 = vpop.f32.mrb[0].mxu0
        %v1878 = vadd.f32 0.0, %v1877
        %v1879 = vpop.f32.mrb[0].mxu0
        %v1880 = vpop.f32.mrb[0].mxu0
        %v1881 = vadd.f32 0.0, %v1880
        %v1882 = vpop.f32.mrb[0].mxu0
        %1883 = vmatprep.mubr.bf16.mxu0 0
        %1884 = vmatmul.mubr.bf16.gmra.mrb[0].mxu0 %v1661
        %v1885 = vpop.f32.mrb[0].mxu0
        %v1886 = vadd.f32 0.0, %v1885
        %v1887 = vpop.f32.mrb[0].mxu0
        %v1888 = vpop.f32.mrb[0].mxu0
        %v1889 = vadd.f32 0.0, %v1888
        %v1890 = vpop.f32.mrb[0].mxu0
        %1891 = vmatprep.mubr.bf16.mxu0 0
        %1892 = vmatmul.mubr.bf16.gmra.mrb[0].mxu0 %v1664
        %v1893 = vpop.f32.mrb[0].mxu0
        %v1894 = vadd.f32 0.0, %v1893
        %v1895 = vpop.f32.mrb[0].mxu0
        %v1896 = vpop.f32.mrb[0].mxu0
        %v1897 = vadd.f32 0.0, %v1896
        %v1898 = vpop.f32.mrb[0].mxu0
        %1899 = vmatprep.mubr.bf16.mxu0 0
        %1900 = vmatmul.mubr.bf16.gmra.mrb[0].mxu0 %v1667
        %v1901 = vpop.f32.mrb[0].mxu0
        %v1902 = vadd.f32 0.0, %v1901
        %v1903 = vpop.f32.mrb[0].mxu0
        %v1904 = vpop.f32.mrb[0].mxu0
        %v1905 = vadd.f32 0.0, %v1904
        %v1906 = vpop.f32.mrb[0].mxu0
        %1907 = vmatprep.mubr.bf16.mxu0 0
        %1908 = vmatmul.mubr.bf16.gmra.mrb[0].mxu0 %v1670
        %v1909 = vpop.f32.mrb[0].mxu0
        %v1910 = vadd.f32 0.0, %v1909
        %v1911 = vpop.f32.mrb[0].mxu0
        %v1912 = vpop.f32.mrb[0].mxu0
        %v1913 = vadd.f32 0.0, %v1912
        %v1914 = vpop.f32.mrb[0].mxu0
        %1915 = vmatprep.mubr.bf16.mxu0 0
        %1916 = vmatmul.mubr.bf16.gmra.mrb[0].mxu0 %v1673
        %v1917 = vpop.f32.mrb[0].mxu0
        %v1918 = vadd.f32 0.0, %v1917
        %v1919 = vpop.f32.mrb[0].mxu0
        %v1920 = vpop.f32.mrb[0].mxu0
        %v1921 = vadd.f32 0.0, %v1920
        %v1922 = vpop.f32.mrb[0].mxu0
        %1923 = vmatprep.mubr.bf16.mxu0 0
        %1924 = vmatmul.mubr.bf16.gmra.mrb[0].mxu0 %v1676
        %v1925 = vpop.f32.mrb[0].mxu0
        %v1926 = vadd.f32 0.0, %v1925
        %v1927 = vpop.f32.mrb[0].mxu0
        %v1928 = vpop.f32.mrb[0].mxu0
        %v1929 = vadd.f32 0.0, %v1928
        %v1930 = vpop.f32.mrb[0].mxu0
        %1931 = vmatprep.mubr.bf16.mxu0 0
        %1932 = vmatmul.mubr.bf16.gmra.mrb[0].mxu0 %v1679
        %v1933 = vpop.f32.mrb[0].mxu0
        %v1934 = vadd.f32 0.0, %v1933
        %v1935 = vpop.f32.mrb[0].mxu0
        %v1936 = vpop.f32.mrb[0].mxu0
        %v1937 = vadd.f32 0.0, %v1936
        %v1938 = vpop.f32.mrb[0].mxu0
        %1939 = vmatprep.mubr.bf16.mxu0 0
        %1940 = vmatmul.mubr.bf16.gmra.mrb[0].mxu0 %v1682
        %v1941 = vpop.f32.mrb[0].mxu0
        %v1942 = vadd.f32 0.0, %v1941
        %v1943 = vpop.f32.mrb[0].mxu0
        %v1944 = vpop.f32.mrb[0].mxu0
        %v1945 = vadd.f32 0.0, %v1944
        %v1946 = vpop.f32.mrb[0].mxu0
        %1947 = vmatprep.mubr.bf16.mxu0 0
        %1948 = vmatmul.mubr.bf16.gmra.mrb[0].mxu0 %v1685
        %v1949 = vpop.f32.mrb[0].mxu0
        %v1950 = vadd.f32 0.0, %v1949
        %v1951 = vpop.f32.mrb[0].mxu0
        %v1952 = vpop.f32.mrb[0].mxu0
        %v1953 = vadd.f32 0.0, %v1952
        %v1954 = vpop.f32.mrb[0].mxu0
        %1955 = vmatprep.mubr.bf16.mxu0 0
        %1956 = vmatmul.mubr.bf16.gmra.mrb[0].mxu0 %v1688
        %v1957 = vpop.f32.mrb[0].mxu0
        %v1958 = vadd.f32 0.0, %v1957
        %v1959 = vpop.f32.mrb[0].mxu0
        %v1960 = vpop.f32.mrb[0].mxu0
        %v1961 = vadd.f32 0.0, %v1960
        %v1962 = vpop.f32.mrb[0].mxu0
        %1963 = vmatprep.mubr.bf16.mxu0 0
        %1964 = vmatmul.mubr.bf16.gmra.mrb[0].mxu0 %v1691
        %v1965 = vpop.f32.mrb[0].mxu0
        %v1966 = vadd.f32 0.0, %v1965
        %v1967 = vpop.f32.mrb[0].mxu0
        %v1968 = vpop.f32.mrb[0].mxu0
        %v1969 = vadd.f32 0.0, %v1968
        %v1970 = vpop.f32.mrb[0].mxu0
        %1971 = vmatprep.mubr.bf16.mxu0 0
        %1972 = vmatmul.mubr.bf16.gmra.mrb[0].mxu0 %v1694
        %v1973 = vpop.f32.mrb[0].mxu0
        %v1974 = vadd.f32 0.0, %v1973
        %v1975 = vpop.f32.mrb[0].mxu0
        %v1976 = vpop.f32.mrb[0].mxu0
        %v1977 = vadd.f32 0.0, %v1976
        %v1978 = vpop.f32.mrb[0].mxu0
        %1979 = vmatprep.mubr.bf16.mxu0 0
        %1980 = vmatmul.mubr.bf16.gmra.mrb[0].mxu0 %v1697
        %v1981 = vpop.f32.mrb[0].mxu0
        %v1982 = vadd.f32 0.0, %v1981
        %v1983 = vpop.f32.mrb[0].mxu0
        %v1984 = vpop.f32.mrb[0].mxu0
        %v1985 = vadd.f32 0.0, %v1984
        %v1986 = vpop.f32.mrb[0].mxu0
        %1987 = vdwg.mxu0
        %v1988 = vpack.c.bf16 %v1737, %v1734
        %v1989 = vpack.c.bf16 %v1745, %v1742
        %v1990 = vpack.c.bf16 %v1753, %v1750
        %v1991 = vpack.c.bf16 %v1761, %v1758
        %v1992 = vpack.c.bf16 %v1769, %v1766
        %v1993 = vpack.c.bf16 %v1777, %v1774
        %v1994 = vpack.c.bf16 %v1785, %v1782
        %v1995 = vpack.c.bf16 %v1793, %v1790
        %v1996 = vpack.c.bf16 %v1801, %v1798
        %v1997 = vpack.c.bf16 %v1809, %v1806
        %v1998 = vpack.c.bf16 %v1817, %v1814
        %v1999 = vpack.c.bf16 %v1825, %v1822
        %v2000 = vpack.c.bf16 %v1833, %v1830
        %v2001 = vpack.c.bf16 %v1841, %v1838
        %v2002 = vpack.c.bf16 %v1849, %v1846
        %v2003 = vpack.c.bf16 %v1857, %v1854
        %v2004 = vpack.c.bf16 %v1865, %v1862
        %v2005 = vpack.c.bf16 %v1873, %v1870
        %v2006 = vpack.c.bf16 %v1881, %v1878
        %v2007 = vpack.c.bf16 %v1889, %v1886
        %v2008 = vpack.c.bf16 %v1897, %v1894
        %v2009 = vpack.c.bf16 %v1905, %v1902
        %v2010 = vpack.c.bf16 %v1913, %v1910
        %v2011 = vpack.c.bf16 %v1921, %v1918
        %v2012 = vpack.c.bf16 %v1929, %v1926
        %v2013 = vpack.c.bf16 %v1937, %v1934
        %v2014 = vpack.c.bf16 %v1945, %v1942
        %v2015 = vpack.c.bf16 %v1953, %v1950
        %v2016 = vpack.c.bf16 %v1961, %v1958
        %v2017 = vpack.c.bf16 %v1969, %v1966
        %v2018 = vpack.c.bf16 %v1977, %v1974
        %v2019 = vpack.c.bf16 %v1985, %v1982
        %v2021 = vsel %vm1602, %v1554, 0
        %v2024 = vsel %vm1602, %v1555, 0
        %v2027 = vsel %vm1602, %v1556, 0
        %v2030 = vsel %vm1602, %v1557, 0
        %v2033 = vsel %vm1602, %v1558, 0
        %v2036 = vsel %vm1602, %v1559, 0
        %v2039 = vsel %vm1602, %v1560, 0
        %v2042 = vsel %vm1602, %v1561, 0
        %v2045 = vsel %vm1602, %v1562, 0
        %v2048 = vsel %vm1602, %v1563, 0
        %v2051 = vsel %vm1602, %v1564, 0
        %v2054 = vsel %vm1602, %v1565, 0
        %v2057 = vsel %vm1602, %v1566, 0
        %v2060 = vsel %vm1602, %v1567, 0
        %v2063 = vsel %vm1602, %v1568, 0
        %v2066 = vsel %vm1602, %v1569, 0
        %v2069 = vsel %vm1602, %v1570, 0
        %v2072 = vsel %vm1602, %v1571, 0
        %v2075 = vsel %vm1602, %v1572, 0
        %v2078 = vsel %vm1602, %v1573, 0
        %v2081 = vsel %vm1602, %v1574, 0
        %v2084 = vsel %vm1602, %v1575, 0
        %v2087 = vsel %vm1602, %v1576, 0
        %v2090 = vsel %vm1602, %v1577, 0
        %v2093 = vsel %vm1602, %v1578, 0
        %v2096 = vsel %vm1602, %v1579, 0
        %v2099 = vsel %vm1602, %v1580, 0
        %v2102 = vsel %vm1602, %v1581, 0
        %v2105 = vsel %vm1602, %v1582, 0
        %v2108 = vsel %vm1602, %v1583, 0
        %v2111 = vsel %vm1602, %v1584, 0
        %v2114 = vsel %vm1602, %v1585, 0
        %2116 = vmatprep.subr.bf16.mxu0 0
        %2117 = vmatpush1.bf16.msra.mxu0 %v1598
        %2118 = vmatprep.subr.bf16.mxu0 0
        %2119 = vmatpush1.bf16.msra.mxu0 %v1599
        %2120 = vmatprep.subr.bf16.mxu0 0
        %2121 = vmatpush1.bf16.msra.mxu0 0
        %2122 = vmatprep.subr.bf16.mxu0 0
        %2123 = vmatpush1.bf16.msra.mxu0 0
        %2124 = vmatprep.subr.bf16.mxu0 0
        %2125 = vmatpush1.bf16.msra.mxu0 0
        %2126 = vmatprep.subr.bf16.mxu0 0
        %2127 = vmatpush1.bf16.msra.mxu0 0
        %2128 = vmatprep.subr.bf16.mxu0 0
        %2129 = vmatpush1.bf16.msra.mxu0 0
        %2130 = vmatprep.subr.bf16.mxu0 0
        %2131 = vmatpush1.bf16.msra.mxu0 0
        %2132 = vmatprep.subr.bf16.mxu0 0
        %2133 = vmatpush1.bf16.msra.mxu0 0
        %2134 = vmatprep.subr.bf16.mxu0 0
        %2135 = vmatpush1.bf16.msra.mxu0 0
        %2136 = vmatprep.subr.bf16.mxu0 0
        %2137 = vmatpush1.bf16.msra.mxu0 0
        %2138 = vmatprep.subr.bf16.mxu0 0
        %2139 = vmatpush1.bf16.msra.mxu0 0
        %2140 = vmatprep.subr.bf16.mxu0 0
        %2141 = vmatpush1.bf16.msra.mxu0 0
        %2142 = vmatprep.subr.bf16.mxu0 0
        %2143 = vmatpush1.bf16.msra.mxu0 0
        %2144 = vmatprep.subr.bf16.mxu0 0
        %2145 = vmatpush1.bf16.msra.mxu0 0
        %2146 = vmatprep.subr.bf16.mxu0 0
        %2147 = vmatpush1.bf16.msra.mxu0 0
        %2148 = vmatprep.mubr.bf16.mxu0 0
        %2149 = vmatmul.mubr.bf16.gmra.mrb[0].mxu0 %v2021
        %v2150 = vpop.f32.mrb[0].mxu0
        %v2151 = vadd.f32 0.0, %v2150
        %v2152 = vpop.f32.mrb[0].mxu0
        %v2153 = vpop.f32.mrb[0].mxu0
        %v2154 = vadd.f32 0.0, %v2153
        %v2155 = vpop.f32.mrb[0].mxu0
        %2156 = vmatprep.mubr.bf16.mxu0 0
        %2157 = vmatmul.mubr.bf16.gmra.mrb[0].mxu0 %v2024
        %v2158 = vpop.f32.mrb[0].mxu0
        %v2159 = vadd.f32 0.0, %v2158
        %v2160 = vpop.f32.mrb[0].mxu0
        %v2161 = vpop.f32.mrb[0].mxu0
        %v2162 = vadd.f32 0.0, %v2161
        %v2163 = vpop.f32.mrb[0].mxu0
        %2164 = vmatprep.mubr.bf16.mxu0 0
        %2165 = vmatmul.mubr.bf16.gmra.mrb[0].mxu0 %v2027
        %v2166 = vpop.f32.mrb[0].mxu0
        %v2167 = vadd.f32 0.0, %v2166
        %v2168 = vpop.f32.mrb[0].mxu0
        %v2169 = vpop.f32.mrb[0].mxu0
        %v2170 = vadd.f32 0.0, %v2169
        %v2171 = vpop.f32.mrb[0].mxu0
        %2172 = vmatprep.mubr.bf16.mxu0 0
        %2173 = vmatmul.mubr.bf16.gmra.mrb[0].mxu0 %v2030
        %v2174 = vpop.f32.mrb[0].mxu0
        %v2175 = vadd.f32 0.0, %v2174
        %v2176 = vpop.f32.mrb[0].mxu0
        %v2177 = vpop.f32.mrb[0].mxu0
        %v2178 = vadd.f32 0.0, %v2177
        %v2179 = vpop.f32.mrb[0].mxu0
        %2180 = vmatprep.mubr.bf16.mxu0 0
        %2181 = vmatmul.mubr.bf16.gmra.mrb[0].mxu0 %v2033
        %v2182 = vpop.f32.mrb[0].mxu0
        %v2183 = vadd.f32 0.0, %v2182
        %v2184 = vpop.f32.mrb[0].mxu0
        %v2185 = vpop.f32.mrb[0].mxu0
        %v2186 = vadd.f32 0.0, %v2185
        %v2187 = vpop.f32.mrb[0].mxu0
        %2188 = vmatprep.mubr.bf16.mxu0 0
        %2189 = vmatmul.mubr.bf16.gmra.mrb[0].mxu0 %v2036
        %v2190 = vpop.f32.mrb[0].mxu0
        %v2191 = vadd.f32 0.0, %v2190
        %v2192 = vpop.f32.mrb[0].mxu0
        %v2193 = vpop.f32.mrb[0].mxu0
        %v2194 = vadd.f32 0.0, %v2193
        %v2195 = vpop.f32.mrb[0].mxu0
        %2196 = vmatprep.mubr.bf16.mxu0 0
        %2197 = vmatmul.mubr.bf16.gmra.mrb[0].mxu0 %v2039
        %v2198 = vpop.f32.mrb[0].mxu0
        %v2199 = vadd.f32 0.0, %v2198
        %v2200 = vpop.f32.mrb[0].mxu0
        %v2201 = vpop.f32.mrb[0].mxu0
        %v2202 = vadd.f32 0.0, %v2201
        %v2203 = vpop.f32.mrb[0].mxu0
        %2204 = vmatprep.mubr.bf16.mxu0 0
        %2205 = vmatmul.mubr.bf16.gmra.mrb[0].mxu0 %v2042
        %v2206 = vpop.f32.mrb[0].mxu0
        %v2207 = vadd.f32 0.0, %v2206
        %v2208 = vpop.f32.mrb[0].mxu0
        %v2209 = vpop.f32.mrb[0].mxu0
        %v2210 = vadd.f32 0.0, %v2209
        %v2211 = vpop.f32.mrb[0].mxu0
        %2212 = vmatprep.mubr.bf16.mxu0 0
        %2213 = vmatmul.mubr.bf16.gmra.mrb[0].mxu0 %v2045
        %v2214 = vpop.f32.mrb[0].mxu0
        %v2215 = vadd.f32 0.0, %v2214
        %v2216 = vpop.f32.mrb[0].mxu0
        %v2217 = vpop.f32.mrb[0].mxu0
        %v2218 = vadd.f32 0.0, %v2217
        %v2219 = vpop.f32.mrb[0].mxu0
        %2220 = vmatprep.mubr.bf16.mxu0 0
        %2221 = vmatmul.mubr.bf16.gmra.mrb[0].mxu0 %v2048
        %v2222 = vpop.f32.mrb[0].mxu0
        %v2223 = vadd.f32 0.0, %v2222
        %v2224 = vpop.f32.mrb[0].mxu0
        %v2225 = vpop.f32.mrb[0].mxu0
        %v2226 = vadd.f32 0.0, %v2225
        %v2227 = vpop.f32.mrb[0].mxu0
        %2228 = vmatprep.mubr.bf16.mxu0 0
        %2229 = vmatmul.mubr.bf16.gmra.mrb[0].mxu0 %v2051
        %v2230 = vpop.f32.mrb[0].mxu0
        %v2231 = vadd.f32 0.0, %v2230
        %v2232 = vpop.f32.mrb[0].mxu0
        %v2233 = vpop.f32.mrb[0].mxu0
        %v2234 = vadd.f32 0.0, %v2233
        %v2235 = vpop.f32.mrb[0].mxu0
        %2236 = vmatprep.mubr.bf16.mxu0 0
        %2237 = vmatmul.mubr.bf16.gmra.mrb[0].mxu0 %v2054
        %v2238 = vpop.f32.mrb[0].mxu0
        %v2239 = vadd.f32 0.0, %v2238
        %v2240 = vpop.f32.mrb[0].mxu0
        %v2241 = vpop.f32.mrb[0].mxu0
        %v2242 = vadd.f32 0.0, %v2241
        %v2243 = vpop.f32.mrb[0].mxu0
        %2244 = vmatprep.mubr.bf16.mxu0 0
        %2245 = vmatmul.mubr.bf16.gmra.mrb[0].mxu0 %v2057
        %v2246 = vpop.f32.mrb[0].mxu0
        %v2247 = vadd.f32 0.0, %v2246
        %v2248 = vpop.f32.mrb[0].mxu0
        %v2249 = vpop.f32.mrb[0].mxu0
        %v2250 = vadd.f32 0.0, %v2249
        %v2251 = vpop.f32.mrb[0].mxu0
        %2252 = vmatprep.mubr.bf16.mxu0 0
        %2253 = vmatmul.mubr.bf16.gmra.mrb[0].mxu0 %v2060
        %v2254 = vpop.f32.mrb[0].mxu0
        %v2255 = vadd.f32 0.0, %v2254
        %v2256 = vpop.f32.mrb[0].mxu0
        %v2257 = vpop.f32.mrb[0].mxu0
        %v2258 = vadd.f32 0.0, %v2257
        %v2259 = vpop.f32.mrb[0].mxu0
        %2260 = vmatprep.mubr.bf16.mxu0 0
        %2261 = vmatmul.mubr.bf16.gmra.mrb[0].mxu0 %v2063
        %v2262 = vpop.f32.mrb[0].mxu0
        %v2263 = vadd.f32 0.0, %v2262
        %v2264 = vpop.f32.mrb[0].mxu0
        %v2265 = vpop.f32.mrb[0].mxu0
        %v2266 = vadd.f32 0.0, %v2265
        %v2267 = vpop.f32.mrb[0].mxu0
        %2268 = vmatprep.mubr.bf16.mxu0 0
        %2269 = vmatmul.mubr.bf16.gmra.mrb[0].mxu0 %v2066
        %v2270 = vpop.f32.mrb[0].mxu0
        %v2271 = vadd.f32 0.0, %v2270
        %v2272 = vpop.f32.mrb[0].mxu0
        %v2273 = vpop.f32.mrb[0].mxu0
        %v2274 = vadd.f32 0.0, %v2273
        %v2275 = vpop.f32.mrb[0].mxu0
        %2276 = vmatprep.mubr.bf16.mxu0 0
        %2277 = vmatmul.mubr.bf16.gmra.mrb[0].mxu0 %v2069
        %v2278 = vpop.f32.mrb[0].mxu0
        %v2279 = vadd.f32 0.0, %v2278
        %v2280 = vpop.f32.mrb[0].mxu0
        %v2281 = vpop.f32.mrb[0].mxu0
        %v2282 = vadd.f32 0.0, %v2281
        %v2283 = vpop.f32.mrb[0].mxu0
        %2284 = vmatprep.mubr.bf16.mxu0 0
        %2285 = vmatmul.mubr.bf16.gmra.mrb[0].mxu0 %v2072
        %v2286 = vpop.f32.mrb[0].mxu0
        %v2287 = vadd.f32 0.0, %v2286
        %v2288 = vpop.f32.mrb[0].mxu0
        %v2289 = vpop.f32.mrb[0].mxu0
        %v2290 = vadd.f32 0.0, %v2289
        %v2291 = vpop.f32.mrb[0].mxu0
        %2292 = vmatprep.mubr.bf16.mxu0 0
        %2293 = vmatmul.mubr.bf16.gmra.mrb[0].mxu0 %v2075
        %v2294 = vpop.f32.mrb[0].mxu0
        %v2295 = vadd.f32 0.0, %v2294
        %v2296 = vpop.f32.mrb[0].mxu0
        %v2297 = vpop.f32.mrb[0].mxu0
        %v2298 = vadd.f32 0.0, %v2297
        %v2299 = vpop.f32.mrb[0].mxu0
        %2300 = vmatprep.mubr.bf16.mxu0 0
        %2301 = vmatmul.mubr.bf16.gmra.mrb[0].mxu0 %v2078
        %v2302 = vpop.f32.mrb[0].mxu0
        %v2303 = vadd.f32 0.0, %v2302
        %v2304 = vpop.f32.mrb[0].mxu0
        %v2305 = vpop.f32.mrb[0].mxu0
        %v2306 = vadd.f32 0.0, %v2305
        %v2307 = vpop.f32.mrb[0].mxu0
        %2308 = vmatprep.mubr.bf16.mxu0 0
        %2309 = vmatmul.mubr.bf16.gmra.mrb[0].mxu0 %v2081
        %v2310 = vpop.f32.mrb[0].mxu0
        %v2311 = vadd.f32 0.0, %v2310
        %v2312 = vpop.f32.mrb[0].mxu0
        %v2313 = vpop.f32.mrb[0].mxu0
        %v2314 = vadd.f32 0.0, %v2313
        %v2315 = vpop.f32.mrb[0].mxu0
        %2316 = vmatprep.mubr.bf16.mxu0 0
        %2317 = vmatmul.mubr.bf16.gmra.mrb[0].mxu0 %v2084
        %v2318 = vpop.f32.mrb[0].mxu0
        %v2319 = vadd.f32 0.0, %v2318
        %v2320 = vpop.f32.mrb[0].mxu0
        %v2321 = vpop.f32.mrb[0].mxu0
        %v2322 = vadd.f32 0.0, %v2321
        %v2323 = vpop.f32.mrb[0].mxu0
        %2324 = vmatprep.mubr.bf16.mxu0 0
        %2325 = vmatmul.mubr.bf16.gmra.mrb[0].mxu0 %v2087
        %v2326 = vpop.f32.mrb[0].mxu0
        %v2327 = vadd.f32 0.0, %v2326
        %v2328 = vpop.f32.mrb[0].mxu0
        %v2329 = vpop.f32.mrb[0].mxu0
        %v2330 = vadd.f32 0.0, %v2329
        %v2331 = vpop.f32.mrb[0].mxu0
        %2332 = vmatprep.mubr.bf16.mxu0 0
        %2333 = vmatmul.mubr.bf16.gmra.mrb[0].mxu0 %v2090
        %v2334 = vpop.f32.mrb[0].mxu0
        %v2335 = vadd.f32 0.0, %v2334
        %v2336 = vpop.f32.mrb[0].mxu0
        %v2337 = vpop.f32.mrb[0].mxu0
        %v2338 = vadd.f32 0.0, %v2337
        %v2339 = vpop.f32.mrb[0].mxu0
        %2340 = vmatprep.mubr.bf16.mxu0 0
        %2341 = vmatmul.mubr.bf16.gmra.mrb[0].mxu0 %v2093
        %v2342 = vpop.f32.mrb[0].mxu0
        %v2343 = vadd.f32 0.0, %v2342
        %v2344 = vpop.f32.mrb[0].mxu0
        %v2345 = vpop.f32.mrb[0].mxu0
        %v2346 = vadd.f32 0.0, %v2345
        %v2347 = vpop.f32.mrb[0].mxu0
        %2348 = vmatprep.mubr.bf16.mxu0 0
        %2349 = vmatmul.mubr.bf16.gmra.mrb[0].mxu0 %v2096
        %v2350 = vpop.f32.mrb[0].mxu0
        %v2351 = vadd.f32 0.0, %v2350
        %v2352 = vpop.f32.mrb[0].mxu0
        %v2353 = vpop.f32.mrb[0].mxu0
        %v2354 = vadd.f32 0.0, %v2353
        %v2355 = vpop.f32.mrb[0].mxu0
        %2356 = vmatprep.mubr.bf16.mxu0 0
        %2357 = vmatmul.mubr.bf16.gmra.mrb[0].mxu0 %v2099
        %v2358 = vpop.f32.mrb[0].mxu0
        %v2359 = vadd.f32 0.0, %v2358
        %v2360 = vpop.f32.mrb[0].mxu0
        %v2361 = vpop.f32.mrb[0].mxu0
        %v2362 = vadd.f32 0.0, %v2361
        %v2363 = vpop.f32.mrb[0].mxu0
        %2364 = vmatprep.mubr.bf16.mxu0 0
        %2365 = vmatmul.mubr.bf16.gmra.mrb[0].mxu0 %v2102
        %v2366 = vpop.f32.mrb[0].mxu0
        %v2367 = vadd.f32 0.0, %v2366
        %v2368 = vpop.f32.mrb[0].mxu0
        %v2369 = vpop.f32.mrb[0].mxu0
        %v2370 = vadd.f32 0.0, %v2369
        %v2371 = vpop.f32.mrb[0].mxu0
        %2372 = vmatprep.mubr.bf16.mxu0 0
        %2373 = vmatmul.mubr.bf16.gmra.mrb[0].mxu0 %v2105
        %v2374 = vpop.f32.mrb[0].mxu0
        %v2375 = vadd.f32 0.0, %v2374
        %v2376 = vpop.f32.mrb[0].mxu0
        %v2377 = vpop.f32.mrb[0].mxu0
        %v2378 = vadd.f32 0.0, %v2377
        %v2379 = vpop.f32.mrb[0].mxu0
        %2380 = vmatprep.mubr.bf16.mxu0 0
        %2381 = vmatmul.mubr.bf16.gmra.mrb[0].mxu0 %v2108
        %v2382 = vpop.f32.mrb[0].mxu0
        %v2383 = vadd.f32 0.0, %v2382
        %v2384 = vpop.f32.mrb[0].mxu0
        %v2385 = vpop.f32.mrb[0].mxu0
        %v2386 = vadd.f32 0.0, %v2385
        %v2387 = vpop.f32.mrb[0].mxu0
        %2388 = vmatprep.mubr.bf16.mxu0 0
        %2389 = vmatmul.mubr.bf16.gmra.mrb[0].mxu0 %v2111
        %v2390 = vpop.f32.mrb[0].mxu0
        %v2391 = vadd.f32 0.0, %v2390
        %v2392 = vpop.f32.mrb[0].mxu0
        %v2393 = vpop.f32.mrb[0].mxu0
        %v2394 = vadd.f32 0.0, %v2393
        %v2395 = vpop.f32.mrb[0].mxu0
        %2396 = vmatprep.mubr.bf16.mxu0 0
        %2397 = vmatmul.mubr.bf16.gmra.mrb[0].mxu0 %v2114
        %v2398 = vpop.f32.mrb[0].mxu0
        %v2399 = vadd.f32 0.0, %v2398
        %v2400 = vpop.f32.mrb[0].mxu0
        %v2401 = vpop.f32.mrb[0].mxu0
        %v2402 = vadd.f32 0.0, %v2401
        %v2403 = vpop.f32.mrb[0].mxu0
        %2404 = vdwg.mxu0
        %v2405 = vpack.c.bf16 %v2154, %v2151
        %v2406 = vpack.c.bf16 %v2162, %v2159
        %v2407 = vpack.c.bf16 %v2170, %v2167
        %v2408 = vpack.c.bf16 %v2178, %v2175
        %v2409 = vpack.c.bf16 %v2186, %v2183
        %v2410 = vpack.c.bf16 %v2194, %v2191
        %v2411 = vpack.c.bf16 %v2202, %v2199
        %v2412 = vpack.c.bf16 %v2210, %v2207
        %v2413 = vpack.c.bf16 %v2218, %v2215
        %v2414 = vpack.c.bf16 %v2226, %v2223
        %v2415 = vpack.c.bf16 %v2234, %v2231
        %v2416 = vpack.c.bf16 %v2242, %v2239
        %v2417 = vpack.c.bf16 %v2250, %v2247
        %v2418 = vpack.c.bf16 %v2258, %v2255
        %v2419 = vpack.c.bf16 %v2266, %v2263
        %v2420 = vpack.c.bf16 %v2274, %v2271
        %v2421 = vpack.c.bf16 %v2282, %v2279
        %v2422 = vpack.c.bf16 %v2290, %v2287
        %v2423 = vpack.c.bf16 %v2298, %v2295
        %v2424 = vpack.c.bf16 %v2306, %v2303
        %v2425 = vpack.c.bf16 %v2314, %v2311
        %v2426 = vpack.c.bf16 %v2322, %v2319
        %v2427 = vpack.c.bf16 %v2330, %v2327
        %v2428 = vpack.c.bf16 %v2338, %v2335
        %v2429 = vpack.c.bf16 %v2346, %v2343
        %v2430 = vpack.c.bf16 %v2354, %v2351
        %v2431 = vpack.c.bf16 %v2362, %v2359
        %v2432 = vpack.c.bf16 %v2370, %v2367
        %v2433 = vpack.c.bf16 %v2378, %v2375
        %v2434 = vpack.c.bf16 %v2386, %v2383
        %v2435 = vpack.c.bf16 %v2394, %v2391
        %v2436 = vpack.c.bf16 %v2402, %v2399
        %v2437 = vld [vmem:[%s5] sm:$0xf]
        %v2438 = vld [vmem:[%s5 + $0x4] sm:$0xf]
        %v2439 = vld [vmem:[%s5 + $0x8] sm:$0xf]
        %v2440 = vld [vmem:[%s5 + $0xc] sm:$0xf]
        %v2441 = vld [vmem:[%s6] sm:$0xf]
        %v2442 = vld [vmem:[%s6 + $0x4] sm:$0xf]
        %v2443 = vld [vmem:[%s6 + $0x8] sm:$0xf]
        %v2444 = vld [vmem:[%s6 + $0xc] sm:$0xf]
        %v2449 = vunpack.c.l.b16 %v2441
        %v2450 = vunpack.c.l.b16 %v2442
        %v2451 = vunpack.c.l.b16 %v2443
        %v2452 = vunpack.c.l.b16 %v2444
        %v2453 = vpack.c.b16 %v2450, %v2449
        %v2454 = vpack.c.b16 %v2452, %v2451
        %v2458 = vsel %vm1602, %v2405, 0
        %v2461 = vsel %vm1602, %v2406, 0
        %v2464 = vsel %vm1602, %v2407, 0
        %v2467 = vsel %vm1602, %v2408, 0
        %v2470 = vsel %vm1602, %v2409, 0
        %v2473 = vsel %vm1602, %v2410, 0
        %v2476 = vsel %vm1602, %v2411, 0
        %v2479 = vsel %vm1602, %v2412, 0
        %v2482 = vsel %vm1602, %v2413, 0
        %v2485 = vsel %vm1602, %v2414, 0
        %v2488 = vsel %vm1602, %v2415, 0
        %v2491 = vsel %vm1602, %v2416, 0
        %v2494 = vsel %vm1602, %v2417, 0
        %v2497 = vsel %vm1602, %v2418, 0
        %v2500 = vsel %vm1602, %v2419, 0
        %v2503 = vsel %vm1602, %v2420, 0
        %v2506 = vsel %vm1602, %v2421, 0
        %v2509 = vsel %vm1602, %v2422, 0
        %v2512 = vsel %vm1602, %v2423, 0
        %v2515 = vsel %vm1602, %v2424, 0
        %v2518 = vsel %vm1602, %v2425, 0
        %v2521 = vsel %vm1602, %v2426, 0
        %v2524 = vsel %vm1602, %v2427, 0
        %v2527 = vsel %vm1602, %v2428, 0
        %v2530 = vsel %vm1602, %v2429, 0
        %v2533 = vsel %vm1602, %v2430, 0
        %v2536 = vsel %vm1602, %v2431, 0
        %v2539 = vsel %vm1602, %v2432, 0
        %v2542 = vsel %vm1602, %v2433, 0
        %v2545 = vsel %vm1602, %v2434, 0
        %v2548 = vsel %vm1602, %v2435, 0
        %v2551 = vsel %vm1602, %v2436, 0
        %2553 = vmatprep.subr.bf16.mxu0 0
        %2554 = vmatpush1.bf16.msra.mxu0 %v2453
        %2555 = vmatprep.subr.bf16.mxu0 0
        %2556 = vmatpush1.bf16.msra.mxu0 %v2454
        %2557 = vmatprep.subr.bf16.mxu0 0
        %2558 = vmatpush1.bf16.msra.mxu0 0
        %2559 = vmatprep.subr.bf16.mxu0 0
        %2560 = vmatpush1.bf16.msra.mxu0 0
        %2561 = vmatprep.subr.bf16.mxu0 0
        %2562 = vmatpush1.bf16.msra.mxu0 0
        %2563 = vmatprep.subr.bf16.mxu0 0
        %2564 = vmatpush1.bf16.msra.mxu0 0
        %2565 = vmatprep.subr.bf16.mxu0 0
        %2566 = vmatpush1.bf16.msra.mxu0 0
        %2567 = vmatprep.subr.bf16.mxu0 0
        %2568 = vmatpush1.bf16.msra.mxu0 0
        %2569 = vmatprep.subr.bf16.mxu0 0
        %2570 = vmatpush1.bf16.msra.mxu0 0
        %2571 = vmatprep.subr.bf16.mxu0 0
        %2572 = vmatpush1.bf16.msra.mxu0 0
        %2573 = vmatprep.subr.bf16.mxu0 0
        %2574 = vmatpush1.bf16.msra.mxu0 0
        %2575 = vmatprep.subr.bf16.mxu0 0
        %2576 = vmatpush1.bf16.msra.mxu0 0
        %2577 = vmatprep.subr.bf16.mxu0 0
        %2578 = vmatpush1.bf16.msra.mxu0 0
        %2579 = vmatprep.subr.bf16.mxu0 0
        %2580 = vmatpush1.bf16.msra.mxu0 0
        %2581 = vmatprep.subr.bf16.mxu0 0
        %2582 = vmatpush1.bf16.msra.mxu0 0
        %2583 = vmatprep.subr.bf16.mxu0 0
        %2584 = vmatpush1.bf16.msra.mxu0 0
        %2585 = vmatprep.mubr.bf16.mxu0 0
        %2586 = vmatmul.mubr.bf16.gmra.mrb[0].mxu0 %v2458
        %v2587 = vpop.f32.mrb[0].mxu0
        %v2588 = vadd.f32 0.0, %v2587
        %v2589 = vpop.f32.mrb[0].mxu0
        %v2590 = vpop.f32.mrb[0].mxu0
        %v2591 = vadd.f32 0.0, %v2590
        %v2592 = vpop.f32.mrb[0].mxu0
        %2593 = vmatprep.mubr.bf16.mxu0 0
        %2594 = vmatmul.mubr.bf16.gmra.mrb[0].mxu0 %v2461
        %v2595 = vpop.f32.mrb[0].mxu0
        %v2596 = vadd.f32 0.0, %v2595
        %v2597 = vpop.f32.mrb[0].mxu0
        %v2598 = vpop.f32.mrb[0].mxu0
        %v2599 = vadd.f32 0.0, %v2598
        %v2600 = vpop.f32.mrb[0].mxu0
        %2601 = vmatprep.mubr.bf16.mxu0 0
        %2602 = vmatmul.mubr.bf16.gmra.mrb[0].mxu0 %v2464
        %v2603 = vpop.f32.mrb[0].mxu0
        %v2604 = vadd.f32 0.0, %v2603
        %v2605 = vpop.f32.mrb[0].mxu0
        %v2606 = vpop.f32.mrb[0].mxu0
        %v2607 = vadd.f32 0.0, %v2606
        %v2608 = vpop.f32.mrb[0].mxu0
        %2609 = vmatprep.mubr.bf16.mxu0 0
        %2610 = vmatmul.mubr.bf16.gmra.mrb[0].mxu0 %v2467
        %v2611 = vpop.f32.mrb[0].mxu0
        %v2612 = vadd.f32 0.0, %v2611
        %v2613 = vpop.f32.mrb[0].mxu0
        %v2614 = vpop.f32.mrb[0].mxu0
        %v2615 = vadd.f32 0.0, %v2614
        %v2616 = vpop.f32.mrb[0].mxu0
        %2617 = vmatprep.mubr.bf16.mxu0 0
        %2618 = vmatmul.mubr.bf16.gmra.mrb[0].mxu0 %v2470
        %v2619 = vpop.f32.mrb[0].mxu0
        %v2620 = vadd.f32 0.0, %v2619
        %v2621 = vpop.f32.mrb[0].mxu0
        %v2622 = vpop.f32.mrb[0].mxu0
        %v2623 = vadd.f32 0.0, %v2622
        %v2624 = vpop.f32.mrb[0].mxu0
        %2625 = vmatprep.mubr.bf16.mxu0 0
        %2626 = vmatmul.mubr.bf16.gmra.mrb[0].mxu0 %v2473
        %v2627 = vpop.f32.mrb[0].mxu0
        %v2628 = vadd.f32 0.0, %v2627
        %v2629 = vpop.f32.mrb[0].mxu0
        %v2630 = vpop.f32.mrb[0].mxu0
        %v2631 = vadd.f32 0.0, %v2630
        %v2632 = vpop.f32.mrb[0].mxu0
        %2633 = vmatprep.mubr.bf16.mxu0 0
        %2634 = vmatmul.mubr.bf16.gmra.mrb[0].mxu0 %v2476
        %v2635 = vpop.f32.mrb[0].mxu0
        %v2636 = vadd.f32 0.0, %v2635
        %v2637 = vpop.f32.mrb[0].mxu0
        %v2638 = vpop.f32.mrb[0].mxu0
        %v2639 = vadd.f32 0.0, %v2638
        %v2640 = vpop.f32.mrb[0].mxu0
        %2641 = vmatprep.mubr.bf16.mxu0 0
        %2642 = vmatmul.mubr.bf16.gmra.mrb[0].mxu0 %v2479
        %v2643 = vpop.f32.mrb[0].mxu0
        %v2644 = vadd.f32 0.0, %v2643
        %v2645 = vpop.f32.mrb[0].mxu0
        %v2646 = vpop.f32.mrb[0].mxu0
        %v2647 = vadd.f32 0.0, %v2646
        %v2648 = vpop.f32.mrb[0].mxu0
        %2649 = vmatprep.mubr.bf16.mxu0 0
        %2650 = vmatmul.mubr.bf16.gmra.mrb[0].mxu0 %v2482
        %v2651 = vpop.f32.mrb[0].mxu0
        %v2652 = vadd.f32 0.0, %v2651
        %v2653 = vpop.f32.mrb[0].mxu0
        %v2654 = vpop.f32.mrb[0].mxu0
        %v2655 = vadd.f32 0.0, %v2654
        %v2656 = vpop.f32.mrb[0].mxu0
        %2657 = vmatprep.mubr.bf16.mxu0 0
        %2658 = vmatmul.mubr.bf16.gmra.mrb[0].mxu0 %v2485
        %v2659 = vpop.f32.mrb[0].mxu0
        %v2660 = vadd.f32 0.0, %v2659
        %v2661 = vpop.f32.mrb[0].mxu0
        %v2662 = vpop.f32.mrb[0].mxu0
        %v2663 = vadd.f32 0.0, %v2662
        %v2664 = vpop.f32.mrb[0].mxu0
        %2665 = vmatprep.mubr.bf16.mxu0 0
        %2666 = vmatmul.mubr.bf16.gmra.mrb[0].mxu0 %v2488
        %v2667 = vpop.f32.mrb[0].mxu0
        %v2668 = vadd.f32 0.0, %v2667
        %v2669 = vpop.f32.mrb[0].mxu0
        %v2670 = vpop.f32.mrb[0].mxu0
        %v2671 = vadd.f32 0.0, %v2670
        %v2672 = vpop.f32.mrb[0].mxu0
        %2673 = vmatprep.mubr.bf16.mxu0 0
        %2674 = vmatmul.mubr.bf16.gmra.mrb[0].mxu0 %v2491
        %v2675 = vpop.f32.mrb[0].mxu0
        %v2676 = vadd.f32 0.0, %v2675
        %v2677 = vpop.f32.mrb[0].mxu0
        %v2678 = vpop.f32.mrb[0].mxu0
        %v2679 = vadd.f32 0.0, %v2678
        %v2680 = vpop.f32.mrb[0].mxu0
        %2681 = vmatprep.mubr.bf16.mxu0 0
        %2682 = vmatmul.mubr.bf16.gmra.mrb[0].mxu0 %v2494
        %v2683 = vpop.f32.mrb[0].mxu0
        %v2684 = vadd.f32 0.0, %v2683
        %v2685 = vpop.f32.mrb[0].mxu0
        %v2686 = vpop.f32.mrb[0].mxu0
        %v2687 = vadd.f32 0.0, %v2686
        %v2688 = vpop.f32.mrb[0].mxu0
        %2689 = vmatprep.mubr.bf16.mxu0 0
        %2690 = vmatmul.mubr.bf16.gmra.mrb[0].mxu0 %v2497
        %v2691 = vpop.f32.mrb[0].mxu0
        %v2692 = vadd.f32 0.0, %v2691
        %v2693 = vpop.f32.mrb[0].mxu0
        %v2694 = vpop.f32.mrb[0].mxu0
        %v2695 = vadd.f32 0.0, %v2694
        %v2696 = vpop.f32.mrb[0].mxu0
        %2697 = vmatprep.mubr.bf16.mxu0 0
        %2698 = vmatmul.mubr.bf16.gmra.mrb[0].mxu0 %v2500
        %v2699 = vpop.f32.mrb[0].mxu0
        %v2700 = vadd.f32 0.0, %v2699
        %v2701 = vpop.f32.mrb[0].mxu0
        %v2702 = vpop.f32.mrb[0].mxu0
        %v2703 = vadd.f32 0.0, %v2702
        %v2704 = vpop.f32.mrb[0].mxu0
        %2705 = vmatprep.mubr.bf16.mxu0 0
        %2706 = vmatmul.mubr.bf16.gmra.mrb[0].mxu0 %v2503
        %v2707 = vpop.f32.mrb[0].mxu0
        %v2708 = vadd.f32 0.0, %v2707
        %v2709 = vpop.f32.mrb[0].mxu0
        %v2710 = vpop.f32.mrb[0].mxu0
        %v2711 = vadd.f32 0.0, %v2710
        %v2712 = vpop.f32.mrb[0].mxu0
        %2713 = vmatprep.mubr.bf16.mxu0 0
        %2714 = vmatmul.mubr.bf16.gmra.mrb[0].mxu0 %v2506
        %v2715 = vpop.f32.mrb[0].mxu0
        %v2716 = vadd.f32 0.0, %v2715
        %v2717 = vpop.f32.mrb[0].mxu0
        %v2718 = vpop.f32.mrb[0].mxu0
        %v2719 = vadd.f32 0.0, %v2718
        %v2720 = vpop.f32.mrb[0].mxu0
        %2721 = vmatprep.mubr.bf16.mxu0 0
        %2722 = vmatmul.mubr.bf16.gmra.mrb[0].mxu0 %v2509
        %v2723 = vpop.f32.mrb[0].mxu0
        %v2724 = vadd.f32 0.0, %v2723
        %v2725 = vpop.f32.mrb[0].mxu0
        %v2726 = vpop.f32.mrb[0].mxu0
        %v2727 = vadd.f32 0.0, %v2726
        %v2728 = vpop.f32.mrb[0].mxu0
        %2729 = vmatprep.mubr.bf16.mxu0 0
        %2730 = vmatmul.mubr.bf16.gmra.mrb[0].mxu0 %v2512
        %v2731 = vpop.f32.mrb[0].mxu0
        %v2732 = vadd.f32 0.0, %v2731
        %v2733 = vpop.f32.mrb[0].mxu0
        %v2734 = vpop.f32.mrb[0].mxu0
        %v2735 = vadd.f32 0.0, %v2734
        %v2736 = vpop.f32.mrb[0].mxu0
        %2737 = vmatprep.mubr.bf16.mxu0 0
        %2738 = vmatmul.mubr.bf16.gmra.mrb[0].mxu0 %v2515
        %v2739 = vpop.f32.mrb[0].mxu0
        %v2740 = vadd.f32 0.0, %v2739
        %v2741 = vpop.f32.mrb[0].mxu0
        %v2742 = vpop.f32.mrb[0].mxu0
        %v2743 = vadd.f32 0.0, %v2742
        %v2744 = vpop.f32.mrb[0].mxu0
        %2745 = vmatprep.mubr.bf16.mxu0 0
        %2746 = vmatmul.mubr.bf16.gmra.mrb[0].mxu0 %v2518
        %v2747 = vpop.f32.mrb[0].mxu0
        %v2748 = vadd.f32 0.0, %v2747
        %v2749 = vpop.f32.mrb[0].mxu0
        %v2750 = vpop.f32.mrb[0].mxu0
        %v2751 = vadd.f32 0.0, %v2750
        %v2752 = vpop.f32.mrb[0].mxu0
        %2753 = vmatprep.mubr.bf16.mxu0 0
        %2754 = vmatmul.mubr.bf16.gmra.mrb[0].mxu0 %v2521
        %v2755 = vpop.f32.mrb[0].mxu0
        %v2756 = vadd.f32 0.0, %v2755
        %v2757 = vpop.f32.mrb[0].mxu0
        %v2758 = vpop.f32.mrb[0].mxu0
        %v2759 = vadd.f32 0.0, %v2758
        %v2760 = vpop.f32.mrb[0].mxu0
        %2761 = vmatprep.mubr.bf16.mxu0 0
        %2762 = vmatmul.mubr.bf16.gmra.mrb[0].mxu0 %v2524
        %v2763 = vpop.f32.mrb[0].mxu0
        %v2764 = vadd.f32 0.0, %v2763
        %v2765 = vpop.f32.mrb[0].mxu0
        %v2766 = vpop.f32.mrb[0].mxu0
        %v2767 = vadd.f32 0.0, %v2766
        %v2768 = vpop.f32.mrb[0].mxu0
        %2769 = vmatprep.mubr.bf16.mxu0 0
        %2770 = vmatmul.mubr.bf16.gmra.mrb[0].mxu0 %v2527
        %v2771 = vpop.f32.mrb[0].mxu0
        %v2772 = vadd.f32 0.0, %v2771
        %v2773 = vpop.f32.mrb[0].mxu0
        %v2774 = vpop.f32.mrb[0].mxu0
        %v2775 = vadd.f32 0.0, %v2774
        %v2776 = vpop.f32.mrb[0].mxu0
        %2777 = vmatprep.mubr.bf16.mxu0 0
        %2778 = vmatmul.mubr.bf16.gmra.mrb[0].mxu0 %v2530
        %v2779 = vpop.f32.mrb[0].mxu0
        %v2780 = vadd.f32 0.0, %v2779
        %v2781 = vpop.f32.mrb[0].mxu0
        %v2782 = vpop.f32.mrb[0].mxu0
        %v2783 = vadd.f32 0.0, %v2782
        %v2784 = vpop.f32.mrb[0].mxu0
        %2785 = vmatprep.mubr.bf16.mxu0 0
        %2786 = vmatmul.mubr.bf16.gmra.mrb[0].mxu0 %v2533
        %v2787 = vpop.f32.mrb[0].mxu0
        %v2788 = vadd.f32 0.0, %v2787
        %v2789 = vpop.f32.mrb[0].mxu0
        %v2790 = vpop.f32.mrb[0].mxu0
        %v2791 = vadd.f32 0.0, %v2790
        %v2792 = vpop.f32.mrb[0].mxu0
        %2793 = vmatprep.mubr.bf16.mxu0 0
        %2794 = vmatmul.mubr.bf16.gmra.mrb[0].mxu0 %v2536
        %v2795 = vpop.f32.mrb[0].mxu0
        %v2796 = vadd.f32 0.0, %v2795
        %v2797 = vpop.f32.mrb[0].mxu0
        %v2798 = vpop.f32.mrb[0].mxu0
        %v2799 = vadd.f32 0.0, %v2798
        %v2800 = vpop.f32.mrb[0].mxu0
        %2801 = vmatprep.mubr.bf16.mxu0 0
        %2802 = vmatmul.mubr.bf16.gmra.mrb[0].mxu0 %v2539
        %v2803 = vpop.f32.mrb[0].mxu0
        %v2804 = vadd.f32 0.0, %v2803
        %v2805 = vpop.f32.mrb[0].mxu0
        %v2806 = vpop.f32.mrb[0].mxu0
        %v2807 = vadd.f32 0.0, %v2806
        %v2808 = vpop.f32.mrb[0].mxu0
        %2809 = vmatprep.mubr.bf16.mxu0 0
        %2810 = vmatmul.mubr.bf16.gmra.mrb[0].mxu0 %v2542
        %v2811 = vpop.f32.mrb[0].mxu0
        %v2812 = vadd.f32 0.0, %v2811
        %v2813 = vpop.f32.mrb[0].mxu0
        %v2814 = vpop.f32.mrb[0].mxu0
        %v2815 = vadd.f32 0.0, %v2814
        %v2816 = vpop.f32.mrb[0].mxu0
        %2817 = vmatprep.mubr.bf16.mxu0 0
        %2818 = vmatmul.mubr.bf16.gmra.mrb[0].mxu0 %v2545
        %v2819 = vpop.f32.mrb[0].mxu0
        %v2820 = vadd.f32 0.0, %v2819
        %v2821 = vpop.f32.mrb[0].mxu0
        %v2822 = vpop.f32.mrb[0].mxu0
        %v2823 = vadd.f32 0.0, %v2822
        %v2824 = vpop.f32.mrb[0].mxu0
        %2825 = vmatprep.mubr.bf16.mxu0 0
        %2826 = vmatmul.mubr.bf16.gmra.mrb[0].mxu0 %v2548
        %v2827 = vpop.f32.mrb[0].mxu0
        %v2828 = vadd.f32 0.0, %v2827
        %v2829 = vpop.f32.mrb[0].mxu0
        %v2830 = vpop.f32.mrb[0].mxu0
        %v2831 = vadd.f32 0.0, %v2830
        %v2832 = vpop.f32.mrb[0].mxu0
        %2833 = vmatprep.mubr.bf16.mxu0 0
        %2834 = vmatmul.mubr.bf16.gmra.mrb[0].mxu0 %v2551
        %v2835 = vpop.f32.mrb[0].mxu0
        %v2836 = vadd.f32 0.0, %v2835
        %v2837 = vpop.f32.mrb[0].mxu0
        %v2838 = vpop.f32.mrb[0].mxu0
        %v2839 = vadd.f32 0.0, %v2838
        %v2840 = vpop.f32.mrb[0].mxu0
        %2841 = vdwg.mxu0
        %v2846 = vunpack.c.l.b16 %v2437
        %v2847 = vunpack.c.l.b16 %v2438
        %v2848 = vunpack.c.l.b16 %v2439
        %v2849 = vunpack.c.l.b16 %v2440
        %v2850 = vpack.c.b16 %v2847, %v2846
        %v2851 = vpack.c.b16 %v2849, %v2848
        %v2855 = vsel %vm1602, %v1988, 0
        %v2858 = vsel %vm1602, %v1989, 0
        %v2861 = vsel %vm1602, %v1990, 0
        %v2864 = vsel %vm1602, %v1991, 0
        %v2867 = vsel %vm1602, %v1992, 0
        %v2870 = vsel %vm1602, %v1993, 0
        %v2873 = vsel %vm1602, %v1994, 0
        %v2876 = vsel %vm1602, %v1995, 0
        %v2879 = vsel %vm1602, %v1996, 0
        %v2882 = vsel %vm1602, %v1997, 0
        %v2885 = vsel %vm1602, %v1998, 0
        %v2888 = vsel %vm1602, %v1999, 0
        %v2891 = vsel %vm1602, %v2000, 0
        %v2894 = vsel %vm1602, %v2001, 0
        %v2897 = vsel %vm1602, %v2002, 0
        %v2900 = vsel %vm1602, %v2003, 0
        %v2903 = vsel %vm1602, %v2004, 0
        %v2906 = vsel %vm1602, %v2005, 0
        %v2909 = vsel %vm1602, %v2006, 0
        %v2912 = vsel %vm1602, %v2007, 0
        %v2915 = vsel %vm1602, %v2008, 0
        %v2918 = vsel %vm1602, %v2009, 0
        %v2921 = vsel %vm1602, %v2010, 0
        %v2924 = vsel %vm1602, %v2011, 0
        %v2927 = vsel %vm1602, %v2012, 0
        %v2930 = vsel %vm1602, %v2013, 0
        %v2933 = vsel %vm1602, %v2014, 0
        %v2936 = vsel %vm1602, %v2015, 0
        %v2939 = vsel %vm1602, %v2016, 0
        %v2942 = vsel %vm1602, %v2017, 0
        %v2945 = vsel %vm1602, %v2018, 0
        %v2948 = vsel %vm1602, %v2019, 0
        %2950 = vmatprep.subr.bf16.mxu0 0
        %2951 = vmatpush1.bf16.msra.mxu0 %v2850
        %2952 = vmatprep.subr.bf16.mxu0 0
        %2953 = vmatpush1.bf16.msra.mxu0 %v2851
        %2954 = vmatprep.subr.bf16.mxu0 0
        %2955 = vmatpush1.bf16.msra.mxu0 0
        %2956 = vmatprep.subr.bf16.mxu0 0
        %2957 = vmatpush1.bf16.msra.mxu0 0
        %2958 = vmatprep.subr.bf16.mxu0 0
        %2959 = vmatpush1.bf16.msra.mxu0 0
        %2960 = vmatprep.subr.bf16.mxu0 0
        %2961 = vmatpush1.bf16.msra.mxu0 0
        %2962 = vmatprep.subr.bf16.mxu0 0
        %2963 = vmatpush1.bf16.msra.mxu0 0
        %2964 = vmatprep.subr.bf16.mxu0 0
        %2965 = vmatpush1.bf16.msra.mxu0 0
        %2966 = vmatprep.subr.bf16.mxu0 0
        %2967 = vmatpush1.bf16.msra.mxu0 0
        %2968 = vmatprep.subr.bf16.mxu0 0
        %2969 = vmatpush1.bf16.msra.mxu0 0
        %2970 = vmatprep.subr.bf16.mxu0 0
        %2971 = vmatpush1.bf16.msra.mxu0 0
        %2972 = vmatprep.subr.bf16.mxu0 0
        %2973 = vmatpush1.bf16.msra.mxu0 0
        %2974 = vmatprep.subr.bf16.mxu0 0
        %2975 = vmatpush1.bf16.msra.mxu0 0
        %2976 = vmatprep.subr.bf16.mxu0 0
        %2977 = vmatpush1.bf16.msra.mxu0 0
        %2978 = vmatprep.subr.bf16.mxu0 0
        %2979 = vmatpush1.bf16.msra.mxu0 0
        %2980 = vmatprep.subr.bf16.mxu0 0
        %2981 = vmatpush1.bf16.msra.mxu0 0
        %2982 = vmatprep.mubr.bf16.mxu0 0
        %2983 = vmatmul.mubr.bf16.gmra.mrb[0].mxu0 %v2855
        %v2984 = vpop.f32.mrb[0].mxu0
        %v2985 = vadd.f32 %v2588, %v2984
        %v2986 = vpop.f32.mrb[0].mxu0
        %v2987 = vpop.f32.mrb[0].mxu0
        %v2988 = vadd.f32 %v2591, %v2987
        %v2989 = vpop.f32.mrb[0].mxu0
        %2990 = vmatprep.mubr.bf16.mxu0 0
        %2991 = vmatmul.mubr.bf16.gmra.mrb[0].mxu0 %v2858
        %v2992 = vpop.f32.mrb[0].mxu0
        %v2993 = vadd.f32 %v2596, %v2992
        %v2994 = vpop.f32.mrb[0].mxu0
        %v2995 = vpop.f32.mrb[0].mxu0
        %v2996 = vadd.f32 %v2599, %v2995
        %v2997 = vpop.f32.mrb[0].mxu0
        %2998 = vmatprep.mubr.bf16.mxu0 0
        %2999 = vmatmul.mubr.bf16.gmra.mrb[0].mxu0 %v2861
        %v3000 = vpop.f32.mrb[0].mxu0
        %v3001 = vadd.f32 %v2604, %v3000
        %v3002 = vpop.f32.mrb[0].mxu0
        %v3003 = vpop.f32.mrb[0].mxu0
        %v3004 = vadd.f32 %v2607, %v3003
        %v3005 = vpop.f32.mrb[0].mxu0
        %3006 = vmatprep.mubr.bf16.mxu0 0
        %3007 = vmatmul.mubr.bf16.gmra.mrb[0].mxu0 %v2864
        %v3008 = vpop.f32.mrb[0].mxu0
        %v3009 = vadd.f32 %v2612, %v3008
        %v3010 = vpop.f32.mrb[0].mxu0
        %v3011 = vpop.f32.mrb[0].mxu0
        %v3012 = vadd.f32 %v2615, %v3011
        %v3013 = vpop.f32.mrb[0].mxu0
        %3014 = vmatprep.mubr.bf16.mxu0 0
        %3015 = vmatmul.mubr.bf16.gmra.mrb[0].mxu0 %v2867
        %v3016 = vpop.f32.mrb[0].mxu0
        %v3017 = vadd.f32 %v2620, %v3016
        %v3018 = vpop.f32.mrb[0].mxu0
        %v3019 = vpop.f32.mrb[0].mxu0
        %v3020 = vadd.f32 %v2623, %v3019
        %v3021 = vpop.f32.mrb[0].mxu0
        %3022 = vmatprep.mubr.bf16.mxu0 0
        %3023 = vmatmul.mubr.bf16.gmra.mrb[0].mxu0 %v2870
        %v3024 = vpop.f32.mrb[0].mxu0
        %v3025 = vadd.f32 %v2628, %v3024
        %v3026 = vpop.f32.mrb[0].mxu0
        %v3027 = vpop.f32.mrb[0].mxu0
        %v3028 = vadd.f32 %v2631, %v3027
        %v3029 = vpop.f32.mrb[0].mxu0
        %3030 = vmatprep.mubr.bf16.mxu0 0
        %3031 = vmatmul.mubr.bf16.gmra.mrb[0].mxu0 %v2873
        %v3032 = vpop.f32.mrb[0].mxu0
        %v3033 = vadd.f32 %v2636, %v3032
        %v3034 = vpop.f32.mrb[0].mxu0
        %v3035 = vpop.f32.mrb[0].mxu0
        %v3036 = vadd.f32 %v2639, %v3035
        %v3037 = vpop.f32.mrb[0].mxu0
        %3038 = vmatprep.mubr.bf16.mxu0 0
        %3039 = vmatmul.mubr.bf16.gmra.mrb[0].mxu0 %v2876
        %v3040 = vpop.f32.mrb[0].mxu0
        %v3041 = vadd.f32 %v2644, %v3040
        %v3042 = vpop.f32.mrb[0].mxu0
        %v3043 = vpop.f32.mrb[0].mxu0
        %v3044 = vadd.f32 %v2647, %v3043
        %v3045 = vpop.f32.mrb[0].mxu0
        %3046 = vmatprep.mubr.bf16.mxu0 0
        %3047 = vmatmul.mubr.bf16.gmra.mrb[0].mxu0 %v2879
        %v3048 = vpop.f32.mrb[0].mxu0
        %v3049 = vadd.f32 %v2652, %v3048
        %v3050 = vpop.f32.mrb[0].mxu0
        %v3051 = vpop.f32.mrb[0].mxu0
        %v3052 = vadd.f32 %v2655, %v3051
        %v3053 = vpop.f32.mrb[0].mxu0
        %3054 = vmatprep.mubr.bf16.mxu0 0
        %3055 = vmatmul.mubr.bf16.gmra.mrb[0].mxu0 %v2882
        %v3056 = vpop.f32.mrb[0].mxu0
        %v3057 = vadd.f32 %v2660, %v3056
        %v3058 = vpop.f32.mrb[0].mxu0
        %v3059 = vpop.f32.mrb[0].mxu0
        %v3060 = vadd.f32 %v2663, %v3059
        %v3061 = vpop.f32.mrb[0].mxu0
        %3062 = vmatprep.mubr.bf16.mxu0 0
        %3063 = vmatmul.mubr.bf16.gmra.mrb[0].mxu0 %v2885
        %v3064 = vpop.f32.mrb[0].mxu0
        %v3065 = vadd.f32 %v2668, %v3064
        %v3066 = vpop.f32.mrb[0].mxu0
        %v3067 = vpop.f32.mrb[0].mxu0
        %v3068 = vadd.f32 %v2671, %v3067
        %v3069 = vpop.f32.mrb[0].mxu0
        %3070 = vmatprep.mubr.bf16.mxu0 0
        %3071 = vmatmul.mubr.bf16.gmra.mrb[0].mxu0 %v2888
        %v3072 = vpop.f32.mrb[0].mxu0
        %v3073 = vadd.f32 %v2676, %v3072
        %v3074 = vpop.f32.mrb[0].mxu0
        %v3075 = vpop.f32.mrb[0].mxu0
        %v3076 = vadd.f32 %v2679, %v3075
        %v3077 = vpop.f32.mrb[0].mxu0
        %3078 = vmatprep.mubr.bf16.mxu0 0
        %3079 = vmatmul.mubr.bf16.gmra.mrb[0].mxu0 %v2891
        %v3080 = vpop.f32.mrb[0].mxu0
        %v3081 = vadd.f32 %v2684, %v3080
        %v3082 = vpop.f32.mrb[0].mxu0
        %v3083 = vpop.f32.mrb[0].mxu0
        %v3084 = vadd.f32 %v2687, %v3083
        %v3085 = vpop.f32.mrb[0].mxu0
        %3086 = vmatprep.mubr.bf16.mxu0 0
        %3087 = vmatmul.mubr.bf16.gmra.mrb[0].mxu0 %v2894
        %v3088 = vpop.f32.mrb[0].mxu0
        %v3089 = vadd.f32 %v2692, %v3088
        %v3090 = vpop.f32.mrb[0].mxu0
        %v3091 = vpop.f32.mrb[0].mxu0
        %v3092 = vadd.f32 %v2695, %v3091
        %v3093 = vpop.f32.mrb[0].mxu0
        %3094 = vmatprep.mubr.bf16.mxu0 0
        %3095 = vmatmul.mubr.bf16.gmra.mrb[0].mxu0 %v2897
        %v3096 = vpop.f32.mrb[0].mxu0
        %v3097 = vadd.f32 %v2700, %v3096
        %v3098 = vpop.f32.mrb[0].mxu0
        %v3099 = vpop.f32.mrb[0].mxu0
        %v3100 = vadd.f32 %v2703, %v3099
        %v3101 = vpop.f32.mrb[0].mxu0
        %3102 = vmatprep.mubr.bf16.mxu0 0
        %3103 = vmatmul.mubr.bf16.gmra.mrb[0].mxu0 %v2900
        %v3104 = vpop.f32.mrb[0].mxu0
        %v3105 = vadd.f32 %v2708, %v3104
        %v3106 = vpop.f32.mrb[0].mxu0
        %v3107 = vpop.f32.mrb[0].mxu0
        %v3108 = vadd.f32 %v2711, %v3107
        %v3109 = vpop.f32.mrb[0].mxu0
        %3110 = vmatprep.mubr.bf16.mxu0 0
        %3111 = vmatmul.mubr.bf16.gmra.mrb[0].mxu0 %v2903
        %v3112 = vpop.f32.mrb[0].mxu0
        %v3113 = vadd.f32 %v2716, %v3112
        %v3114 = vpop.f32.mrb[0].mxu0
        %v3115 = vpop.f32.mrb[0].mxu0
        %v3116 = vadd.f32 %v2719, %v3115
        %v3117 = vpop.f32.mrb[0].mxu0
        %3118 = vmatprep.mubr.bf16.mxu0 0
        %3119 = vmatmul.mubr.bf16.gmra.mrb[0].mxu0 %v2906
        %v3120 = vpop.f32.mrb[0].mxu0
        %v3121 = vadd.f32 %v2724, %v3120
        %v3122 = vpop.f32.mrb[0].mxu0
        %v3123 = vpop.f32.mrb[0].mxu0
        %v3124 = vadd.f32 %v2727, %v3123
        %v3125 = vpop.f32.mrb[0].mxu0
        %3126 = vmatprep.mubr.bf16.mxu0 0
        %3127 = vmatmul.mubr.bf16.gmra.mrb[0].mxu0 %v2909
        %v3128 = vpop.f32.mrb[0].mxu0
        %v3129 = vadd.f32 %v2732, %v3128
        %v3130 = vpop.f32.mrb[0].mxu0
        %v3131 = vpop.f32.mrb[0].mxu0
        %v3132 = vadd.f32 %v2735, %v3131
        %v3133 = vpop.f32.mrb[0].mxu0
        %3134 = vmatprep.mubr.bf16.mxu0 0
        %3135 = vmatmul.mubr.bf16.gmra.mrb[0].mxu0 %v2912
        %v3136 = vpop.f32.mrb[0].mxu0
        %v3137 = vadd.f32 %v2740, %v3136
        %v3138 = vpop.f32.mrb[0].mxu0
        %v3139 = vpop.f32.mrb[0].mxu0
        %v3140 = vadd.f32 %v2743, %v3139
        %v3141 = vpop.f32.mrb[0].mxu0
        %3142 = vmatprep.mubr.bf16.mxu0 0
        %3143 = vmatmul.mubr.bf16.gmra.mrb[0].mxu0 %v2915
        %v3144 = vpop.f32.mrb[0].mxu0
        %v3145 = vadd.f32 %v2748, %v3144
        %v3146 = vpop.f32.mrb[0].mxu0
        %v3147 = vpop.f32.mrb[0].mxu0
        %v3148 = vadd.f32 %v2751, %v3147
        %v3149 = vpop.f32.mrb[0].mxu0
        %3150 = vmatprep.mubr.bf16.mxu0 0
        %3151 = vmatmul.mubr.bf16.gmra.mrb[0].mxu0 %v2918
        %v3152 = vpop.f32.mrb[0].mxu0
        %v3153 = vadd.f32 %v2756, %v3152
        %v3154 = vpop.f32.mrb[0].mxu0
        %v3155 = vpop.f32.mrb[0].mxu0
        %v3156 = vadd.f32 %v2759, %v3155
        %v3157 = vpop.f32.mrb[0].mxu0
        %3158 = vmatprep.mubr.bf16.mxu0 0
        %3159 = vmatmul.mubr.bf16.gmra.mrb[0].mxu0 %v2921
        %v3160 = vpop.f32.mrb[0].mxu0
        %v3161 = vadd.f32 %v2764, %v3160
        %v3162 = vpop.f32.mrb[0].mxu0
        %v3163 = vpop.f32.mrb[0].mxu0
        %v3164 = vadd.f32 %v2767, %v3163
        %v3165 = vpop.f32.mrb[0].mxu0
        %3166 = vmatprep.mubr.bf16.mxu0 0
        %3167 = vmatmul.mubr.bf16.gmra.mrb[0].mxu0 %v2924
        %v3168 = vpop.f32.mrb[0].mxu0
        %v3169 = vadd.f32 %v2772, %v3168
        %v3170 = vpop.f32.mrb[0].mxu0
        %v3171 = vpop.f32.mrb[0].mxu0
        %v3172 = vadd.f32 %v2775, %v3171
        %v3173 = vpop.f32.mrb[0].mxu0
        %3174 = vmatprep.mubr.bf16.mxu0 0
        %3175 = vmatmul.mubr.bf16.gmra.mrb[0].mxu0 %v2927
        %v3176 = vpop.f32.mrb[0].mxu0
        %v3177 = vadd.f32 %v2780, %v3176
        %v3178 = vpop.f32.mrb[0].mxu0
        %v3179 = vpop.f32.mrb[0].mxu0
        %v3180 = vadd.f32 %v2783, %v3179
        %v3181 = vpop.f32.mrb[0].mxu0
        %3182 = vmatprep.mubr.bf16.mxu0 0
        %3183 = vmatmul.mubr.bf16.gmra.mrb[0].mxu0 %v2930
        %v3184 = vpop.f32.mrb[0].mxu0
        %v3185 = vadd.f32 %v2788, %v3184
        %v3186 = vpop.f32.mrb[0].mxu0
        %v3187 = vpop.f32.mrb[0].mxu0
        %v3188 = vadd.f32 %v2791, %v3187
        %v3189 = vpop.f32.mrb[0].mxu0
        %3190 = vmatprep.mubr.bf16.mxu0 0
        %3191 = vmatmul.mubr.bf16.gmra.mrb[0].mxu0 %v2933
        %v3192 = vpop.f32.mrb[0].mxu0
        %v3193 = vadd.f32 %v2796, %v3192
        %v3194 = vpop.f32.mrb[0].mxu0
        %v3195 = vpop.f32.mrb[0].mxu0
        %v3196 = vadd.f32 %v2799, %v3195
        %v3197 = vpop.f32.mrb[0].mxu0
        %3198 = vmatprep.mubr.bf16.mxu0 0
        %3199 = vmatmul.mubr.bf16.gmra.mrb[0].mxu0 %v2936
        %v3200 = vpop.f32.mrb[0].mxu0
        %v3201 = vadd.f32 %v2804, %v3200
        %v3202 = vpop.f32.mrb[0].mxu0
        %v3203 = vpop.f32.mrb[0].mxu0
        %v3204 = vadd.f32 %v2807, %v3203
        %v3205 = vpop.f32.mrb[0].mxu0
        %3206 = vmatprep.mubr.bf16.mxu0 0
        %3207 = vmatmul.mubr.bf16.gmra.mrb[0].mxu0 %v2939
        %v3208 = vpop.f32.mrb[0].mxu0
        %v3209 = vadd.f32 %v2812, %v3208
        %v3210 = vpop.f32.mrb[0].mxu0
        %v3211 = vpop.f32.mrb[0].mxu0
        %v3212 = vadd.f32 %v2815, %v3211
        %v3213 = vpop.f32.mrb[0].mxu0
        %3214 = vmatprep.mubr.bf16.mxu0 0
        %3215 = vmatmul.mubr.bf16.gmra.mrb[0].mxu0 %v2942
        %v3216 = vpop.f32.mrb[0].mxu0
        %v3217 = vadd.f32 %v2820, %v3216
        %v3218 = vpop.f32.mrb[0].mxu0
        %v3219 = vpop.f32.mrb[0].mxu0
        %v3220 = vadd.f32 %v2823, %v3219
        %v3221 = vpop.f32.mrb[0].mxu0
        %3222 = vmatprep.mubr.bf16.mxu0 0
        %3223 = vmatmul.mubr.bf16.gmra.mrb[0].mxu0 %v2945
        %v3224 = vpop.f32.mrb[0].mxu0
        %v3225 = vadd.f32 %v2828, %v3224
        %v3226 = vpop.f32.mrb[0].mxu0
        %v3227 = vpop.f32.mrb[0].mxu0
        %v3228 = vadd.f32 %v2831, %v3227
        %v3229 = vpop.f32.mrb[0].mxu0
        %3230 = vmatprep.mubr.bf16.mxu0 0
        %3231 = vmatmul.mubr.bf16.gmra.mrb[0].mxu0 %v2948
        %v3232 = vpop.f32.mrb[0].mxu0
        %v3233 = vadd.f32 %v2836, %v3232
        %v3234 = vpop.f32.mrb[0].mxu0
        %v3235 = vpop.f32.mrb[0].mxu0
        %v3236 = vadd.f32 %v2839, %v3235
        %v3237 = vpop.f32.mrb[0].mxu0
        %3238 = vdwg.mxu0
        %v3239 = vld [vmem:[%s606] sm:$0xf]
        %v3240 = vld [vmem:[%s606 + $0x4] sm:$0xf]
        %v3241 = vld [vmem:[%s606 + $0x8] sm:$0xf]
        %v3242 = vld [vmem:[%s606 + $0xc] sm:$0xf]
        %v3243 = vld [vmem:[%s606 + $0x10] sm:$0xf]
        %v3244 = vld [vmem:[%s606 + $0x14] sm:$0xf]
        %v3245 = vld [vmem:[%s606 + $0x18] sm:$0xf]
        %v3246 = vld [vmem:[%s606 + $0x1c] sm:$0xf]
        %v3247 = vld [vmem:[%s606 + $0x20] sm:$0xf]
        %v3248 = vld [vmem:[%s606 + $0x24] sm:$0xf]
        %v3249 = vld [vmem:[%s606 + $0x28] sm:$0xf]
        %v3250 = vld [vmem:[%s606 + $0x2c] sm:$0xf]
        %v3251 = vld [vmem:[%s606 + $0x30] sm:$0xf]
        %v3252 = vld [vmem:[%s606 + $0x34] sm:$0xf]
        %v3253 = vld [vmem:[%s606 + $0x38] sm:$0xf]
        %v3254 = vld [vmem:[%s606 + $0x3c] sm:$0xf]
        %v3255 = vld [vmem:[%s606 + $0x40] sm:$0xf]
        %v3256 = vld [vmem:[%s606 + $0x44] sm:$0xf]
        %v3257 = vld [vmem:[%s606 + $0x48] sm:$0xf]
        %v3258 = vld [vmem:[%s606 + $0x4c] sm:$0xf]
        %v3259 = vld [vmem:[%s606 + $0x50] sm:$0xf]
        %v3260 = vld [vmem:[%s606 + $0x54] sm:$0xf]
        %v3261 = vld [vmem:[%s606 + $0x58] sm:$0xf]
        %v3262 = vld [vmem:[%s606 + $0x5c] sm:$0xf]
        %v3263 = vld [vmem:[%s606 + $0x60] sm:$0xf]
        %v3264 = vld [vmem:[%s606 + $0x64] sm:$0xf]
        %v3265 = vld [vmem:[%s606 + $0x68] sm:$0xf]
        %v3266 = vld [vmem:[%s606 + $0x6c] sm:$0xf]
        %v3267 = vld [vmem:[%s606 + $0x70] sm:$0xf]
        %v3268 = vld [vmem:[%s606 + $0x74] sm:$0xf]
        %v3269 = vld [vmem:[%s606 + $0x78] sm:$0xf]
        %v3270 = vld [vmem:[%s606 + $0x7c] sm:$0xf]
        %v3271 = vld [vmem:[%s606 + $0x80] sm:$0xf]
        %v3272 = vld [vmem:[%s606 + $0x84] sm:$0xf]
        %v3273 = vld [vmem:[%s606 + $0x88] sm:$0xf]
        %v3274 = vld [vmem:[%s606 + $0x8c] sm:$0xf]
        %v3275 = vld [vmem:[%s606 + $0x90] sm:$0xf]
        %v3276 = vld [vmem:[%s606 + $0x94] sm:$0xf]
        %v3277 = vld [vmem:[%s606 + $0x98] sm:$0xf]
        %v3278 = vld [vmem:[%s606 + $0x9c] sm:$0xf]
        %v3279 = vld [vmem:[%s606 + $0xa0] sm:$0xf]
        %v3280 = vld [vmem:[%s606 + $0xa4] sm:$0xf]
        %v3281 = vld [vmem:[%s606 + $0xa8] sm:$0xf]
        %v3282 = vld [vmem:[%s606 + $0xac] sm:$0xf]
        %v3283 = vld [vmem:[%s606 + $0xb0] sm:$0xf]
        %v3284 = vld [vmem:[%s606 + $0xb4] sm:$0xf]
        %v3285 = vld [vmem:[%s606 + $0xb8] sm:$0xf]
        %v3286 = vld [vmem:[%s606 + $0xbc] sm:$0xf]
        %v3287 = vld [vmem:[%s606 + $0xc0] sm:$0xf]
        %v3288 = vld [vmem:[%s606 + $0xc4] sm:$0xf]
        %v3289 = vld [vmem:[%s606 + $0xc8] sm:$0xf]
        %v3290 = vld [vmem:[%s606 + $0xcc] sm:$0xf]
        %v3291 = vld [vmem:[%s606 + $0xd0] sm:$0xf]
        %v3292 = vld [vmem:[%s606 + $0xd4] sm:$0xf]
        %v3293 = vld [vmem:[%s606 + $0xd8] sm:$0xf]
        %v3294 = vld [vmem:[%s606 + $0xdc] sm:$0xf]
        %v3295 = vld [vmem:[%s606 + $0xe0] sm:$0xf]
        %v3296 = vld [vmem:[%s606 + $0xe4] sm:$0xf]
        %v3297 = vld [vmem:[%s606 + $0xe8] sm:$0xf]
        %v3298 = vld [vmem:[%s606 + $0xec] sm:$0xf]
        %v3299 = vld [vmem:[%s606 + $0xf0] sm:$0xf]
        %v3300 = vld [vmem:[%s606 + $0xf4] sm:$0xf]
        %v3301 = vld [vmem:[%s606 + $0xf8] sm:$0xf]
        %v3302 = vld [vmem:[%s606 + $0xfc] sm:$0xf]
        %v3303 = vld [vmem:[%s7] sm:$0x3]
        %v3368 = vunpack.c.l.b16 %v3239
        %v3369 = vunpack.c.l.b16 %v3240
        %v3370 = vunpack.c.l.b16 %v3241
        %v3371 = vunpack.c.l.b16 %v3242
        %v3372 = vunpack.c.l.b16 %v3243
        %v3373 = vunpack.c.l.b16 %v3244
        %v3374 = vunpack.c.l.b16 %v3245
        %v3375 = vunpack.c.l.b16 %v3246
        %v3376 = vunpack.c.l.b16 %v3247
        %v3377 = vunpack.c.l.b16 %v3248
        %v3378 = vunpack.c.l.b16 %v3249
        %v3379 = vunpack.c.l.b16 %v3250
        %v3380 = vunpack.c.l.b16 %v3251
        %v3381 = vunpack.c.l.b16 %v3252
        %v3382 = vunpack.c.l.b16 %v3253
        %v3383 = vunpack.c.l.b16 %v3254
        %v3384 = vunpack.c.l.b16 %v3255
        %v3385 = vunpack.c.l.b16 %v3256
        %v3386 = vunpack.c.l.b16 %v3257
        %v3387 = vunpack.c.l.b16 %v3258
        %v3388 = vunpack.c.l.b16 %v3259
        %v3389 = vunpack.c.l.b16 %v3260
        %v3390 = vunpack.c.l.b16 %v3261
        %v3391 = vunpack.c.l.b16 %v3262
        %v3392 = vunpack.c.l.b16 %v3263
        %v3393 = vunpack.c.l.b16 %v3264
        %v3394 = vunpack.c.l.b16 %v3265
        %v3395 = vunpack.c.l.b16 %v3266
        %v3396 = vunpack.c.l.b16 %v3267
        %v3397 = vunpack.c.l.b16 %v3268
        %v3398 = vunpack.c.l.b16 %v3269
        %v3399 = vunpack.c.l.b16 %v3270
        %v3400 = vunpack.c.l.b16 %v3271
        %v3401 = vunpack.c.l.b16 %v3272
        %v3402 = vunpack.c.l.b16 %v3273
        %v3403 = vunpack.c.l.b16 %v3274
        %v3404 = vunpack.c.l.b16 %v3275
        %v3405 = vunpack.c.l.b16 %v3276
        %v3406 = vunpack.c.l.b16 %v3277
        %v3407 = vunpack.c.l.b16 %v3278
        %v3408 = vunpack.c.l.b16 %v3279
        %v3409 = vunpack.c.l.b16 %v3280
        %v3410 = vunpack.c.l.b16 %v3281
        %v3411 = vunpack.c.l.b16 %v3282
        %v3412 = vunpack.c.l.b16 %v3283
        %v3413 = vunpack.c.l.b16 %v3284
        %v3414 = vunpack.c.l.b16 %v3285
        %v3415 = vunpack.c.l.b16 %v3286
        %v3416 = vunpack.c.l.b16 %v3287
        %v3417 = vunpack.c.l.b16 %v3288
        %v3418 = vunpack.c.l.b16 %v3289
        %v3419 = vunpack.c.l.b16 %v3290
        %v3420 = vunpack.c.l.b16 %v3291
        %v3421 = vunpack.c.l.b16 %v3292
        %v3422 = vunpack.c.l.b16 %v3293
        %v3423 = vunpack.c.l.b16 %v3294
        %v3424 = vunpack.c.l.b16 %v3295
        %v3425 = vunpack.c.l.b16 %v3296
        %v3426 = vunpack.c.l.b16 %v3297
        %v3427 = vunpack.c.l.b16 %v3298
        %v3428 = vunpack.c.l.b16 %v3299
        %v3429 = vunpack.c.l.b16 %v3300
        %v3430 = vunpack.c.l.b16 %v3301
        %v3431 = vunpack.c.l.b16 %v3302
        %v3432 = vpack.c.b16 %v3369, %v3368
        %v3433 = vpack.c.b16 %v3371, %v3370
        %v3434 = vpack.c.b16 %v3373, %v3372
        %v3435 = vpack.c.b16 %v3375, %v3374
        %v3436 = vpack.c.b16 %v3377, %v3376
        %v3437 = vpack.c.b16 %v3379, %v3378
        %v3438 = vpack.c.b16 %v3381, %v3380
        %v3439 = vpack.c.b16 %v3383, %v3382
        %v3440 = vpack.c.b16 %v3385, %v3384
        %v3441 = vpack.c.b16 %v3387, %v3386
        %v3442 = vpack.c.b16 %v3389, %v3388
        %v3443 = vpack.c.b16 %v3391, %v3390
        %v3444 = vpack.c.b16 %v3393, %v3392
        %v3445 = vpack.c.b16 %v3395, %v3394
        %v3446 = vpack.c.b16 %v3397, %v3396
        %v3447 = vpack.c.b16 %v3399, %v3398
        %v3448 = vpack.c.b16 %v3401, %v3400
        %v3449 = vpack.c.b16 %v3403, %v3402
        %v3450 = vpack.c.b16 %v3405, %v3404
        %v3451 = vpack.c.b16 %v3407, %v3406
        %v3452 = vpack.c.b16 %v3409, %v3408
        %v3453 = vpack.c.b16 %v3411, %v3410
        %v3454 = vpack.c.b16 %v3413, %v3412
        %v3455 = vpack.c.b16 %v3415, %v3414
        %v3456 = vpack.c.b16 %v3417, %v3416
        %v3457 = vpack.c.b16 %v3419, %v3418
        %v3458 = vpack.c.b16 %v3421, %v3420
        %v3459 = vpack.c.b16 %v3423, %v3422
        %v3460 = vpack.c.b16 %v3425, %v3424
        %v3461 = vpack.c.b16 %v3427, %v3426
        %v3462 = vpack.c.b16 %v3429, %v3428
        %v3463 = vpack.c.b16 %v3431, %v3430
        %vm3464 = vcmask 31744
        %v3466 = vsel %vm3464, %v3432, 0
        %v3469 = vsel %vm3464, %v3433, 0
        %v3472 = vsel %vm3464, %v3434, 0
        %v3475 = vsel %vm3464, %v3435, 0
        %v3478 = vsel %vm3464, %v3436, 0
        %v3481 = vsel %vm3464, %v3437, 0
        %v3484 = vsel %vm3464, %v3438, 0
        %v3487 = vsel %vm3464, %v3439, 0
        %v3490 = vsel %vm3464, %v3440, 0
        %v3493 = vsel %vm3464, %v3441, 0
        %v3496 = vsel %vm3464, %v3442, 0
        %v3499 = vsel %vm3464, %v3443, 0
        %v3502 = vsel %vm3464, %v3444, 0
        %v3505 = vsel %vm3464, %v3445, 0
        %v3508 = vsel %vm3464, %v3446, 0
        %v3511 = vsel %vm3464, %v3447, 0
        %v3514 = vsel %vm3464, %v3448, 0
        %v3517 = vsel %vm3464, %v3449, 0
        %v3520 = vsel %vm3464, %v3450, 0
        %v3523 = vsel %vm3464, %v3451, 0
        %v3526 = vsel %vm3464, %v3452, 0
        %v3529 = vsel %vm3464, %v3453, 0
        %v3532 = vsel %vm3464, %v3454, 0
        %v3535 = vsel %vm3464, %v3455, 0
        %v3538 = vsel %vm3464, %v3456, 0
        %v3541 = vsel %vm3464, %v3457, 0
        %v3544 = vsel %vm3464, %v3458, 0
        %v3547 = vsel %vm3464, %v3459, 0
        %v3550 = vsel %vm3464, %v3460, 0
        %v3553 = vsel %vm3464, %v3461, 0
        %v3556 = vsel %vm3464, %v3462, 0
        %v3559 = vsel %vm3464, %v3463, 0
        %vm3561 = vcmask 1041408
        %v3563 = vsel %vm3561, %v3303, 0
        %3565 = vmatprep.subr.bf16.mxu0 0
        %3566 = vmatpush1.bf16.msra.mxu0 %v3563
        %3567 = vmatprep.subr.bf16.mxu0 0
        %3568 = vmatpush1.bf16.msra.mxu0 0
        %3569 = vmatprep.subr.bf16.mxu0 0
        %3570 = vmatpush1.bf16.msra.mxu0 0
        %3571 = vmatprep.subr.bf16.mxu0 0
        %3572 = vmatpush1.bf16.msra.mxu0 0
        %3573 = vmatprep.subr.bf16.mxu0 0
        %3574 = vmatpush1.bf16.msra.mxu0 0
        %3575 = vmatprep.subr.bf16.mxu0 0
        %3576 = vmatpush1.bf16.msra.mxu0 0
        %3577 = vmatprep.subr.bf16.mxu0 0
        %3578 = vmatpush1.bf16.msra.mxu0 0
        %3579 = vmatprep.subr.bf16.mxu0 0
        %3580 = vmatpush1.bf16.msra.mxu0 0
        %3581 = vmatprep.subr.bf16.mxu0 0
        %3582 = vmatpush1.bf16.msra.mxu0 0
        %3583 = vmatprep.subr.bf16.mxu0 0
        %3584 = vmatpush1.bf16.msra.mxu0 0
        %3585 = vmatprep.subr.bf16.mxu0 0
        %3586 = vmatpush1.bf16.msra.mxu0 0
        %3587 = vmatprep.subr.bf16.mxu0 0
        %3588 = vmatpush1.bf16.msra.mxu0 0
        %3589 = vmatprep.subr.bf16.mxu0 0
        %3590 = vmatpush1.bf16.msra.mxu0 0
        %3591 = vmatprep.subr.bf16.mxu0 0
        %3592 = vmatpush1.bf16.msra.mxu0 0
        %3593 = vmatprep.subr.bf16.mxu0 0
        %3594 = vmatpush1.bf16.msra.mxu0 0
        %3595 = vmatprep.subr.bf16.mxu0 0
        %3596 = vmatpush1.bf16.msra.mxu0 0
        %3597 = vmatprep.mubr.bf16.mxu0 0
        %3598 = vmatmul.mubr.bf16.gmra.mrb[0].mxu0 %v3466
        %v3599 = vpop.f32.mrb[0].mxu0
        %v3600 = vadd.f32 0.0, %v3599
        %v3601 = vpop.f32.mrb[0].mxu0
        %v3602 = vpop.f32.mrb[0].mxu0
        %v3603 = vadd.f32 0.0, %v3602
        %v3604 = vpop.f32.mrb[0].mxu0
        %3605 = vmatprep.mubr.bf16.mxu0 0
        %3606 = vmatmul.mubr.bf16.gmra.mrb[0].mxu0 %v3469
        %v3607 = vpop.f32.mrb[0].mxu0
        %v3608 = vadd.f32 0.0, %v3607
        %v3609 = vpop.f32.mrb[0].mxu0
        %v3610 = vpop.f32.mrb[0].mxu0
        %v3611 = vadd.f32 0.0, %v3610
        %v3612 = vpop.f32.mrb[0].mxu0
        %3613 = vmatprep.mubr.bf16.mxu0 0
        %3614 = vmatmul.mubr.bf16.gmra.mrb[0].mxu0 %v3472
        %v3615 = vpop.f32.mrb[0].mxu0
        %v3616 = vadd.f32 0.0, %v3615
        %v3617 = vpop.f32.mrb[0].mxu0
        %v3618 = vpop.f32.mrb[0].mxu0
        %v3619 = vadd.f32 0.0, %v3618
        %v3620 = vpop.f32.mrb[0].mxu0
        %3621 = vmatprep.mubr.bf16.mxu0 0
        %3622 = vmatmul.mubr.bf16.gmra.mrb[0].mxu0 %v3475
        %v3623 = vpop.f32.mrb[0].mxu0
        %v3624 = vadd.f32 0.0, %v3623
        %v3625 = vpop.f32.mrb[0].mxu0
        %v3626 = vpop.f32.mrb[0].mxu0
        %v3627 = vadd.f32 0.0, %v3626
        %v3628 = vpop.f32.mrb[0].mxu0
        %3629 = vmatprep.mubr.bf16.mxu0 0
        %3630 = vmatmul.mubr.bf16.gmra.mrb[0].mxu0 %v3478
        %v3631 = vpop.f32.mrb[0].mxu0
        %v3632 = vadd.f32 0.0, %v3631
        %v3633 = vpop.f32.mrb[0].mxu0
        %v3634 = vpop.f32.mrb[0].mxu0
        %v3635 = vadd.f32 0.0, %v3634
        %v3636 = vpop.f32.mrb[0].mxu0
        %3637 = vmatprep.mubr.bf16.mxu0 0
        %3638 = vmatmul.mubr.bf16.gmra.mrb[0].mxu0 %v3481
        %v3639 = vpop.f32.mrb[0].mxu0
        %v3640 = vadd.f32 0.0, %v3639
        %v3641 = vpop.f32.mrb[0].mxu0
        %v3642 = vpop.f32.mrb[0].mxu0
        %v3643 = vadd.f32 0.0, %v3642
        %v3644 = vpop.f32.mrb[0].mxu0
        %3645 = vmatprep.mubr.bf16.mxu0 0
        %3646 = vmatmul.mubr.bf16.gmra.mrb[0].mxu0 %v3484
        %v3647 = vpop.f32.mrb[0].mxu0
        %v3648 = vadd.f32 0.0, %v3647
        %v3649 = vpop.f32.mrb[0].mxu0
        %v3650 = vpop.f32.mrb[0].mxu0
        %v3651 = vadd.f32 0.0, %v3650
        %v3652 = vpop.f32.mrb[0].mxu0
        %3653 = vmatprep.mubr.bf16.mxu0 0
        %3654 = vmatmul.mubr.bf16.gmra.mrb[0].mxu0 %v3487
        %v3655 = vpop.f32.mrb[0].mxu0
        %v3656 = vadd.f32 0.0, %v3655
        %v3657 = vpop.f32.mrb[0].mxu0
        %v3658 = vpop.f32.mrb[0].mxu0
        %v3659 = vadd.f32 0.0, %v3658
        %v3660 = vpop.f32.mrb[0].mxu0
        %3661 = vmatprep.mubr.bf16.mxu0 0
        %3662 = vmatmul.mubr.bf16.gmra.mrb[0].mxu0 %v3490
        %v3663 = vpop.f32.mrb[0].mxu0
        %v3664 = vadd.f32 0.0, %v3663
        %v3665 = vpop.f32.mrb[0].mxu0
        %v3666 = vpop.f32.mrb[0].mxu0
        %v3667 = vadd.f32 0.0, %v3666
        %v3668 = vpop.f32.mrb[0].mxu0
        %3669 = vmatprep.mubr.bf16.mxu0 0
        %3670 = vmatmul.mubr.bf16.gmra.mrb[0].mxu0 %v3493
        %v3671 = vpop.f32.mrb[0].mxu0
        %v3672 = vadd.f32 0.0, %v3671
        %v3673 = vpop.f32.mrb[0].mxu0
        %v3674 = vpop.f32.mrb[0].mxu0
        %v3675 = vadd.f32 0.0, %v3674
        %v3676 = vpop.f32.mrb[0].mxu0
        %3677 = vmatprep.mubr.bf16.mxu0 0
        %3678 = vmatmul.mubr.bf16.gmra.mrb[0].mxu0 %v3496
        %v3679 = vpop.f32.mrb[0].mxu0
        %v3680 = vadd.f32 0.0, %v3679
        %v3681 = vpop.f32.mrb[0].mxu0
        %v3682 = vpop.f32.mrb[0].mxu0
        %v3683 = vadd.f32 0.0, %v3682
        %v3684 = vpop.f32.mrb[0].mxu0
        %3685 = vmatprep.mubr.bf16.mxu0 0
        %3686 = vmatmul.mubr.bf16.gmra.mrb[0].mxu0 %v3499
        %v3687 = vpop.f32.mrb[0].mxu0
        %v3688 = vadd.f32 0.0, %v3687
        %v3689 = vpop.f32.mrb[0].mxu0
        %v3690 = vpop.f32.mrb[0].mxu0
        %v3691 = vadd.f32 0.0, %v3690
        %v3692 = vpop.f32.mrb[0].mxu0
        %3693 = vmatprep.mubr.bf16.mxu0 0
        %3694 = vmatmul.mubr.bf16.gmra.mrb[0].mxu0 %v3502
        %v3695 = vpop.f32.mrb[0].mxu0
        %v3696 = vadd.f32 0.0, %v3695
        %v3697 = vpop.f32.mrb[0].mxu0
        %v3698 = vpop.f32.mrb[0].mxu0
        %v3699 = vadd.f32 0.0, %v3698
        %v3700 = vpop.f32.mrb[0].mxu0
        %3701 = vmatprep.mubr.bf16.mxu0 0
        %3702 = vmatmul.mubr.bf16.gmra.mrb[0].mxu0 %v3505
        %v3703 = vpop.f32.mrb[0].mxu0
        %v3704 = vadd.f32 0.0, %v3703
        %v3705 = vpop.f32.mrb[0].mxu0
        %v3706 = vpop.f32.mrb[0].mxu0
        %v3707 = vadd.f32 0.0, %v3706
        %v3708 = vpop.f32.mrb[0].mxu0
        %3709 = vmatprep.mubr.bf16.mxu0 0
        %3710 = vmatmul.mubr.bf16.gmra.mrb[0].mxu0 %v3508
        %v3711 = vpop.f32.mrb[0].mxu0
        %v3712 = vadd.f32 0.0, %v3711
        %v3713 = vpop.f32.mrb[0].mxu0
        %v3714 = vpop.f32.mrb[0].mxu0
        %v3715 = vadd.f32 0.0, %v3714
        %v3716 = vpop.f32.mrb[0].mxu0
        %3717 = vmatprep.mubr.bf16.mxu0 0
        %3718 = vmatmul.mubr.bf16.gmra.mrb[0].mxu0 %v3511
        %v3719 = vpop.f32.mrb[0].mxu0
        %v3720 = vadd.f32 0.0, %v3719
        %v3721 = vpop.f32.mrb[0].mxu0
        %v3722 = vpop.f32.mrb[0].mxu0
        %v3723 = vadd.f32 0.0, %v3722
        %v3724 = vpop.f32.mrb[0].mxu0
        %3725 = vmatprep.mubr.bf16.mxu0 0
        %3726 = vmatmul.mubr.bf16.gmra.mrb[0].mxu0 %v3514
        %v3727 = vpop.f32.mrb[0].mxu0
        %v3728 = vadd.f32 0.0, %v3727
        %v3729 = vpop.f32.mrb[0].mxu0
        %v3730 = vpop.f32.mrb[0].mxu0
        %v3731 = vadd.f32 0.0, %v3730
        %v3732 = vpop.f32.mrb[0].mxu0
        %3733 = vmatprep.mubr.bf16.mxu0 0
        %3734 = vmatmul.mubr.bf16.gmra.mrb[0].mxu0 %v3517
        %v3735 = vpop.f32.mrb[0].mxu0
        %v3736 = vadd.f32 0.0, %v3735
        %v3737 = vpop.f32.mrb[0].mxu0
        %v3738 = vpop.f32.mrb[0].mxu0
        %v3739 = vadd.f32 0.0, %v3738
        %v3740 = vpop.f32.mrb[0].mxu0
        %3741 = vmatprep.mubr.bf16.mxu0 0
        %3742 = vmatmul.mubr.bf16.gmra.mrb[0].mxu0 %v3520
        %v3743 = vpop.f32.mrb[0].mxu0
        %v3744 = vadd.f32 0.0, %v3743
        %v3745 = vpop.f32.mrb[0].mxu0
        %v3746 = vpop.f32.mrb[0].mxu0
        %v3747 = vadd.f32 0.0, %v3746
        %v3748 = vpop.f32.mrb[0].mxu0
        %3749 = vmatprep.mubr.bf16.mxu0 0
        %3750 = vmatmul.mubr.bf16.gmra.mrb[0].mxu0 %v3523
        %v3751 = vpop.f32.mrb[0].mxu0
        %v3752 = vadd.f32 0.0, %v3751
        %v3753 = vpop.f32.mrb[0].mxu0
        %v3754 = vpop.f32.mrb[0].mxu0
        %v3755 = vadd.f32 0.0, %v3754
        %v3756 = vpop.f32.mrb[0].mxu0
        %3757 = vmatprep.mubr.bf16.mxu0 0
        %3758 = vmatmul.mubr.bf16.gmra.mrb[0].mxu0 %v3526
        %v3759 = vpop.f32.mrb[0].mxu0
        %v3760 = vadd.f32 0.0, %v3759
        %v3761 = vpop.f32.mrb[0].mxu0
        %v3762 = vpop.f32.mrb[0].mxu0
        %v3763 = vadd.f32 0.0, %v3762
        %v3764 = vpop.f32.mrb[0].mxu0
        %3765 = vmatprep.mubr.bf16.mxu0 0
        %3766 = vmatmul.mubr.bf16.gmra.mrb[0].mxu0 %v3529
        %v3767 = vpop.f32.mrb[0].mxu0
        %v3768 = vadd.f32 0.0, %v3767
        %v3769 = vpop.f32.mrb[0].mxu0
        %v3770 = vpop.f32.mrb[0].mxu0
        %v3771 = vadd.f32 0.0, %v3770
        %v3772 = vpop.f32.mrb[0].mxu0
        %3773 = vmatprep.mubr.bf16.mxu0 0
        %3774 = vmatmul.mubr.bf16.gmra.mrb[0].mxu0 %v3532
        %v3775 = vpop.f32.mrb[0].mxu0
        %v3776 = vadd.f32 0.0, %v3775
        %v3777 = vpop.f32.mrb[0].mxu0
        %v3778 = vpop.f32.mrb[0].mxu0
        %v3779 = vadd.f32 0.0, %v3778
        %v3780 = vpop.f32.mrb[0].mxu0
        %3781 = vmatprep.mubr.bf16.mxu0 0
        %3782 = vmatmul.mubr.bf16.gmra.mrb[0].mxu0 %v3535
        %v3783 = vpop.f32.mrb[0].mxu0
        %v3784 = vadd.f32 0.0, %v3783
        %v3785 = vpop.f32.mrb[0].mxu0
        %v3786 = vpop.f32.mrb[0].mxu0
        %v3787 = vadd.f32 0.0, %v3786
        %v3788 = vpop.f32.mrb[0].mxu0
        %3789 = vmatprep.mubr.bf16.mxu0 0
        %3790 = vmatmul.mubr.bf16.gmra.mrb[0].mxu0 %v3538
        %v3791 = vpop.f32.mrb[0].mxu0
        %v3792 = vadd.f32 0.0, %v3791
        %v3793 = vpop.f32.mrb[0].mxu0
        %v3794 = vpop.f32.mrb[0].mxu0
        %v3795 = vadd.f32 0.0, %v3794
        %v3796 = vpop.f32.mrb[0].mxu0
        %3797 = vmatprep.mubr.bf16.mxu0 0
        %3798 = vmatmul.mubr.bf16.gmra.mrb[0].mxu0 %v3541
        %v3799 = vpop.f32.mrb[0].mxu0
        %v3800 = vadd.f32 0.0, %v3799
        %v3801 = vpop.f32.mrb[0].mxu0
        %v3802 = vpop.f32.mrb[0].mxu0
        %v3803 = vadd.f32 0.0, %v3802
        %v3804 = vpop.f32.mrb[0].mxu0
        %3805 = vmatprep.mubr.bf16.mxu0 0
        %3806 = vmatmul.mubr.bf16.gmra.mrb[0].mxu0 %v3544
        %v3807 = vpop.f32.mrb[0].mxu0
        %v3808 = vadd.f32 0.0, %v3807
        %v3809 = vpop.f32.mrb[0].mxu0
        %v3810 = vpop.f32.mrb[0].mxu0
        %v3811 = vadd.f32 0.0, %v3810
        %v3812 = vpop.f32.mrb[0].mxu0
        %3813 = vmatprep.mubr.bf16.mxu0 0
        %3814 = vmatmul.mubr.bf16.gmra.mrb[0].mxu0 %v3547
        %v3815 = vpop.f32.mrb[0].mxu0
        %v3816 = vadd.f32 0.0, %v3815
        %v3817 = vpop.f32.mrb[0].mxu0
        %v3818 = vpop.f32.mrb[0].mxu0
        %v3819 = vadd.f32 0.0, %v3818
        %v3820 = vpop.f32.mrb[0].mxu0
        %3821 = vmatprep.mubr.bf16.mxu0 0
        %3822 = vmatmul.mubr.bf16.gmra.mrb[0].mxu0 %v3550
        %v3823 = vpop.f32.mrb[0].mxu0
        %v3824 = vadd.f32 0.0, %v3823
        %v3825 = vpop.f32.mrb[0].mxu0
        %v3826 = vpop.f32.mrb[0].mxu0
        %v3827 = vadd.f32 0.0, %v3826
        %v3828 = vpop.f32.mrb[0].mxu0
        %3829 = vmatprep.mubr.bf16.mxu0 0
        %3830 = vmatmul.mubr.bf16.gmra.mrb[0].mxu0 %v3553
        %v3831 = vpop.f32.mrb[0].mxu0
        %v3832 = vadd.f32 0.0, %v3831
        %v3833 = vpop.f32.mrb[0].mxu0
        %v3834 = vpop.f32.mrb[0].mxu0
        %v3835 = vadd.f32 0.0, %v3834
        %v3836 = vpop.f32.mrb[0].mxu0
        %3837 = vmatprep.mubr.bf16.mxu0 0
        %3838 = vmatmul.mubr.bf16.gmra.mrb[0].mxu0 %v3556
        %v3839 = vpop.f32.mrb[0].mxu0
        %v3840 = vadd.f32 0.0, %v3839
        %v3841 = vpop.f32.mrb[0].mxu0
        %v3842 = vpop.f32.mrb[0].mxu0
        %v3843 = vadd.f32 0.0, %v3842
        %v3844 = vpop.f32.mrb[0].mxu0
        %3845 = vmatprep.mubr.bf16.mxu0 0
        %3846 = vmatmul.mubr.bf16.gmra.mrb[0].mxu0 %v3559
        %v3847 = vpop.f32.mrb[0].mxu0
        %v3848 = vadd.f32 0.0, %v3847
        %v3849 = vpop.f32.mrb[0].mxu0
        %v3850 = vpop.f32.mrb[0].mxu0
        %v3851 = vadd.f32 0.0, %v3850
        %v3852 = vpop.f32.mrb[0].mxu0
        %3853 = vdwg.mxu0
        %v3854 = vadd.f32 %v2985, %v3600
        %v3855 = vadd.f32 %v2988, %v3603
        %v3856 = vadd.f32 %v2993, %v3608
        %v3857 = vadd.f32 %v2996, %v3611
        %v3858 = vadd.f32 %v3001, %v3616
        %v3859 = vadd.f32 %v3004, %v3619
        %v3860 = vadd.f32 %v3009, %v3624
        %v3861 = vadd.f32 %v3012, %v3627
        %v3862 = vadd.f32 %v3017, %v3632
        %v3863 = vadd.f32 %v3020, %v3635
        %v3864 = vadd.f32 %v3025, %v3640
        %v3865 = vadd.f32 %v3028, %v3643
        %v3866 = vadd.f32 %v3033, %v3648
        %v3867 = vadd.f32 %v3036, %v3651
        %v3868 = vadd.f32 %v3041, %v3656
        %v3869 = vadd.f32 %v3044, %v3659
        %v3870 = vadd.f32 %v3049, %v3664
        %v3871 = vadd.f32 %v3052, %v3667
        %v3872 = vadd.f32 %v3057, %v3672
        %v3873 = vadd.f32 %v3060, %v3675
        %v3874 = vadd.f32 %v3065, %v3680
        %v3875 = vadd.f32 %v3068, %v3683
        %v3876 = vadd.f32 %v3073, %v3688
        %v3877 = vadd.f32 %v3076, %v3691
        %v3878 = vadd.f32 %v3081, %v3696
        %v3879 = vadd.f32 %v3084, %v3699
        %v3880 = vadd.f32 %v3089, %v3704
        %v3881 = vadd.f32 %v3092, %v3707
        %v3882 = vadd.f32 %v3097, %v3712
        %v3883 = vadd.f32 %v3100, %v3715
        %v3884 = vadd.f32 %v3105, %v3720
        %v3885 = vadd.f32 %v3108, %v3723
        %v3886 = vadd.f32 %v3113, %v3728
        %v3887 = vadd.f32 %v3116, %v3731
        %v3888 = vadd.f32 %v3121, %v3736
        %v3889 = vadd.f32 %v3124, %v3739
        %v3890 = vadd.f32 %v3129, %v3744
        %v3891 = vadd.f32 %v3132, %v3747
        %v3892 = vadd.f32 %v3137, %v3752
        %v3893 = vadd.f32 %v3140, %v3755
        %v3894 = vadd.f32 %v3145, %v3760
        %v3895 = vadd.f32 %v3148, %v3763
        %v3896 = vadd.f32 %v3153, %v3768
        %v3897 = vadd.f32 %v3156, %v3771
        %v3898 = vadd.f32 %v3161, %v3776
        %v3899 = vadd.f32 %v3164, %v3779
        %v3900 = vadd.f32 %v3169, %v3784
        %v3901 = vadd.f32 %v3172, %v3787
        %v3902 = vadd.f32 %v3177, %v3792
        %v3903 = vadd.f32 %v3180, %v3795
        %v3904 = vadd.f32 %v3185, %v3800
        %v3905 = vadd.f32 %v3188, %v3803
        %v3906 = vadd.f32 %v3193, %v3808
        %v3907 = vadd.f32 %v3196, %v3811
        %v3908 = vadd.f32 %v3201, %v3816
        %v3909 = vadd.f32 %v3204, %v3819
        %v3910 = vadd.f32 %v3209, %v3824
        %v3911 = vadd.f32 %v3212, %v3827
        %v3912 = vadd.f32 %v3217, %v3832
        %v3913 = vadd.f32 %v3220, %v3835
        %v3914 = vadd.f32 %v3225, %v3840
        %v3915 = vadd.f32 %v3228, %v3843
        %v3916 = vadd.f32 %v3233, %v3848
        %v3917 = vadd.f32 %v3236, %v3851
        %v3918 = vpack.c.bf16 %v3855, %v3854
        %v3919 = vpack.c.bf16 %v3857, %v3856
        %v3920 = vpack.c.bf16 %v3859, %v3858
        %v3921 = vpack.c.bf16 %v3861, %v3860
        %v3922 = vpack.c.bf16 %v3863, %v3862
        %v3923 = vpack.c.bf16 %v3865, %v3864
        %v3924 = vpack.c.bf16 %v3867, %v3866
        %v3925 = vpack.c.bf16 %v3869, %v3868
        %v3926 = vpack.c.bf16 %v3871, %v3870
        %v3927 = vpack.c.bf16 %v3873, %v3872
        %v3928 = vpack.c.bf16 %v3875, %v3874
        %v3929 = vpack.c.bf16 %v3877, %v3876
        %v3930 = vpack.c.bf16 %v3879, %v3878
        %v3931 = vpack.c.bf16 %v3881, %v3880
        %v3932 = vpack.c.bf16 %v3883, %v3882
        %v3933 = vpack.c.bf16 %v3885, %v3884
        %v3934 = vpack.c.bf16 %v3887, %v3886
        %v3935 = vpack.c.bf16 %v3889, %v3888
        %v3936 = vpack.c.bf16 %v3891, %v3890
        %v3937 = vpack.c.bf16 %v3893, %v3892
        %v3938 = vpack.c.bf16 %v3895, %v3894
        %v3939 = vpack.c.bf16 %v3897, %v3896
        %v3940 = vpack.c.bf16 %v3899, %v3898
        %v3941 = vpack.c.bf16 %v3901, %v3900
        %v3942 = vpack.c.bf16 %v3903, %v3902
        %v3943 = vpack.c.bf16 %v3905, %v3904
        %v3944 = vpack.c.bf16 %v3907, %v3906
        %v3945 = vpack.c.bf16 %v3909, %v3908
        %v3946 = vpack.c.bf16 %v3911, %v3910
        %v3947 = vpack.c.bf16 %v3913, %v3912
        %v3948 = vpack.c.bf16 %v3915, %v3914
        %v3949 = vpack.c.bf16 %v3917, %v3916
        %v3950 = vld [vmem:[%s8] sm:$0x1]
        %v3952 = vpack.i.b16 %v3950, %v3950
        %v3954 = vlaneseq
        %v3955 = vshrl.u32 %v3954, 7
        %v3956 = vsub.s32 0, %v3955
        %v3957 = vrot.slane %v3952, %v3956
        %v3958 = vadd.bf16 %v3918, %v3957
        %v3959 = vadd.bf16 %v3919, %v3957
        %v3960 = vadd.bf16 %v3920, %v3957
        %v3961 = vadd.bf16 %v3921, %v3957
        %v3962 = vadd.bf16 %v3922, %v3957
        %v3963 = vadd.bf16 %v3923, %v3957
        %v3964 = vadd.bf16 %v3924, %v3957
        %v3965 = vadd.bf16 %v3925, %v3957
        %v3966 = vadd.bf16 %v3926, %v3957
        %v3967 = vadd.bf16 %v3927, %v3957
        %v3968 = vadd.bf16 %v3928, %v3957
        %v3969 = vadd.bf16 %v3929, %v3957
        %v3970 = vadd.bf16 %v3930, %v3957
        %v3971 = vadd.bf16 %v3931, %v3957
        %v3972 = vadd.bf16 %v3932, %v3957
        %v3973 = vadd.bf16 %v3933, %v3957
        %v3974 = vadd.bf16 %v3934, %v3957
        %v3975 = vadd.bf16 %v3935, %v3957
        %v3976 = vadd.bf16 %v3936, %v3957
        %v3977 = vadd.bf16 %v3937, %v3957
        %v3978 = vadd.bf16 %v3938, %v3957
        %v3979 = vadd.bf16 %v3939, %v3957
        %v3980 = vadd.bf16 %v3940, %v3957
        %v3981 = vadd.bf16 %v3941, %v3957
        %v3982 = vadd.bf16 %v3942, %v3957
        %v3983 = vadd.bf16 %v3943, %v3957
        %v3984 = vadd.bf16 %v3944, %v3957
        %v3985 = vadd.bf16 %v3945, %v3957
        %v3986 = vadd.bf16 %v3946, %v3957
        %v3987 = vadd.bf16 %v3947, %v3957
        %v3988 = vadd.bf16 %v3948, %v3957
        %v3989 = vadd.bf16 %v3949, %v3957
        %v3990 = vmax.bf16 %v3958, 0
        %v3991 = vmax.bf16 %v3959, 0
        %v3992 = vmax.bf16 %v3960, 0
        %v3993 = vmax.bf16 %v3961, 0
        %v3994 = vmax.bf16 %v3962, 0
        %v3995 = vmax.bf16 %v3963, 0
        %v3996 = vmax.bf16 %v3964, 0
        %v3997 = vmax.bf16 %v3965, 0
        %v3998 = vmax.bf16 %v3966, 0
        %v3999 = vmax.bf16 %v3967, 0
        %v4000 = vmax.bf16 %v3968, 0
        %v4001 = vmax.bf16 %v3969, 0
        %v4002 = vmax.bf16 %v3970, 0
        %v4003 = vmax.bf16 %v3971, 0
        %v4004 = vmax.bf16 %v3972, 0
        %v4005 = vmax.bf16 %v3973, 0
        %v4006 = vmax.bf16 %v3974, 0
        %v4007 = vmax.bf16 %v3975, 0
        %v4008 = vmax.bf16 %v3976, 0
        %v4009 = vmax.bf16 %v3977, 0
        %v4010 = vmax.bf16 %v3978, 0
        %v4011 = vmax.bf16 %v3979, 0
        %v4012 = vmax.bf16 %v3980, 0
        %v4013 = vmax.bf16 %v3981, 0
        %v4014 = vmax.bf16 %v3982, 0
        %v4015 = vmax.bf16 %v3983, 0
        %v4016 = vmax.bf16 %v3984, 0
        %v4017 = vmax.bf16 %v3985, 0
        %v4018 = vmax.bf16 %v3986, 0
        %v4019 = vmax.bf16 %v3987, 0
        %v4020 = vmax.bf16 %v3988, 0
        %v4021 = vmax.bf16 %v3989, 0
        %v4022 = vld [vmem:[%s9] sm:$0xf]
        %v4023 = vld [vmem:[%s9 + $0x4] sm:$0xf]
        %v4024 = vld [vmem:[%s9 + $0x8] sm:$0xf]
        %v4025 = vld [vmem:[%s9 + $0xc] sm:$0xf]
        %v4026 = vld [vmem:[%s9 + $0x10] sm:$0xf]
        %v4027 = vld [vmem:[%s9 + $0x14] sm:$0xf]
        %v4028 = vld [vmem:[%s9 + $0x18] sm:$0xf]
        %v4029 = vld [vmem:[%s9 + $0x1c] sm:$0xf]
        %v4030 = vld [vmem:[%s9 + $0x20] sm:$0xf]
        %v4031 = vld [vmem:[%s9 + $0x24] sm:$0xf]
        %v4032 = vld [vmem:[%s9 + $0x28] sm:$0xf]
        %v4033 = vld [vmem:[%s9 + $0x2c] sm:$0xf]
        %v4034 = vld [vmem:[%s9 + $0x30] sm:$0xf]
        %v4035 = vld [vmem:[%s9 + $0x34] sm:$0xf]
        %v4036 = vld [vmem:[%s9 + $0x38] sm:$0xf]
        %v4037 = vld [vmem:[%s9 + $0x3c] sm:$0xf]
        %v4054 = vunpack.c.l.b16 %v4022
        %v4055 = vunpack.c.l.b16 %v4023
        %v4056 = vunpack.c.l.b16 %v4024
        %v4057 = vunpack.c.l.b16 %v4025
        %v4058 = vunpack.c.l.b16 %v4026
        %v4059 = vunpack.c.l.b16 %v4027
        %v4060 = vunpack.c.l.b16 %v4028
        %v4061 = vunpack.c.l.b16 %v4029
        %v4062 = vunpack.c.l.b16 %v4030
        %v4063 = vunpack.c.l.b16 %v4031
        %v4064 = vunpack.c.l.b16 %v4032
        %v4065 = vunpack.c.l.b16 %v4033
        %v4066 = vunpack.c.l.b16 %v4034
        %v4067 = vunpack.c.l.b16 %v4035
        %v4068 = vunpack.c.l.b16 %v4036
        %v4069 = vunpack.c.l.b16 %v4037
        %v4070 = vpack.c.b16 %v4055, %v4054
        %v4071 = vpack.c.b16 %v4057, %v4056
        %v4072 = vpack.c.b16 %v4059, %v4058
        %v4073 = vpack.c.b16 %v4061, %v4060
        %v4074 = vpack.c.b16 %v4063, %v4062
        %v4075 = vpack.c.b16 %v4065, %v4064
        %v4076 = vpack.c.b16 %v4067, %v4066
        %v4077 = vpack.c.b16 %v4069, %v4068
        %4086 = vmatprep.subr.bf16.mxu0 0
        %4087 = vmatpush1.bf16.msra.mxu0 %v4070
        %4088 = vmatprep.subr.bf16.mxu0 0
        %4089 = vmatpush1.bf16.msra.mxu0 %v4071
        %4090 = vmatprep.subr.bf16.mxu0 0
        %4091 = vmatpush1.bf16.msra.mxu0 %v4072
        %4092 = vmatprep.subr.bf16.mxu0 0
        %4093 = vmatpush1.bf16.msra.mxu0 %v4073
        %4094 = vmatprep.subr.bf16.mxu0 0
        %4095 = vmatpush1.bf16.msra.mxu0 %v4074
        %4096 = vmatprep.subr.bf16.mxu0 0
        %4097 = vmatpush1.bf16.msra.mxu0 %v4075
        %4098 = vmatprep.subr.bf16.mxu0 0
        %4099 = vmatpush1.bf16.msra.mxu0 %v4076
        %4100 = vmatprep.subr.bf16.mxu0 0
        %4101 = vmatpush1.bf16.msra.mxu0 %v4077
        %4102 = vmatprep.subr.bf16.mxu0 0
        %4103 = vmatpush1.bf16.msra.mxu0 0
        %4104 = vmatprep.subr.bf16.mxu0 0
        %4105 = vmatpush1.bf16.msra.mxu0 0
        %4106 = vmatprep.subr.bf16.mxu0 0
        %4107 = vmatpush1.bf16.msra.mxu0 0
        %4108 = vmatprep.subr.bf16.mxu0 0
        %4109 = vmatpush1.bf16.msra.mxu0 0
        %4110 = vmatprep.subr.bf16.mxu0 0
        %4111 = vmatpush1.bf16.msra.mxu0 0
        %4112 = vmatprep.subr.bf16.mxu0 0
        %4113 = vmatpush1.bf16.msra.mxu0 0
        %4114 = vmatprep.subr.bf16.mxu0 0
        %4115 = vmatpush1.bf16.msra.mxu0 0
        %4116 = vmatprep.subr.bf16.mxu0 0
        %4117 = vmatpush1.bf16.msra.mxu0 0
        %4118 = vmatprep.mubr.bf16.mxu0 0
        %4119 = vmatmul.mubr.bf16.gmra.mrb[0].mxu0 %v3990
        %v4120 = vpop.f32.mrb[0].mxu0
        %v4121 = vadd.f32 0.0, %v4120
        %v4122 = vpop.f32.mrb[0].mxu0
        %v4123 = vpop.f32.mrb[0].mxu0
        %v4124 = vadd.f32 0.0, %v4123
        %v4125 = vpop.f32.mrb[0].mxu0
        %4126 = vmatprep.mubr.bf16.mxu0 0
        %4127 = vmatmul.mubr.bf16.gmra.mrb[0].mxu0 %v3991
        %v4128 = vpop.f32.mrb[0].mxu0
        %v4129 = vadd.f32 0.0, %v4128
        %v4130 = vpop.f32.mrb[0].mxu0
        %v4131 = vpop.f32.mrb[0].mxu0
        %v4132 = vadd.f32 0.0, %v4131
        %v4133 = vpop.f32.mrb[0].mxu0
        %4134 = vmatprep.mubr.bf16.mxu0 0
        %4135 = vmatmul.mubr.bf16.gmra.mrb[0].mxu0 %v3992
        %v4136 = vpop.f32.mrb[0].mxu0
        %v4137 = vadd.f32 0.0, %v4136
        %v4138 = vpop.f32.mrb[0].mxu0
        %v4139 = vpop.f32.mrb[0].mxu0
        %v4140 = vadd.f32 0.0, %v4139
        %v4141 = vpop.f32.mrb[0].mxu0
        %4142 = vmatprep.mubr.bf16.mxu0 0
        %4143 = vmatmul.mubr.bf16.gmra.mrb[0].mxu0 %v3993
        %v4144 = vpop.f32.mrb[0].mxu0
        %v4145 = vadd.f32 0.0, %v4144
        %v4146 = vpop.f32.mrb[0].mxu0
        %v4147 = vpop.f32.mrb[0].mxu0
        %v4148 = vadd.f32 0.0, %v4147
        %v4149 = vpop.f32.mrb[0].mxu0
        %4150 = vmatprep.mubr.bf16.mxu0 0
        %4151 = vmatmul.mubr.bf16.gmra.mrb[0].mxu0 %v3994
        %v4152 = vpop.f32.mrb[0].mxu0
        %v4153 = vadd.f32 0.0, %v4152
        %v4154 = vpop.f32.mrb[0].mxu0
        %v4155 = vpop.f32.mrb[0].mxu0
        %v4156 = vadd.f32 0.0, %v4155
        %v4157 = vpop.f32.mrb[0].mxu0
        %4158 = vmatprep.mubr.bf16.mxu0 0
        %4159 = vmatmul.mubr.bf16.gmra.mrb[0].mxu0 %v3995
        %v4160 = vpop.f32.mrb[0].mxu0
        %v4161 = vadd.f32 0.0, %v4160
        %v4162 = vpop.f32.mrb[0].mxu0
        %v4163 = vpop.f32.mrb[0].mxu0
        %v4164 = vadd.f32 0.0, %v4163
        %v4165 = vpop.f32.mrb[0].mxu0
        %4166 = vmatprep.mubr.bf16.mxu0 0
        %4167 = vmatmul.mubr.bf16.gmra.mrb[0].mxu0 %v3996
        %v4168 = vpop.f32.mrb[0].mxu0
        %v4169 = vadd.f32 0.0, %v4168
        %v4170 = vpop.f32.mrb[0].mxu0
        %v4171 = vpop.f32.mrb[0].mxu0
        %v4172 = vadd.f32 0.0, %v4171
        %v4173 = vpop.f32.mrb[0].mxu0
        %4174 = vmatprep.mubr.bf16.mxu0 0
        %4175 = vmatmul.mubr.bf16.gmra.mrb[0].mxu0 %v3997
        %v4176 = vpop.f32.mrb[0].mxu0
        %v4177 = vadd.f32 0.0, %v4176
        %v4178 = vpop.f32.mrb[0].mxu0
        %v4179 = vpop.f32.mrb[0].mxu0
        %v4180 = vadd.f32 0.0, %v4179
        %v4181 = vpop.f32.mrb[0].mxu0
        %4182 = vmatprep.mubr.bf16.mxu0 0
        %4183 = vmatmul.mubr.bf16.gmra.mrb[0].mxu0 %v3998
        %v4184 = vpop.f32.mrb[0].mxu0
        %v4185 = vadd.f32 0.0, %v4184
        %v4186 = vpop.f32.mrb[0].mxu0
        %v4187 = vpop.f32.mrb[0].mxu0
        %v4188 = vadd.f32 0.0, %v4187
        %v4189 = vpop.f32.mrb[0].mxu0
        %4190 = vmatprep.mubr.bf16.mxu0 0
        %4191 = vmatmul.mubr.bf16.gmra.mrb[0].mxu0 %v3999
        %v4192 = vpop.f32.mrb[0].mxu0
        %v4193 = vadd.f32 0.0, %v4192
        %v4194 = vpop.f32.mrb[0].mxu0
        %v4195 = vpop.f32.mrb[0].mxu0
        %v4196 = vadd.f32 0.0, %v4195
        %v4197 = vpop.f32.mrb[0].mxu0
        %4198 = vmatprep.mubr.bf16.mxu0 0
        %4199 = vmatmul.mubr.bf16.gmra.mrb[0].mxu0 %v4000
        %v4200 = vpop.f32.mrb[0].mxu0
        %v4201 = vadd.f32 0.0, %v4200
        %v4202 = vpop.f32.mrb[0].mxu0
        %v4203 = vpop.f32.mrb[0].mxu0
        %v4204 = vadd.f32 0.0, %v4203
        %v4205 = vpop.f32.mrb[0].mxu0
        %4206 = vmatprep.mubr.bf16.mxu0 0
        %4207 = vmatmul.mubr.bf16.gmra.mrb[0].mxu0 %v4001
        %v4208 = vpop.f32.mrb[0].mxu0
        %v4209 = vadd.f32 0.0, %v4208
        %v4210 = vpop.f32.mrb[0].mxu0
        %v4211 = vpop.f32.mrb[0].mxu0
        %v4212 = vadd.f32 0.0, %v4211
        %v4213 = vpop.f32.mrb[0].mxu0
        %4214 = vmatprep.mubr.bf16.mxu0 0
        %4215 = vmatmul.mubr.bf16.gmra.mrb[0].mxu0 %v4002
        %v4216 = vpop.f32.mrb[0].mxu0
        %v4217 = vadd.f32 0.0, %v4216
        %v4218 = vpop.f32.mrb[0].mxu0
        %v4219 = vpop.f32.mrb[0].mxu0
        %v4220 = vadd.f32 0.0, %v4219
        %v4221 = vpop.f32.mrb[0].mxu0
        %4222 = vmatprep.mubr.bf16.mxu0 0
        %4223 = vmatmul.mubr.bf16.gmra.mrb[0].mxu0 %v4003
        %v4224 = vpop.f32.mrb[0].mxu0
        %v4225 = vadd.f32 0.0, %v4224
        %v4226 = vpop.f32.mrb[0].mxu0
        %v4227 = vpop.f32.mrb[0].mxu0
        %v4228 = vadd.f32 0.0, %v4227
        %v4229 = vpop.f32.mrb[0].mxu0
        %4230 = vmatprep.mubr.bf16.mxu0 0
        %4231 = vmatmul.mubr.bf16.gmra.mrb[0].mxu0 %v4004
        %v4232 = vpop.f32.mrb[0].mxu0
        %v4233 = vadd.f32 0.0, %v4232
        %v4234 = vpop.f32.mrb[0].mxu0
        %v4235 = vpop.f32.mrb[0].mxu0
        %v4236 = vadd.f32 0.0, %v4235
        %v4237 = vpop.f32.mrb[0].mxu0
        %4238 = vmatprep.mubr.bf16.mxu0 0
        %4239 = vmatmul.mubr.bf16.gmra.mrb[0].mxu0 %v4005
        %v4240 = vpop.f32.mrb[0].mxu0
        %v4241 = vadd.f32 0.0, %v4240
        %v4242 = vpop.f32.mrb[0].mxu0
        %v4243 = vpop.f32.mrb[0].mxu0
        %v4244 = vadd.f32 0.0, %v4243
        %v4245 = vpop.f32.mrb[0].mxu0
        %4246 = vmatprep.mubr.bf16.mxu0 0
        %4247 = vmatmul.mubr.bf16.gmra.mrb[0].mxu0 %v4006
        %v4248 = vpop.f32.mrb[0].mxu0
        %v4249 = vadd.f32 0.0, %v4248
        %v4250 = vpop.f32.mrb[0].mxu0
        %v4251 = vpop.f32.mrb[0].mxu0
        %v4252 = vadd.f32 0.0, %v4251
        %v4253 = vpop.f32.mrb[0].mxu0
        %4254 = vmatprep.mubr.bf16.mxu0 0
        %4255 = vmatmul.mubr.bf16.gmra.mrb[0].mxu0 %v4007
        %v4256 = vpop.f32.mrb[0].mxu0
        %v4257 = vadd.f32 0.0, %v4256
        %v4258 = vpop.f32.mrb[0].mxu0
        %v4259 = vpop.f32.mrb[0].mxu0
        %v4260 = vadd.f32 0.0, %v4259
        %v4261 = vpop.f32.mrb[0].mxu0
        %4262 = vmatprep.mubr.bf16.mxu0 0
        %4263 = vmatmul.mubr.bf16.gmra.mrb[0].mxu0 %v4008
        %v4264 = vpop.f32.mrb[0].mxu0
        %v4265 = vadd.f32 0.0, %v4264
        %v4266 = vpop.f32.mrb[0].mxu0
        %v4267 = vpop.f32.mrb[0].mxu0
        %v4268 = vadd.f32 0.0, %v4267
        %v4269 = vpop.f32.mrb[0].mxu0
        %4270 = vmatprep.mubr.bf16.mxu0 0
        %4271 = vmatmul.mubr.bf16.gmra.mrb[0].mxu0 %v4009
        %v4272 = vpop.f32.mrb[0].mxu0
        %v4273 = vadd.f32 0.0, %v4272
        %v4274 = vpop.f32.mrb[0].mxu0
        %v4275 = vpop.f32.mrb[0].mxu0
        %v4276 = vadd.f32 0.0, %v4275
        %v4277 = vpop.f32.mrb[0].mxu0
        %4278 = vmatprep.mubr.bf16.mxu0 0
        %4279 = vmatmul.mubr.bf16.gmra.mrb[0].mxu0 %v4010
        %v4280 = vpop.f32.mrb[0].mxu0
        %v4281 = vadd.f32 0.0, %v4280
        %v4282 = vpop.f32.mrb[0].mxu0
        %v4283 = vpop.f32.mrb[0].mxu0
        %v4284 = vadd.f32 0.0, %v4283
        %v4285 = vpop.f32.mrb[0].mxu0
        %4286 = vmatprep.mubr.bf16.mxu0 0
        %4287 = vmatmul.mubr.bf16.gmra.mrb[0].mxu0 %v4011
        %v4288 = vpop.f32.mrb[0].mxu0
        %v4289 = vadd.f32 0.0, %v4288
        %v4290 = vpop.f32.mrb[0].mxu0
        %v4291 = vpop.f32.mrb[0].mxu0
        %v4292 = vadd.f32 0.0, %v4291
        %v4293 = vpop.f32.mrb[0].mxu0
        %4294 = vmatprep.mubr.bf16.mxu0 0
        %4295 = vmatmul.mubr.bf16.gmra.mrb[0].mxu0 %v4012
        %v4296 = vpop.f32.mrb[0].mxu0
        %v4297 = vadd.f32 0.0, %v4296
        %v4298 = vpop.f32.mrb[0].mxu0
        %v4299 = vpop.f32.mrb[0].mxu0
        %v4300 = vadd.f32 0.0, %v4299
        %v4301 = vpop.f32.mrb[0].mxu0
        %4302 = vmatprep.mubr.bf16.mxu0 0
        %4303 = vmatmul.mubr.bf16.gmra.mrb[0].mxu0 %v4013
        %v4304 = vpop.f32.mrb[0].mxu0
        %v4305 = vadd.f32 0.0, %v4304
        %v4306 = vpop.f32.mrb[0].mxu0
        %v4307 = vpop.f32.mrb[0].mxu0
        %v4308 = vadd.f32 0.0, %v4307
        %v4309 = vpop.f32.mrb[0].mxu0
        %4310 = vmatprep.mubr.bf16.mxu0 0
        %4311 = vmatmul.mubr.bf16.gmra.mrb[0].mxu0 %v4014
        %v4312 = vpop.f32.mrb[0].mxu0
        %v4313 = vadd.f32 0.0, %v4312
        %v4314 = vpop.f32.mrb[0].mxu0
        %v4315 = vpop.f32.mrb[0].mxu0
        %v4316 = vadd.f32 0.0, %v4315
        %v4317 = vpop.f32.mrb[0].mxu0
        %4318 = vmatprep.mubr.bf16.mxu0 0
        %4319 = vmatmul.mubr.bf16.gmra.mrb[0].mxu0 %v4015
        %v4320 = vpop.f32.mrb[0].mxu0
        %v4321 = vadd.f32 0.0, %v4320
        %v4322 = vpop.f32.mrb[0].mxu0
        %v4323 = vpop.f32.mrb[0].mxu0
        %v4324 = vadd.f32 0.0, %v4323
        %v4325 = vpop.f32.mrb[0].mxu0
        %4326 = vmatprep.mubr.bf16.mxu0 0
        %4327 = vmatmul.mubr.bf16.gmra.mrb[0].mxu0 %v4016
        %v4328 = vpop.f32.mrb[0].mxu0
        %v4329 = vadd.f32 0.0, %v4328
        %v4330 = vpop.f32.mrb[0].mxu0
        %v4331 = vpop.f32.mrb[0].mxu0
        %v4332 = vadd.f32 0.0, %v4331
        %v4333 = vpop.f32.mrb[0].mxu0
        %4334 = vmatprep.mubr.bf16.mxu0 0
        %4335 = vmatmul.mubr.bf16.gmra.mrb[0].mxu0 %v4017
        %v4336 = vpop.f32.mrb[0].mxu0
        %v4337 = vadd.f32 0.0, %v4336
        %v4338 = vpop.f32.mrb[0].mxu0
        %v4339 = vpop.f32.mrb[0].mxu0
        %v4340 = vadd.f32 0.0, %v4339
        %v4341 = vpop.f32.mrb[0].mxu0
        %4342 = vmatprep.mubr.bf16.mxu0 0
        %4343 = vmatmul.mubr.bf16.gmra.mrb[0].mxu0 %v4018
        %v4344 = vpop.f32.mrb[0].mxu0
        %v4345 = vadd.f32 0.0, %v4344
        %v4346 = vpop.f32.mrb[0].mxu0
        %v4347 = vpop.f32.mrb[0].mxu0
        %v4348 = vadd.f32 0.0, %v4347
        %v4349 = vpop.f32.mrb[0].mxu0
        %4350 = vmatprep.mubr.bf16.mxu0 0
        %4351 = vmatmul.mubr.bf16.gmra.mrb[0].mxu0 %v4019
        %v4352 = vpop.f32.mrb[0].mxu0
        %v4353 = vadd.f32 0.0, %v4352
        %v4354 = vpop.f32.mrb[0].mxu0
        %v4355 = vpop.f32.mrb[0].mxu0
        %v4356 = vadd.f32 0.0, %v4355
        %v4357 = vpop.f32.mrb[0].mxu0
        %4358 = vmatprep.mubr.bf16.mxu0 0
        %4359 = vmatmul.mubr.bf16.gmra.mrb[0].mxu0 %v4020
        %v4360 = vpop.f32.mrb[0].mxu0
        %v4361 = vadd.f32 0.0, %v4360
        %v4362 = vpop.f32.mrb[0].mxu0
        %v4363 = vpop.f32.mrb[0].mxu0
        %v4364 = vadd.f32 0.0, %v4363
        %v4365 = vpop.f32.mrb[0].mxu0
        %4366 = vmatprep.mubr.bf16.mxu0 0
        %4367 = vmatmul.mubr.bf16.gmra.mrb[0].mxu0 %v4021
        %v4368 = vpop.f32.mrb[0].mxu0
        %v4369 = vadd.f32 0.0, %v4368
        %v4370 = vpop.f32.mrb[0].mxu0
        %v4371 = vpop.f32.mrb[0].mxu0
        %v4372 = vadd.f32 0.0, %v4371
        %v4373 = vpop.f32.mrb[0].mxu0
        %4374 = vdwg.mxu0
        %v4375 = vpack.c.bf16 %v4124, %v4121
        %v4376 = vpack.c.bf16 %v4132, %v4129
        %v4377 = vpack.c.bf16 %v4140, %v4137
        %v4378 = vpack.c.bf16 %v4148, %v4145
        %v4379 = vpack.c.bf16 %v4156, %v4153
        %v4380 = vpack.c.bf16 %v4164, %v4161
        %v4381 = vpack.c.bf16 %v4172, %v4169
        %v4382 = vpack.c.bf16 %v4180, %v4177
        %v4383 = vpack.c.bf16 %v4188, %v4185
        %v4384 = vpack.c.bf16 %v4196, %v4193
        %v4385 = vpack.c.bf16 %v4204, %v4201
        %v4386 = vpack.c.bf16 %v4212, %v4209
        %v4387 = vpack.c.bf16 %v4220, %v4217
        %v4388 = vpack.c.bf16 %v4228, %v4225
        %v4389 = vpack.c.bf16 %v4236, %v4233
        %v4390 = vpack.c.bf16 %v4244, %v4241
        %v4391 = vpack.c.bf16 %v4252, %v4249
        %v4392 = vpack.c.bf16 %v4260, %v4257
        %v4393 = vpack.c.bf16 %v4268, %v4265
        %v4394 = vpack.c.bf16 %v4276, %v4273
        %v4395 = vpack.c.bf16 %v4284, %v4281
        %v4396 = vpack.c.bf16 %v4292, %v4289
        %v4397 = vpack.c.bf16 %v4300, %v4297
        %v4398 = vpack.c.bf16 %v4308, %v4305
        %v4399 = vpack.c.bf16 %v4316, %v4313
        %v4400 = vpack.c.bf16 %v4324, %v4321
        %v4401 = vpack.c.bf16 %v4332, %v4329
        %v4402 = vpack.c.bf16 %v4340, %v4337
        %v4403 = vpack.c.bf16 %v4348, %v4345
        %v4404 = vpack.c.bf16 %v4356, %v4353
        %v4405 = vpack.c.bf16 %v4364, %v4361
        %v4406 = vpack.c.bf16 %v4372, %v4369
        %v4407 = vld [vmem:[%s10] sm:$0x1]
        %v4409 = vpack.i.b16 %v4407, %v4407
        %v4411 = vlaneseq
        %v4412 = vshrl.u32 %v4411, 7
        %v4413 = vsub.s32 0, %v4412
        %v4414 = vrot.slane %v4409, %v4413
        %v4415 = vadd.bf16 %v4375, %v4414
        %v4416 = vadd.bf16 %v4376, %v4414
        %v4417 = vadd.bf16 %v4377, %v4414
        %v4418 = vadd.bf16 %v4378, %v4414
        %v4419 = vadd.bf16 %v4379, %v4414
        %v4420 = vadd.bf16 %v4380, %v4414
        %v4421 = vadd.bf16 %v4381, %v4414
        %v4422 = vadd.bf16 %v4382, %v4414
        %v4423 = vadd.bf16 %v4383, %v4414
        %v4424 = vadd.bf16 %v4384, %v4414
        %v4425 = vadd.bf16 %v4385, %v4414
        %v4426 = vadd.bf16 %v4386, %v4414
        %v4427 = vadd.bf16 %v4387, %v4414
        %v4428 = vadd.bf16 %v4388, %v4414
        %v4429 = vadd.bf16 %v4389, %v4414
        %v4430 = vadd.bf16 %v4390, %v4414
        %v4431 = vadd.bf16 %v4391, %v4414
        %v4432 = vadd.bf16 %v4392, %v4414
        %v4433 = vadd.bf16 %v4393, %v4414
        %v4434 = vadd.bf16 %v4394, %v4414
        %v4435 = vadd.bf16 %v4395, %v4414
        %v4436 = vadd.bf16 %v4396, %v4414
        %v4437 = vadd.bf16 %v4397, %v4414
        %v4438 = vadd.bf16 %v4398, %v4414
        %v4439 = vadd.bf16 %v4399, %v4414
        %v4440 = vadd.bf16 %v4400, %v4414
        %v4441 = vadd.bf16 %v4401, %v4414
        %v4442 = vadd.bf16 %v4402, %v4414
        %v4443 = vadd.bf16 %v4403, %v4414
        %v4444 = vadd.bf16 %v4404, %v4414
        %v4445 = vadd.bf16 %v4405, %v4414
        %v4446 = vadd.bf16 %v4406, %v4414
        %v4447 = vmax.bf16 %v4415, 0
        %v4448 = vmax.bf16 %v4416, 0
        %v4449 = vmax.bf16 %v4417, 0
        %v4450 = vmax.bf16 %v4418, 0
        %v4451 = vmax.bf16 %v4419, 0
        %v4452 = vmax.bf16 %v4420, 0
        %v4453 = vmax.bf16 %v4421, 0
        %v4454 = vmax.bf16 %v4422, 0
        %v4455 = vmax.bf16 %v4423, 0
        %v4456 = vmax.bf16 %v4424, 0
        %v4457 = vmax.bf16 %v4425, 0
        %v4458 = vmax.bf16 %v4426, 0
        %v4459 = vmax.bf16 %v4427, 0
        %v4460 = vmax.bf16 %v4428, 0
        %v4461 = vmax.bf16 %v4429, 0
        %v4462 = vmax.bf16 %v4430, 0
        %v4463 = vmax.bf16 %v4431, 0
        %v4464 = vmax.bf16 %v4432, 0
        %v4465 = vmax.bf16 %v4433, 0
        %v4466 = vmax.bf16 %v4434, 0
        %v4467 = vmax.bf16 %v4435, 0
        %v4468 = vmax.bf16 %v4436, 0
        %v4469 = vmax.bf16 %v4437, 0
        %v4470 = vmax.bf16 %v4438, 0
        %v4471 = vmax.bf16 %v4439, 0
        %v4472 = vmax.bf16 %v4440, 0
        %v4473 = vmax.bf16 %v4441, 0
        %v4474 = vmax.bf16 %v4442, 0
        %v4475 = vmax.bf16 %v4443, 0
        %v4476 = vmax.bf16 %v4444, 0
        %v4477 = vmax.bf16 %v4445, 0
        %v4478 = vmax.bf16 %v4446, 0
        %v4479 = vld [vmem:[%s612] sm:$0xf]
        %v4480 = vld [vmem:[%s612 + $0x4] sm:$0xf]
        %v4481 = vld [vmem:[%s612 + $0x8] sm:$0xf]
        %v4482 = vld [vmem:[%s612 + $0xc] sm:$0xf]
        %v4483 = vld [vmem:[%s612 + $0x10] sm:$0xf]
        %v4484 = vld [vmem:[%s612 + $0x14] sm:$0xf]
        %v4485 = vld [vmem:[%s612 + $0x18] sm:$0xf]
        %v4486 = vld [vmem:[%s612 + $0x1c] sm:$0xf]
        %v4487 = vld [vmem:[%s612 + $0x20] sm:$0xf]
        %v4488 = vld [vmem:[%s612 + $0x24] sm:$0xf]
        %v4489 = vld [vmem:[%s612 + $0x28] sm:$0xf]
        %v4490 = vld [vmem:[%s612 + $0x2c] sm:$0xf]
        %v4491 = vld [vmem:[%s612 + $0x30] sm:$0xf]
        %v4492 = vld [vmem:[%s612 + $0x34] sm:$0xf]
        %v4493 = vld [vmem:[%s612 + $0x38] sm:$0xf]
        %v4494 = vld [vmem:[%s612 + $0x3c] sm:$0xf]
        %v4495 = vld [vmem:[%s612 + $0x40] sm:$0xf]
        %v4496 = vld [vmem:[%s612 + $0x44] sm:$0xf]
        %v4497 = vld [vmem:[%s612 + $0x48] sm:$0xf]
        %v4498 = vld [vmem:[%s612 + $0x4c] sm:$0xf]
        %v4499 = vld [vmem:[%s612 + $0x50] sm:$0xf]
        %v4500 = vld [vmem:[%s612 + $0x54] sm:$0xf]
        %v4501 = vld [vmem:[%s612 + $0x58] sm:$0xf]
        %v4502 = vld [vmem:[%s612 + $0x5c] sm:$0xf]
        %v4503 = vld [vmem:[%s612 + $0x60] sm:$0xf]
        %v4504 = vld [vmem:[%s612 + $0x64] sm:$0xf]
        %v4505 = vld [vmem:[%s612 + $0x68] sm:$0xf]
        %v4506 = vld [vmem:[%s612 + $0x6c] sm:$0xf]
        %v4507 = vld [vmem:[%s612 + $0x70] sm:$0xf]
        %v4508 = vld [vmem:[%s612 + $0x74] sm:$0xf]
        %v4509 = vld [vmem:[%s612 + $0x78] sm:$0xf]
        %v4510 = vld [vmem:[%s612 + $0x7c] sm:$0xf]
        %v4511 = vld [vmem:[%s612 + $0x80] sm:$0xf]
        %v4512 = vld [vmem:[%s612 + $0x84] sm:$0xf]
        %v4513 = vld [vmem:[%s612 + $0x88] sm:$0xf]
        %v4514 = vld [vmem:[%s612 + $0x8c] sm:$0xf]
        %v4515 = vld [vmem:[%s612 + $0x90] sm:$0xf]
        %v4516 = vld [vmem:[%s612 + $0x94] sm:$0xf]
        %v4517 = vld [vmem:[%s612 + $0x98] sm:$0xf]
        %v4518 = vld [vmem:[%s612 + $0x9c] sm:$0xf]
        %v4519 = vld [vmem:[%s612 + $0xa0] sm:$0xf]
        %v4520 = vld [vmem:[%s612 + $0xa4] sm:$0xf]
        %v4521 = vld [vmem:[%s612 + $0xa8] sm:$0xf]
        %v4522 = vld [vmem:[%s612 + $0xac] sm:$0xf]
        %v4523 = vld [vmem:[%s612 + $0xb0] sm:$0xf]
        %v4524 = vld [vmem:[%s612 + $0xb4] sm:$0xf]
        %v4525 = vld [vmem:[%s612 + $0xb8] sm:$0xf]
        %v4526 = vld [vmem:[%s612 + $0xbc] sm:$0xf]
        %v4527 = vld [vmem:[%s612 + $0xc0] sm:$0xf]
        %v4528 = vld [vmem:[%s612 + $0xc4] sm:$0xf]
        %v4529 = vld [vmem:[%s612 + $0xc8] sm:$0xf]
        %v4530 = vld [vmem:[%s612 + $0xcc] sm:$0xf]
        %v4531 = vld [vmem:[%s612 + $0xd0] sm:$0xf]
        %v4532 = vld [vmem:[%s612 + $0xd4] sm:$0xf]
        %v4533 = vld [vmem:[%s612 + $0xd8] sm:$0xf]
        %v4534 = vld [vmem:[%s612 + $0xdc] sm:$0xf]
        %v4535 = vld [vmem:[%s612 + $0xe0] sm:$0xf]
        %v4536 = vld [vmem:[%s612 + $0xe4] sm:$0xf]
        %v4537 = vld [vmem:[%s612 + $0xe8] sm:$0xf]
        %v4538 = vld [vmem:[%s612 + $0xec] sm:$0xf]
        %v4539 = vld [vmem:[%s612 + $0xf0] sm:$0xf]
        %v4540 = vld [vmem:[%s612 + $0xf4] sm:$0xf]
        %v4541 = vld [vmem:[%s612 + $0xf8] sm:$0xf]
        %v4542 = vld [vmem:[%s612 + $0xfc] sm:$0xf]
        %4544 = vset.pattern.permute.xlu0 0
        %4545 = vperm.xlu0 %4544, %v4479
        %v4546 = vpop.permute.xlu0 %4545
        %v4549 = vunpack.c.l.s4 839922192
        %v4550 = vunpack.c.0.s8 %v4549
        %v4551 = vlaneseq
        %v4552 = vshrl.u32 %v4551, 7
        %v4553 = vsub.s32 %v4550, %v4552
        %v4554 = vrot.slane %v4546, %v4553
        %4556 = vset.pattern.permute.xlu0 0
        %4557 = vperm.xlu0 %4556, %v4480
        %v4558 = vpop.permute.xlu0 %4557
        %v4561 = vunpack.c.l.s4 839922192
        %v4562 = vunpack.c.0.s8 %v4561
        %v4563 = vlaneseq
        %v4564 = vshrl.u32 %v4563, 7
        %v4565 = vsub.s32 %v4562, %v4564
        %v4566 = vrot.slane %v4558, %v4565
        %4568 = vset.pattern.permute.xlu0 0
        %4569 = vperm.xlu0 %4568, %v4481
        %v4570 = vpop.permute.xlu0 %4569
        %v4573 = vunpack.c.l.s4 839922192
        %v4574 = vunpack.c.0.s8 %v4573
        %v4575 = vlaneseq
        %v4576 = vshrl.u32 %v4575, 7
        %v4577 = vsub.s32 %v4574, %v4576
        %v4578 = vrot.slane %v4570, %v4577
        %4580 = vset.pattern.permute.xlu0 0
        %4581 = vperm.xlu0 %4580, %v4482
        %v4582 = vpop.permute.xlu0 %4581
        %v4585 = vunpack.c.l.s4 839922192
        %v4586 = vunpack.c.0.s8 %v4585
        %v4587 = vlaneseq
        %v4588 = vshrl.u32 %v4587, 7
        %v4589 = vsub.s32 %v4586, %v4588
        %v4590 = vrot.slane %v4582, %v4589
        %4592 = vset.pattern.permute.xlu0 0
        %4593 = vperm.xlu0 %4592, %v4483
        %v4594 = vpop.permute.xlu0 %4593
        %v4597 = vunpack.c.l.s4 839922192
        %v4598 = vunpack.c.0.s8 %v4597
        %v4599 = vlaneseq
        %v4600 = vshrl.u32 %v4599, 7
        %v4601 = vsub.s32 %v4598, %v4600
        %v4602 = vrot.slane %v4594, %v4601
        %4604 = vset.pattern.permute.xlu0 0
        %4605 = vperm.xlu0 %4604, %v4484
        %v4606 = vpop.permute.xlu0 %4605
        %v4609 = vunpack.c.l.s4 839922192
        %v4610 = vunpack.c.0.s8 %v4609
        %v4611 = vlaneseq
        %v4612 = vshrl.u32 %v4611, 7
        %v4613 = vsub.s32 %v4610, %v4612
        %v4614 = vrot.slane %v4606, %v4613
        %4616 = vset.pattern.permute.xlu0 0
        %4617 = vperm.xlu0 %4616, %v4485
        %v4618 = vpop.permute.xlu0 %4617
        %v4621 = vunpack.c.l.s4 839922192
        %v4622 = vunpack.c.0.s8 %v4621
        %v4623 = vlaneseq
        %v4624 = vshrl.u32 %v4623, 7
        %v4625 = vsub.s32 %v4622, %v4624
        %v4626 = vrot.slane %v4618, %v4625
        %4628 = vset.pattern.permute.xlu0 0
        %4629 = vperm.xlu0 %4628, %v4486
        %v4630 = vpop.permute.xlu0 %4629
        %v4633 = vunpack.c.l.s4 839922192
        %v4634 = vunpack.c.0.s8 %v4633
        %v4635 = vlaneseq
        %v4636 = vshrl.u32 %v4635, 7
        %v4637 = vsub.s32 %v4634, %v4636
        %v4638 = vrot.slane %v4630, %v4637
        %4640 = vset.pattern.permute.xlu0 0
        %4641 = vperm.xlu0 %4640, %v4487
        %v4642 = vpop.permute.xlu0 %4641
        %v4645 = vunpack.c.l.s4 839922192
        %v4646 = vunpack.c.0.s8 %v4645
        %v4647 = vlaneseq
        %v4648 = vshrl.u32 %v4647, 7
        %v4649 = vsub.s32 %v4646, %v4648
        %v4650 = vrot.slane %v4642, %v4649
        %4652 = vset.pattern.permute.xlu0 0
        %4653 = vperm.xlu0 %4652, %v4488
        %v4654 = vpop.permute.xlu0 %4653
        %v4657 = vunpack.c.l.s4 839922192
        %v4658 = vunpack.c.0.s8 %v4657
        %v4659 = vlaneseq
        %v4660 = vshrl.u32 %v4659, 7
        %v4661 = vsub.s32 %v4658, %v4660
        %v4662 = vrot.slane %v4654, %v4661
        %4664 = vset.pattern.permute.xlu0 0
        %4665 = vperm.xlu0 %4664, %v4489
        %v4666 = vpop.permute.xlu0 %4665
        %v4669 = vunpack.c.l.s4 839922192
        %v4670 = vunpack.c.0.s8 %v4669
        %v4671 = vlaneseq
        %v4672 = vshrl.u32 %v4671, 7
        %v4673 = vsub.s32 %v4670, %v4672
        %v4674 = vrot.slane %v4666, %v4673
        %4676 = vset.pattern.permute.xlu0 0
        %4677 = vperm.xlu0 %4676, %v4490
        %v4678 = vpop.permute.xlu0 %4677
        %v4681 = vunpack.c.l.s4 839922192
        %v4682 = vunpack.c.0.s8 %v4681
        %v4683 = vlaneseq
        %v4684 = vshrl.u32 %v4683, 7
        %v4685 = vsub.s32 %v4682, %v4684
        %v4686 = vrot.slane %v4678, %v4685
        %4688 = vset.pattern.permute.xlu0 0
        %4689 = vperm.xlu0 %4688, %v4491
        %v4690 = vpop.permute.xlu0 %4689
        %v4693 = vunpack.c.l.s4 839922192
        %v4694 = vunpack.c.0.s8 %v4693
        %v4695 = vlaneseq
        %v4696 = vshrl.u32 %v4695, 7
        %v4697 = vsub.s32 %v4694, %v4696
        %v4698 = vrot.slane %v4690, %v4697
        %4700 = vset.pattern.permute.xlu0 0
        %4701 = vperm.xlu0 %4700, %v4492
        %v4702 = vpop.permute.xlu0 %4701
        %v4705 = vunpack.c.l.s4 839922192
        %v4706 = vunpack.c.0.s8 %v4705
        %v4707 = vlaneseq
        %v4708 = vshrl.u32 %v4707, 7
        %v4709 = vsub.s32 %v4706, %v4708
        %v4710 = vrot.slane %v4702, %v4709
        %4712 = vset.pattern.permute.xlu0 0
        %4713 = vperm.xlu0 %4712, %v4493
        %v4714 = vpop.permute.xlu0 %4713
        %v4717 = vunpack.c.l.s4 839922192
        %v4718 = vunpack.c.0.s8 %v4717
        %v4719 = vlaneseq
        %v4720 = vshrl.u32 %v4719, 7
        %v4721 = vsub.s32 %v4718, %v4720
        %v4722 = vrot.slane %v4714, %v4721
        %4724 = vset.pattern.permute.xlu0 0
        %4725 = vperm.xlu0 %4724, %v4494
        %v4726 = vpop.permute.xlu0 %4725
        %v4729 = vunpack.c.l.s4 839922192
        %v4730 = vunpack.c.0.s8 %v4729
        %v4731 = vlaneseq
        %v4732 = vshrl.u32 %v4731, 7
        %v4733 = vsub.s32 %v4730, %v4732
        %v4734 = vrot.slane %v4726, %v4733
        %4736 = vset.pattern.permute.xlu0 0
        %4737 = vperm.xlu0 %4736, %v4495
        %v4738 = vpop.permute.xlu0 %4737
        %v4741 = vunpack.c.l.s4 839922192
        %v4742 = vunpack.c.0.s8 %v4741
        %v4743 = vlaneseq
        %v4744 = vshrl.u32 %v4743, 7
        %v4745 = vsub.s32 %v4742, %v4744
        %v4746 = vrot.slane %v4738, %v4745
        %4748 = vset.pattern.permute.xlu0 0
        %4749 = vperm.xlu0 %4748, %v4496
        %v4750 = vpop.permute.xlu0 %4749
        %v4753 = vunpack.c.l.s4 839922192
        %v4754 = vunpack.c.0.s8 %v4753
        %v4755 = vlaneseq
        %v4756 = vshrl.u32 %v4755, 7
        %v4757 = vsub.s32 %v4754, %v4756
        %v4758 = vrot.slane %v4750, %v4757
        %4760 = vset.pattern.permute.xlu0 0
        %4761 = vperm.xlu0 %4760, %v4497
        %v4762 = vpop.permute.xlu0 %4761
        %v4765 = vunpack.c.l.s4 839922192
        %v4766 = vunpack.c.0.s8 %v4765
        %v4767 = vlaneseq
        %v4768 = vshrl.u32 %v4767, 7
        %v4769 = vsub.s32 %v4766, %v4768
        %v4770 = vrot.slane %v4762, %v4769
        %4772 = vset.pattern.permute.xlu0 0
        %4773 = vperm.xlu0 %4772, %v4498
        %v4774 = vpop.permute.xlu0 %4773
        %v4777 = vunpack.c.l.s4 839922192
        %v4778 = vunpack.c.0.s8 %v4777
        %v4779 = vlaneseq
        %v4780 = vshrl.u32 %v4779, 7
        %v4781 = vsub.s32 %v4778, %v4780
        %v4782 = vrot.slane %v4774, %v4781
        %4784 = vset.pattern.permute.xlu0 0
        %4785 = vperm.xlu0 %4784, %v4499
        %v4786 = vpop.permute.xlu0 %4785
        %v4789 = vunpack.c.l.s4 839922192
        %v4790 = vunpack.c.0.s8 %v4789
        %v4791 = vlaneseq
        %v4792 = vshrl.u32 %v4791, 7
        %v4793 = vsub.s32 %v4790, %v4792
        %v4794 = vrot.slane %v4786, %v4793
        %4796 = vset.pattern.permute.xlu0 0
        %4797 = vperm.xlu0 %4796, %v4500
        %v4798 = vpop.permute.xlu0 %4797
        %v4801 = vunpack.c.l.s4 839922192
        %v4802 = vunpack.c.0.s8 %v4801
        %v4803 = vlaneseq
        %v4804 = vshrl.u32 %v4803, 7
        %v4805 = vsub.s32 %v4802, %v4804
        %v4806 = vrot.slane %v4798, %v4805
        %4808 = vset.pattern.permute.xlu0 0
        %4809 = vperm.xlu0 %4808, %v4501
        %v4810 = vpop.permute.xlu0 %4809
        %v4813 = vunpack.c.l.s4 839922192
        %v4814 = vunpack.c.0.s8 %v4813
        %v4815 = vlaneseq
        %v4816 = vshrl.u32 %v4815, 7
        %v4817 = vsub.s32 %v4814, %v4816
        %v4818 = vrot.slane %v4810, %v4817
        %4820 = vset.pattern.permute.xlu0 0
        %4821 = vperm.xlu0 %4820, %v4502
        %v4822 = vpop.permute.xlu0 %4821
        %v4825 = vunpack.c.l.s4 839922192
        %v4826 = vunpack.c.0.s8 %v4825
        %v4827 = vlaneseq
        %v4828 = vshrl.u32 %v4827, 7
        %v4829 = vsub.s32 %v4826, %v4828
        %v4830 = vrot.slane %v4822, %v4829
        %4832 = vset.pattern.permute.xlu0 0
        %4833 = vperm.xlu0 %4832, %v4503
        %v4834 = vpop.permute.xlu0 %4833
        %v4837 = vunpack.c.l.s4 839922192
        %v4838 = vunpack.c.0.s8 %v4837
        %v4839 = vlaneseq
        %v4840 = vshrl.u32 %v4839, 7
        %v4841 = vsub.s32 %v4838, %v4840
        %v4842 = vrot.slane %v4834, %v4841
        %4844 = vset.pattern.permute.xlu0 0
        %4845 = vperm.xlu0 %4844, %v4504
        %v4846 = vpop.permute.xlu0 %4845
        %v4849 = vunpack.c.l.s4 839922192
        %v4850 = vunpack.c.0.s8 %v4849
        %v4851 = vlaneseq
        %v4852 = vshrl.u32 %v4851, 7
        %v4853 = vsub.s32 %v4850, %v4852
        %v4854 = vrot.slane %v4846, %v4853
        %4856 = vset.pattern.permute.xlu0 0
        %4857 = vperm.xlu0 %4856, %v4505
        %v4858 = vpop.permute.xlu0 %4857
        %v4861 = vunpack.c.l.s4 839922192
        %v4862 = vunpack.c.0.s8 %v4861
        %v4863 = vlaneseq
        %v4864 = vshrl.u32 %v4863, 7
        %v4865 = vsub.s32 %v4862, %v4864
        %v4866 = vrot.slane %v4858, %v4865
        %4868 = vset.pattern.permute.xlu0 0
        %4869 = vperm.xlu0 %4868, %v4506
        %v4870 = vpop.permute.xlu0 %4869
        %v4873 = vunpack.c.l.s4 839922192
        %v4874 = vunpack.c.0.s8 %v4873
        %v4875 = vlaneseq
        %v4876 = vshrl.u32 %v4875, 7
        %v4877 = vsub.s32 %v4874, %v4876
        %v4878 = vrot.slane %v4870, %v4877
        %4880 = vset.pattern.permute.xlu0 0
        %4881 = vperm.xlu0 %4880, %v4507
        %v4882 = vpop.permute.xlu0 %4881
        %v4885 = vunpack.c.l.s4 839922192
        %v4886 = vunpack.c.0.s8 %v4885
        %v4887 = vlaneseq
        %v4888 = vshrl.u32 %v4887, 7
        %v4889 = vsub.s32 %v4886, %v4888
        %v4890 = vrot.slane %v4882, %v4889
        %4892 = vset.pattern.permute.xlu0 0
        %4893 = vperm.xlu0 %4892, %v4508
        %v4894 = vpop.permute.xlu0 %4893
        %v4897 = vunpack.c.l.s4 839922192
        %v4898 = vunpack.c.0.s8 %v4897
        %v4899 = vlaneseq
        %v4900 = vshrl.u32 %v4899, 7
        %v4901 = vsub.s32 %v4898, %v4900
        %v4902 = vrot.slane %v4894, %v4901
        %4904 = vset.pattern.permute.xlu0 0
        %4905 = vperm.xlu0 %4904, %v4509
        %v4906 = vpop.permute.xlu0 %4905
        %v4909 = vunpack.c.l.s4 839922192
        %v4910 = vunpack.c.0.s8 %v4909
        %v4911 = vlaneseq
        %v4912 = vshrl.u32 %v4911, 7
        %v4913 = vsub.s32 %v4910, %v4912
        %v4914 = vrot.slane %v4906, %v4913
        %4916 = vset.pattern.permute.xlu0 0
        %4917 = vperm.xlu0 %4916, %v4510
        %v4918 = vpop.permute.xlu0 %4917
        %v4921 = vunpack.c.l.s4 839922192
        %v4922 = vunpack.c.0.s8 %v4921
        %v4923 = vlaneseq
        %v4924 = vshrl.u32 %v4923, 7
        %v4925 = vsub.s32 %v4922, %v4924
        %v4926 = vrot.slane %v4918, %v4925
        %4928 = vset.pattern.permute.xlu0 0
        %4929 = vperm.xlu0 %4928, %v4511
        %v4930 = vpop.permute.xlu0 %4929
        %v4933 = vunpack.c.l.s4 839922192
        %v4934 = vunpack.c.0.s8 %v4933
        %v4935 = vlaneseq
        %v4936 = vshrl.u32 %v4935, 7
        %v4937 = vsub.s32 %v4934, %v4936
        %v4938 = vrot.slane %v4930, %v4937
        %4940 = vset.pattern.permute.xlu0 0
        %4941 = vperm.xlu0 %4940, %v4512
        %v4942 = vpop.permute.xlu0 %4941
        %v4945 = vunpack.c.l.s4 839922192
        %v4946 = vunpack.c.0.s8 %v4945
        %v4947 = vlaneseq
        %v4948 = vshrl.u32 %v4947, 7
        %v4949 = vsub.s32 %v4946, %v4948
        %v4950 = vrot.slane %v4942, %v4949
        %4952 = vset.pattern.permute.xlu0 0
        %4953 = vperm.xlu0 %4952, %v4513
        %v4954 = vpop.permute.xlu0 %4953
        %v4957 = vunpack.c.l.s4 839922192
        %v4958 = vunpack.c.0.s8 %v4957
        %v4959 = vlaneseq
        %v4960 = vshrl.u32 %v4959, 7
        %v4961 = vsub.s32 %v4958, %v4960
        %v4962 = vrot.slane %v4954, %v4961
        %4964 = vset.pattern.permute.xlu0 0
        %4965 = vperm.xlu0 %4964, %v4514
        %v4966 = vpop.permute.xlu0 %4965
        %v4969 = vunpack.c.l.s4 839922192
        %v4970 = vunpack.c.0.s8 %v4969
        %v4971 = vlaneseq
        %v4972 = vshrl.u32 %v4971, 7
        %v4973 = vsub.s32 %v4970, %v4972
        %v4974 = vrot.slane %v4966, %v4973
        %4976 = vset.pattern.permute.xlu0 0
        %4977 = vperm.xlu0 %4976, %v4515
        %v4978 = vpop.permute.xlu0 %4977
        %v4981 = vunpack.c.l.s4 839922192
        %v4982 = vunpack.c.0.s8 %v4981
        %v4983 = vlaneseq
        %v4984 = vshrl.u32 %v4983, 7
        %v4985 = vsub.s32 %v4982, %v4984
        %v4986 = vrot.slane %v4978, %v4985
        %4988 = vset.pattern.permute.xlu0 0
        %4989 = vperm.xlu0 %4988, %v4516
        %v4990 = vpop.permute.xlu0 %4989
        %v4993 = vunpack.c.l.s4 839922192
        %v4994 = vunpack.c.0.s8 %v4993
        %v4995 = vlaneseq
        %v4996 = vshrl.u32 %v4995, 7
        %v4997 = vsub.s32 %v4994, %v4996
        %v4998 = vrot.slane %v4990, %v4997
        %5000 = vset.pattern.permute.xlu0 0
        %5001 = vperm.xlu0 %5000, %v4517
        %v5002 = vpop.permute.xlu0 %5001
        %v5005 = vunpack.c.l.s4 839922192
        %v5006 = vunpack.c.0.s8 %v5005
        %v5007 = vlaneseq
        %v5008 = vshrl.u32 %v5007, 7
        %v5009 = vsub.s32 %v5006, %v5008
        %v5010 = vrot.slane %v5002, %v5009
        %5012 = vset.pattern.permute.xlu0 0
        %5013 = vperm.xlu0 %5012, %v4518
        %v5014 = vpop.permute.xlu0 %5013
        %v5017 = vunpack.c.l.s4 839922192
        %v5018 = vunpack.c.0.s8 %v5017
        %v5019 = vlaneseq
        %v5020 = vshrl.u32 %v5019, 7
        %v5021 = vsub.s32 %v5018, %v5020
        %v5022 = vrot.slane %v5014, %v5021
        %5024 = vset.pattern.permute.xlu0 0
        %5025 = vperm.xlu0 %5024, %v4519
        %v5026 = vpop.permute.xlu0 %5025
        %v5029 = vunpack.c.l.s4 839922192
        %v5030 = vunpack.c.0.s8 %v5029
        %v5031 = vlaneseq
        %v5032 = vshrl.u32 %v5031, 7
        %v5033 = vsub.s32 %v5030, %v5032
        %v5034 = vrot.slane %v5026, %v5033
        %5036 = vset.pattern.permute.xlu0 0
        %5037 = vperm.xlu0 %5036, %v4520
        %v5038 = vpop.permute.xlu0 %5037
        %v5041 = vunpack.c.l.s4 839922192
        %v5042 = vunpack.c.0.s8 %v5041
        %v5043 = vlaneseq
        %v5044 = vshrl.u32 %v5043, 7
        %v5045 = vsub.s32 %v5042, %v5044
        %v5046 = vrot.slane %v5038, %v5045
        %5048 = vset.pattern.permute.xlu0 0
        %5049 = vperm.xlu0 %5048, %v4521
        %v5050 = vpop.permute.xlu0 %5049
        %v5053 = vunpack.c.l.s4 839922192
        %v5054 = vunpack.c.0.s8 %v5053
        %v5055 = vlaneseq
        %v5056 = vshrl.u32 %v5055, 7
        %v5057 = vsub.s32 %v5054, %v5056
        %v5058 = vrot.slane %v5050, %v5057
        %5060 = vset.pattern.permute.xlu0 0
        %5061 = vperm.xlu0 %5060, %v4522
        %v5062 = vpop.permute.xlu0 %5061
        %v5065 = vunpack.c.l.s4 839922192
        %v5066 = vunpack.c.0.s8 %v5065
        %v5067 = vlaneseq
        %v5068 = vshrl.u32 %v5067, 7
        %v5069 = vsub.s32 %v5066, %v5068
        %v5070 = vrot.slane %v5062, %v5069
        %5072 = vset.pattern.permute.xlu0 0
        %5073 = vperm.xlu0 %5072, %v4523
        %v5074 = vpop.permute.xlu0 %5073
        %v5077 = vunpack.c.l.s4 839922192
        %v5078 = vunpack.c.0.s8 %v5077
        %v5079 = vlaneseq
        %v5080 = vshrl.u32 %v5079, 7
        %v5081 = vsub.s32 %v5078, %v5080
        %v5082 = vrot.slane %v5074, %v5081
        %5084 = vset.pattern.permute.xlu0 0
        %5085 = vperm.xlu0 %5084, %v4524
        %v5086 = vpop.permute.xlu0 %5085
        %v5089 = vunpack.c.l.s4 839922192
        %v5090 = vunpack.c.0.s8 %v5089
        %v5091 = vlaneseq
        %v5092 = vshrl.u32 %v5091, 7
        %v5093 = vsub.s32 %v5090, %v5092
        %v5094 = vrot.slane %v5086, %v5093
        %5096 = vset.pattern.permute.xlu0 0
        %5097 = vperm.xlu0 %5096, %v4525
        %v5098 = vpop.permute.xlu0 %5097
        %v5101 = vunpack.c.l.s4 839922192
        %v5102 = vunpack.c.0.s8 %v5101
        %v5103 = vlaneseq
        %v5104 = vshrl.u32 %v5103, 7
        %v5105 = vsub.s32 %v5102, %v5104
        %v5106 = vrot.slane %v5098, %v5105
        %5108 = vset.pattern.permute.xlu0 0
        %5109 = vperm.xlu0 %5108, %v4526
        %v5110 = vpop.permute.xlu0 %5109
        %v5113 = vunpack.c.l.s4 839922192
        %v5114 = vunpack.c.0.s8 %v5113
        %v5115 = vlaneseq
        %v5116 = vshrl.u32 %v5115, 7
        %v5117 = vsub.s32 %v5114, %v5116
        %v5118 = vrot.slane %v5110, %v5117
        %5120 = vset.pattern.permute.xlu0 0
        %5121 = vperm.xlu0 %5120, %v4527
        %v5122 = vpop.permute.xlu0 %5121
        %v5125 = vunpack.c.l.s4 839922192
        %v5126 = vunpack.c.0.s8 %v5125
        %v5127 = vlaneseq
        %v5128 = vshrl.u32 %v5127, 7
        %v5129 = vsub.s32 %v5126, %v5128
        %v5130 = vrot.slane %v5122, %v5129
        %5132 = vset.pattern.permute.xlu0 0
        %5133 = vperm.xlu0 %5132, %v4528
        %v5134 = vpop.permute.xlu0 %5133
        %v5137 = vunpack.c.l.s4 839922192
        %v5138 = vunpack.c.0.s8 %v5137
        %v5139 = vlaneseq
        %v5140 = vshrl.u32 %v5139, 7
        %v5141 = vsub.s32 %v5138, %v5140
        %v5142 = vrot.slane %v5134, %v5141
        %5144 = vset.pattern.permute.xlu0 0
        %5145 = vperm.xlu0 %5144, %v4529
        %v5146 = vpop.permute.xlu0 %5145
        %v5149 = vunpack.c.l.s4 839922192
        %v5150 = vunpack.c.0.s8 %v5149
        %v5151 = vlaneseq
        %v5152 = vshrl.u32 %v5151, 7
        %v5153 = vsub.s32 %v5150, %v5152
        %v5154 = vrot.slane %v5146, %v5153
        %5156 = vset.pattern.permute.xlu0 0
        %5157 = vperm.xlu0 %5156, %v4530
        %v5158 = vpop.permute.xlu0 %5157
        %v5161 = vunpack.c.l.s4 839922192
        %v5162 = vunpack.c.0.s8 %v5161
        %v5163 = vlaneseq
        %v5164 = vshrl.u32 %v5163, 7
        %v5165 = vsub.s32 %v5162, %v5164
        %v5166 = vrot.slane %v5158, %v5165
        %5168 = vset.pattern.permute.xlu0 0
        %5169 = vperm.xlu0 %5168, %v4531
        %v5170 = vpop.permute.xlu0 %5169
        %v5173 = vunpack.c.l.s4 839922192
        %v5174 = vunpack.c.0.s8 %v5173
        %v5175 = vlaneseq
        %v5176 = vshrl.u32 %v5175, 7
        %v5177 = vsub.s32 %v5174, %v5176
        %v5178 = vrot.slane %v5170, %v5177
        %5180 = vset.pattern.permute.xlu0 0
        %5181 = vperm.xlu0 %5180, %v4532
        %v5182 = vpop.permute.xlu0 %5181
        %v5185 = vunpack.c.l.s4 839922192
        %v5186 = vunpack.c.0.s8 %v5185
        %v5187 = vlaneseq
        %v5188 = vshrl.u32 %v5187, 7
        %v5189 = vsub.s32 %v5186, %v5188
        %v5190 = vrot.slane %v5182, %v5189
        %5192 = vset.pattern.permute.xlu0 0
        %5193 = vperm.xlu0 %5192, %v4533
        %v5194 = vpop.permute.xlu0 %5193
        %v5197 = vunpack.c.l.s4 839922192
        %v5198 = vunpack.c.0.s8 %v5197
        %v5199 = vlaneseq
        %v5200 = vshrl.u32 %v5199, 7
        %v5201 = vsub.s32 %v5198, %v5200
        %v5202 = vrot.slane %v5194, %v5201
        %5204 = vset.pattern.permute.xlu0 0
        %5205 = vperm.xlu0 %5204, %v4534
        %v5206 = vpop.permute.xlu0 %5205
        %v5209 = vunpack.c.l.s4 839922192
        %v5210 = vunpack.c.0.s8 %v5209
        %v5211 = vlaneseq
        %v5212 = vshrl.u32 %v5211, 7
        %v5213 = vsub.s32 %v5210, %v5212
        %v5214 = vrot.slane %v5206, %v5213
        %5216 = vset.pattern.permute.xlu0 0
        %5217 = vperm.xlu0 %5216, %v4535
        %v5218 = vpop.permute.xlu0 %5217
        %v5221 = vunpack.c.l.s4 839922192
        %v5222 = vunpack.c.0.s8 %v5221
        %v5223 = vlaneseq
        %v5224 = vshrl.u32 %v5223, 7
        %v5225 = vsub.s32 %v5222, %v5224
        %v5226 = vrot.slane %v5218, %v5225
        %5228 = vset.pattern.permute.xlu0 0
        %5229 = vperm.xlu0 %5228, %v4536
        %v5230 = vpop.permute.xlu0 %5229
        %v5233 = vunpack.c.l.s4 839922192
        %v5234 = vunpack.c.0.s8 %v5233
        %v5235 = vlaneseq
        %v5236 = vshrl.u32 %v5235, 7
        %v5237 = vsub.s32 %v5234, %v5236
        %v5238 = vrot.slane %v5230, %v5237
        %5240 = vset.pattern.permute.xlu0 0
        %5241 = vperm.xlu0 %5240, %v4537
        %v5242 = vpop.permute.xlu0 %5241
        %v5245 = vunpack.c.l.s4 839922192
        %v5246 = vunpack.c.0.s8 %v5245
        %v5247 = vlaneseq
        %v5248 = vshrl.u32 %v5247, 7
        %v5249 = vsub.s32 %v5246, %v5248
        %v5250 = vrot.slane %v5242, %v5249
        %5252 = vset.pattern.permute.xlu0 0
        %5253 = vperm.xlu0 %5252, %v4538
        %v5254 = vpop.permute.xlu0 %5253
        %v5257 = vunpack.c.l.s4 839922192
        %v5258 = vunpack.c.0.s8 %v5257
        %v5259 = vlaneseq
        %v5260 = vshrl.u32 %v5259, 7
        %v5261 = vsub.s32 %v5258, %v5260
        %v5262 = vrot.slane %v5254, %v5261
        %5264 = vset.pattern.permute.xlu0 0
        %5265 = vperm.xlu0 %5264, %v4539
        %v5266 = vpop.permute.xlu0 %5265
        %v5269 = vunpack.c.l.s4 839922192
        %v5270 = vunpack.c.0.s8 %v5269
        %v5271 = vlaneseq
        %v5272 = vshrl.u32 %v5271, 7
        %v5273 = vsub.s32 %v5270, %v5272
        %v5274 = vrot.slane %v5266, %v5273
        %5276 = vset.pattern.permute.xlu0 0
        %5277 = vperm.xlu0 %5276, %v4540
        %v5278 = vpop.permute.xlu0 %5277
        %v5281 = vunpack.c.l.s4 839922192
        %v5282 = vunpack.c.0.s8 %v5281
        %v5283 = vlaneseq
        %v5284 = vshrl.u32 %v5283, 7
        %v5285 = vsub.s32 %v5282, %v5284
        %v5286 = vrot.slane %v5278, %v5285
        %5288 = vset.pattern.permute.xlu0 0
        %5289 = vperm.xlu0 %5288, %v4541
        %v5290 = vpop.permute.xlu0 %5289
        %v5293 = vunpack.c.l.s4 839922192
        %v5294 = vunpack.c.0.s8 %v5293
        %v5295 = vlaneseq
        %v5296 = vshrl.u32 %v5295, 7
        %v5297 = vsub.s32 %v5294, %v5296
        %v5298 = vrot.slane %v5290, %v5297
        %5300 = vset.pattern.permute.xlu0 0
        %5301 = vperm.xlu0 %5300, %v4542
        %v5302 = vpop.permute.xlu0 %5301
        %v5305 = vunpack.c.l.s4 839922192
        %v5306 = vunpack.c.0.s8 %v5305
        %v5307 = vlaneseq
        %v5308 = vshrl.u32 %v5307, 7
        %v5309 = vsub.s32 %v5306, %v5308
        %v5310 = vrot.slane %v5302, %v5309
        %v5375 = vunpack.c.l.b16 %v4554
        %v5376 = vunpack.c.l.b16 %v4566
        %v5377 = vunpack.c.l.b16 %v4578
        %v5378 = vunpack.c.l.b16 %v4590
        %v5379 = vunpack.c.l.b16 %v4602
        %v5380 = vunpack.c.l.b16 %v4614
        %v5381 = vunpack.c.l.b16 %v4626
        %v5382 = vunpack.c.l.b16 %v4638
        %v5383 = vunpack.c.l.b16 %v4650
        %v5384 = vunpack.c.l.b16 %v4662
        %v5385 = vunpack.c.l.b16 %v4674
        %v5386 = vunpack.c.l.b16 %v4686
        %v5387 = vunpack.c.l.b16 %v4698
        %v5388 = vunpack.c.l.b16 %v4710
        %v5389 = vunpack.c.l.b16 %v4722
        %v5390 = vunpack.c.l.b16 %v4734
        %v5391 = vunpack.c.l.b16 %v4746
        %v5392 = vunpack.c.l.b16 %v4758
        %v5393 = vunpack.c.l.b16 %v4770
        %v5394 = vunpack.c.l.b16 %v4782
        %v5395 = vunpack.c.l.b16 %v4794
        %v5396 = vunpack.c.l.b16 %v4806
        %v5397 = vunpack.c.l.b16 %v4818
        %v5398 = vunpack.c.l.b16 %v4830
        %v5399 = vunpack.c.l.b16 %v4842
        %v5400 = vunpack.c.l.b16 %v4854
        %v5401 = vunpack.c.l.b16 %v4866
        %v5402 = vunpack.c.l.b16 %v4878
        %v5403 = vunpack.c.l.b16 %v4890
        %v5404 = vunpack.c.l.b16 %v4902
        %v5405 = vunpack.c.l.b16 %v4914
        %v5406 = vunpack.c.l.b16 %v4926
        %v5407 = vunpack.c.l.b16 %v4938
        %v5408 = vunpack.c.l.b16 %v4950
        %v5409 = vunpack.c.l.b16 %v4962
        %v5410 = vunpack.c.l.b16 %v4974
        %v5411 = vunpack.c.l.b16 %v4986
        %v5412 = vunpack.c.l.b16 %v4998
        %v5413 = vunpack.c.l.b16 %v5010
        %v5414 = vunpack.c.l.b16 %v5022
        %v5415 = vunpack.c.l.b16 %v5034
        %v5416 = vunpack.c.l.b16 %v5046
        %v5417 = vunpack.c.l.b16 %v5058
        %v5418 = vunpack.c.l.b16 %v5070
        %v5419 = vunpack.c.l.b16 %v5082
        %v5420 = vunpack.c.l.b16 %v5094
        %v5421 = vunpack.c.l.b16 %v5106
        %v5422 = vunpack.c.l.b16 %v5118
        %v5423 = vunpack.c.l.b16 %v5130
        %v5424 = vunpack.c.l.b16 %v5142
        %v5425 = vunpack.c.l.b16 %v5154
        %v5426 = vunpack.c.l.b16 %v5166
        %v5427 = vunpack.c.l.b16 %v5178
        %v5428 = vunpack.c.l.b16 %v5190
        %v5429 = vunpack.c.l.b16 %v5202
        %v5430 = vunpack.c.l.b16 %v5214
        %v5431 = vunpack.c.l.b16 %v5226
        %v5432 = vunpack.c.l.b16 %v5238
        %v5433 = vunpack.c.l.b16 %v5250
        %v5434 = vunpack.c.l.b16 %v5262
        %v5435 = vunpack.c.l.b16 %v5274
        %v5436 = vunpack.c.l.b16 %v5286
        %v5437 = vunpack.c.l.b16 %v5298
        %v5438 = vunpack.c.l.b16 %v5310
        %v5439 = vpack.c.b16 %v5376, %v5375
        %v5440 = vpack.c.b16 %v5378, %v5377
        %v5441 = vpack.c.b16 %v5380, %v5379
        %v5442 = vpack.c.b16 %v5382, %v5381
        %v5443 = vpack.c.b16 %v5384, %v5383
        %v5444 = vpack.c.b16 %v5386, %v5385
        %v5445 = vpack.c.b16 %v5388, %v5387
        %v5446 = vpack.c.b16 %v5390, %v5389
        %v5447 = vpack.c.b16 %v5392, %v5391
        %v5448 = vpack.c.b16 %v5394, %v5393
        %v5449 = vpack.c.b16 %v5396, %v5395
        %v5450 = vpack.c.b16 %v5398, %v5397
        %v5451 = vpack.c.b16 %v5400, %v5399
        %v5452 = vpack.c.b16 %v5402, %v5401
        %v5453 = vpack.c.b16 %v5404, %v5403
        %v5454 = vpack.c.b16 %v5406, %v5405
        %v5455 = vpack.c.b16 %v5408, %v5407
        %v5456 = vpack.c.b16 %v5410, %v5409
        %v5457 = vpack.c.b16 %v5412, %v5411
        %v5458 = vpack.c.b16 %v5414, %v5413
        %v5459 = vpack.c.b16 %v5416, %v5415
        %v5460 = vpack.c.b16 %v5418, %v5417
        %v5461 = vpack.c.b16 %v5420, %v5419
        %v5462 = vpack.c.b16 %v5422, %v5421
        %v5463 = vpack.c.b16 %v5424, %v5423
        %v5464 = vpack.c.b16 %v5426, %v5425
        %v5465 = vpack.c.b16 %v5428, %v5427
        %v5466 = vpack.c.b16 %v5430, %v5429
        %v5467 = vpack.c.b16 %v5432, %v5431
        %v5468 = vpack.c.b16 %v5434, %v5433
        %v5469 = vpack.c.b16 %v5436, %v5435
        %v5470 = vpack.c.b16 %v5438, %v5437
        %v5503 = vmul.bf16 %v4447, %v5439
        %v5504 = vmul.bf16 %v4448, %v5440
        %v5505 = vmul.bf16 %v4449, %v5441
        %v5506 = vmul.bf16 %v4450, %v5442
        %v5507 = vmul.bf16 %v4451, %v5443
        %v5508 = vmul.bf16 %v4452, %v5444
        %v5509 = vmul.bf16 %v4453, %v5445
        %v5510 = vmul.bf16 %v4454, %v5446
        %v5511 = vmul.bf16 %v4455, %v5447
        %v5512 = vmul.bf16 %v4456, %v5448
        %v5513 = vmul.bf16 %v4457, %v5449
        %v5514 = vmul.bf16 %v4458, %v5450
        %v5515 = vmul.bf16 %v4459, %v5451
        %v5516 = vmul.bf16 %v4460, %v5452
        %v5517 = vmul.bf16 %v4461, %v5453
        %v5518 = vmul.bf16 %v4462, %v5454
        %v5519 = vmul.bf16 %v4463, %v5455
        %v5520 = vmul.bf16 %v4464, %v5456
        %v5521 = vmul.bf16 %v4465, %v5457
        %v5522 = vmul.bf16 %v4466, %v5458
        %v5523 = vmul.bf16 %v4467, %v5459
        %v5524 = vmul.bf16 %v4468, %v5460
        %v5525 = vmul.bf16 %v4469, %v5461
        %v5526 = vmul.bf16 %v4470, %v5462
        %v5527 = vmul.bf16 %v4471, %v5463
        %v5528 = vmul.bf16 %v4472, %v5464
        %v5529 = vmul.bf16 %v4473, %v5465
        %v5530 = vmul.bf16 %v4474, %v5466
        %v5531 = vmul.bf16 %v4475, %v5467
        %v5532 = vmul.bf16 %v4476, %v5468
        %v5533 = vmul.bf16 %v4477, %v5469
        %v5534 = vmul.bf16 %v4478, %v5470
        %v5567 = vunpack.c.l.b16 %v5503
        %v5568 = vunpack.c.h.b16 %v5503
        %v5569 = vunpack.c.l.b16 %v5504
        %v5570 = vunpack.c.h.b16 %v5504
        %v5571 = vunpack.c.l.b16 %v5505
        %v5572 = vunpack.c.h.b16 %v5505
        %v5573 = vunpack.c.l.b16 %v5506
        %v5574 = vunpack.c.h.b16 %v5506
        %v5575 = vunpack.c.l.b16 %v5507
        %v5576 = vunpack.c.h.b16 %v5507
        %v5577 = vunpack.c.l.b16 %v5508
        %v5578 = vunpack.c.h.b16 %v5508
        %v5579 = vunpack.c.l.b16 %v5509
        %v5580 = vunpack.c.h.b16 %v5509
        %v5581 = vunpack.c.l.b16 %v5510
        %v5582 = vunpack.c.h.b16 %v5510
        %v5583 = vunpack.c.l.b16 %v5511
        %v5584 = vunpack.c.h.b16 %v5511
        %v5585 = vunpack.c.l.b16 %v5512
        %v5586 = vunpack.c.h.b16 %v5512
        %v5587 = vunpack.c.l.b16 %v5513
        %v5588 = vunpack.c.h.b16 %v5513
        %v5589 = vunpack.c.l.b16 %v5514
        %v5590 = vunpack.c.h.b16 %v5514
        %v5591 = vunpack.c.l.b16 %v5515
        %v5592 = vunpack.c.h.b16 %v5515
        %v5593 = vunpack.c.l.b16 %v5516
        %v5594 = vunpack.c.h.b16 %v5516
        %v5595 = vunpack.c.l.b16 %v5517
        %v5596 = vunpack.c.h.b16 %v5517
        %v5597 = vunpack.c.l.b16 %v5518
        %v5598 = vunpack.c.h.b16 %v5518
        %v5599 = vunpack.c.l.b16 %v5519
        %v5600 = vunpack.c.h.b16 %v5519
        %v5601 = vunpack.c.l.b16 %v5520
        %v5602 = vunpack.c.h.b16 %v5520
        %v5603 = vunpack.c.l.b16 %v5521
        %v5604 = vunpack.c.h.b16 %v5521
        %v5605 = vunpack.c.l.b16 %v5522
        %v5606 = vunpack.c.h.b16 %v5522
        %v5607 = vunpack.c.l.b16 %v5523
        %v5608 = vunpack.c.h.b16 %v5523
        %v5609 = vunpack.c.l.b16 %v5524
        %v5610 = vunpack.c.h.b16 %v5524
        %v5611 = vunpack.c.l.b16 %v5525
        %v5612 = vunpack.c.h.b16 %v5525
        %v5613 = vunpack.c.l.b16 %v5526
        %v5614 = vunpack.c.h.b16 %v5526
        %v5615 = vunpack.c.l.b16 %v5527
        %v5616 = vunpack.c.h.b16 %v5527
        %v5617 = vunpack.c.l.b16 %v5528
        %v5618 = vunpack.c.h.b16 %v5528
        %v5619 = vunpack.c.l.b16 %v5529
        %v5620 = vunpack.c.h.b16 %v5529
        %v5621 = vunpack.c.l.b16 %v5530
        %v5622 = vunpack.c.h.b16 %v5530
        %v5623 = vunpack.c.l.b16 %v5531
        %v5624 = vunpack.c.h.b16 %v5531
        %v5625 = vunpack.c.l.b16 %v5532
        %v5626 = vunpack.c.h.b16 %v5532
        %v5627 = vunpack.c.l.b16 %v5533
        %v5628 = vunpack.c.h.b16 %v5533
        %v5629 = vunpack.c.l.b16 %v5534
        %v5630 = vunpack.c.h.b16 %v5534
        %v5631 = vpack.c.b16 %v5567, %v5567
        %v5632 = vpack.c.b16 %v5568, %v5568
        %v5633 = vpack.c.b16 %v5569, %v5569
        %v5634 = vpack.c.b16 %v5570, %v5570
        %v5635 = vpack.c.b16 %v5571, %v5571
        %v5636 = vpack.c.b16 %v5572, %v5572
        %v5637 = vpack.c.b16 %v5573, %v5573
        %v5638 = vpack.c.b16 %v5574, %v5574
        %v5639 = vpack.c.b16 %v5575, %v5575
        %v5640 = vpack.c.b16 %v5576, %v5576
        %v5641 = vpack.c.b16 %v5577, %v5577
        %v5642 = vpack.c.b16 %v5578, %v5578
        %v5643 = vpack.c.b16 %v5579, %v5579
        %v5644 = vpack.c.b16 %v5580, %v5580
        %v5645 = vpack.c.b16 %v5581, %v5581
        %v5646 = vpack.c.b16 %v5582, %v5582
        %v5647 = vpack.c.b16 %v5583, %v5583
        %v5648 = vpack.c.b16 %v5584, %v5584
        %v5649 = vpack.c.b16 %v5585, %v5585
        %v5650 = vpack.c.b16 %v5586, %v5586
        %v5651 = vpack.c.b16 %v5587, %v5587
        %v5652 = vpack.c.b16 %v5588, %v5588
        %v5653 = vpack.c.b16 %v5589, %v5589
        %v5654 = vpack.c.b16 %v5590, %v5590
        %v5655 = vpack.c.b16 %v5591, %v5591
        %v5656 = vpack.c.b16 %v5592, %v5592
        %v5657 = vpack.c.b16 %v5593, %v5593
        %v5658 = vpack.c.b16 %v5594, %v5594
        %v5659 = vpack.c.b16 %v5595, %v5595
        %v5660 = vpack.c.b16 %v5596, %v5596
        %v5661 = vpack.c.b16 %v5597, %v5597
        %v5662 = vpack.c.b16 %v5598, %v5598
        %v5663 = vpack.c.b16 %v5599, %v5599
        %v5664 = vpack.c.b16 %v5600, %v5600
        %v5665 = vpack.c.b16 %v5601, %v5601
        %v5666 = vpack.c.b16 %v5602, %v5602
        %v5667 = vpack.c.b16 %v5603, %v5603
        %v5668 = vpack.c.b16 %v5604, %v5604
        %v5669 = vpack.c.b16 %v5605, %v5605
        %v5670 = vpack.c.b16 %v5606, %v5606
        %v5671 = vpack.c.b16 %v5607, %v5607
        %v5672 = vpack.c.b16 %v5608, %v5608
        %v5673 = vpack.c.b16 %v5609, %v5609
        %v5674 = vpack.c.b16 %v5610, %v5610
        %v5675 = vpack.c.b16 %v5611, %v5611
        %v5676 = vpack.c.b16 %v5612, %v5612
        %v5677 = vpack.c.b16 %v5613, %v5613
        %v5678 = vpack.c.b16 %v5614, %v5614
        %v5679 = vpack.c.b16 %v5615, %v5615
        %v5680 = vpack.c.b16 %v5616, %v5616
        %v5681 = vpack.c.b16 %v5617, %v5617
        %v5682 = vpack.c.b16 %v5618, %v5618
        %v5683 = vpack.c.b16 %v5619, %v5619
        %v5684 = vpack.c.b16 %v5620, %v5620
        %v5685 = vpack.c.b16 %v5621, %v5621
        %v5686 = vpack.c.b16 %v5622, %v5622
        %v5687 = vpack.c.b16 %v5623, %v5623
        %v5688 = vpack.c.b16 %v5624, %v5624
        %v5689 = vpack.c.b16 %v5625, %v5625
        %v5690 = vpack.c.b16 %v5626, %v5626
        %v5691 = vpack.c.b16 %v5627, %v5627
        %v5692 = vpack.c.b16 %v5628, %v5628
        %v5693 = vpack.c.b16 %v5629, %v5629
        %v5694 = vpack.c.b16 %v5630, %v5630
        %5759 = vst [vmem:[%s589] sm:$0xf] %v5631
        %5760 = vst [vmem:[%s589 + $0x4] sm:$0xf] %v5632
        %5761 = vst [vmem:[%s589 + $0x8] sm:$0xf] %v5633
        %5762 = vst [vmem:[%s589 + $0xc] sm:$0xf] %v5634
        %5763 = vst [vmem:[%s589 + $0x10] sm:$0xf] %v5635
        %5764 = vst [vmem:[%s589 + $0x14] sm:$0xf] %v5636
        %5765 = vst [vmem:[%s589 + $0x18] sm:$0xf] %v5637
        %5766 = vst [vmem:[%s589 + $0x1c] sm:$0xf] %v5638
        %5767 = vst [vmem:[%s589 + $0x20] sm:$0xf] %v5639
        %5768 = vst [vmem:[%s589 + $0x24] sm:$0xf] %v5640
        %5769 = vst [vmem:[%s589 + $0x28] sm:$0xf] %v5641
        %5770 = vst [vmem:[%s589 + $0x2c] sm:$0xf] %v5642
        %5771 = vst [vmem:[%s589 + $0x30] sm:$0xf] %v5643
        %5772 = vst [vmem:[%s589 + $0x34] sm:$0xf] %v5644
        %5773 = vst [vmem:[%s589 + $0x38] sm:$0xf] %v5645
        %5774 = vst [vmem:[%s589 + $0x3c] sm:$0xf] %v5646
        %5775 = vst [vmem:[%s589 + $0x40] sm:$0xf] %v5647
        %5776 = vst [vmem:[%s589 + $0x44] sm:$0xf] %v5648
        %5777 = vst [vmem:[%s589 + $0x48] sm:$0xf] %v5649
        %5778 = vst [vmem:[%s589 + $0x4c] sm:$0xf] %v5650
        %5779 = vst [vmem:[%s589 + $0x50] sm:$0xf] %v5651
        %5780 = vst [vmem:[%s589 + $0x54] sm:$0xf] %v5652
        %5781 = vst [vmem:[%s589 + $0x58] sm:$0xf] %v5653
        %5782 = vst [vmem:[%s589 + $0x5c] sm:$0xf] %v5654
        %5783 = vst [vmem:[%s589 + $0x60] sm:$0xf] %v5655
        %5784 = vst [vmem:[%s589 + $0x64] sm:$0xf] %v5656
        %5785 = vst [vmem:[%s589 + $0x68] sm:$0xf] %v5657
        %5786 = vst [vmem:[%s589 + $0x6c] sm:$0xf] %v5658
        %5787 = vst [vmem:[%s589 + $0x70] sm:$0xf] %v5659
        %5788 = vst [vmem:[%s589 + $0x74] sm:$0xf] %v5660
        %5789 = vst [vmem:[%s589 + $0x78] sm:$0xf] %v5661
        %5790 = vst [vmem:[%s589 + $0x7c] sm:$0xf] %v5662
        %5791 = vst [vmem:[%s589 + $0x80] sm:$0xf] %v5663
        %5792 = vst [vmem:[%s589 + $0x84] sm:$0xf] %v5664
        %5793 = vst [vmem:[%s589 + $0x88] sm:$0xf] %v5665
        %5794 = vst [vmem:[%s589 + $0x8c] sm:$0xf] %v5666
        %5795 = vst [vmem:[%s589 + $0x90] sm:$0xf] %v5667
        %5796 = vst [vmem:[%s589 + $0x94] sm:$0xf] %v5668
        %5797 = vst [vmem:[%s589 + $0x98] sm:$0xf] %v5669
        %5798 = vst [vmem:[%s589 + $0x9c] sm:$0xf] %v5670
        %5799 = vst [vmem:[%s589 + $0xa0] sm:$0xf] %v5671
        %5800 = vst [vmem:[%s589 + $0xa4] sm:$0xf] %v5672
        %5801 = vst [vmem:[%s589 + $0xa8] sm:$0xf] %v5673
        %5802 = vst [vmem:[%s589 + $0xac] sm:$0xf] %v5674
        %5803 = vst [vmem:[%s589 + $0xb0] sm:$0xf] %v5675
        %5804 = vst [vmem:[%s589 + $0xb4] sm:$0xf] %v5676
        %5805 = vst [vmem:[%s589 + $0xb8] sm:$0xf] %v5677
        %5806 = vst [vmem:[%s589 + $0xbc] sm:$0xf] %v5678
        %5807 = vst [vmem:[%s589 + $0xc0] sm:$0xf] %v5679
        %5808 = vst [vmem:[%s589 + $0xc4] sm:$0xf] %v5680
        %5809 = vst [vmem:[%s589 + $0xc8] sm:$0xf] %v5681
        %5810 = vst [vmem:[%s589 + $0xcc] sm:$0xf] %v5682
        %5811 = vst [vmem:[%s589 + $0xd0] sm:$0xf] %v5683
        %5812 = vst [vmem:[%s589 + $0xd4] sm:$0xf] %v5684
        %5813 = vst [vmem:[%s589 + $0xd8] sm:$0xf] %v5685
        %5814 = vst [vmem:[%s589 + $0xdc] sm:$0xf] %v5686
        %5815 = vst [vmem:[%s589 + $0xe0] sm:$0xf] %v5687
        %5816 = vst [vmem:[%s589 + $0xe4] sm:$0xf] %v5688
        %5817 = vst [vmem:[%s589 + $0xe8] sm:$0xf] %v5689
        %5818 = vst [vmem:[%s589 + $0xec] sm:$0xf] %v5690
        %5819 = vst [vmem:[%s589 + $0xf0] sm:$0xf] %v5691
        %5820 = vst [vmem:[%s589 + $0xf4] sm:$0xf] %v5692
        %5821 = vst [vmem:[%s589 + $0xf8] sm:$0xf] %v5693
        %5822 = vst [vmem:[%s589 + $0xfc] sm:$0xf] %v5694
        %v5823 = vld [vmem:[#allocation2] sm:$0xff]
        %v5824 = vld [vmem:[#allocation2 + $0x8] sm:$0xff]
        %v5825 = vld [vmem:[#allocation2 + $0x10] sm:$0xff]
        %v5826 = vld [vmem:[#allocation2 + $0x18] sm:$0xff]
        %5827 = vxpose.xlu0.c.b16.start [1/8] %v1074, 128
        %5828 = vxpose.xlu0.c.b16.cont [2/8] %v1075, 128
        %5829 = vxpose.xlu0.c.b16.cont [3/8] %v1076, 128
        %5830 = vxpose.xlu0.c.b16.cont [4/8] %v1077, 128
        %5831 = vxpose.xlu0.c.b16.cont [5/8] %v1078, 128
        %5832 = vxpose.xlu0.c.b16.cont [6/8] %v1079, 128
        %5833 = vxpose.xlu0.c.b16.cont [7/8] %v1080, 128
        %5834 = vxpose.xlu0.c.b16.end [8/8] %v1081, 128
        %v5835 = vpop.trf.xlu0
        %v5836 = vpop.trf.xlu0
        %v5837 = vpop.trf.xlu0
        %v5838 = vpop.trf.xlu0
        %v5839 = vpop.trf.xlu0
        %v5840 = vpop.trf.xlu0
        %v5841 = vpop.trf.xlu0
        %v5842 = vpop.trf.xlu0
        %5843 = vxpose.xlu0.c.b16.start [1/8] %v1082, 128
        %5844 = vxpose.xlu0.c.b16.cont [2/8] %v1083, 128
        %5845 = vxpose.xlu0.c.b16.cont [3/8] %v1084, 128
        %5846 = vxpose.xlu0.c.b16.cont [4/8] %v1085, 128
        %5847 = vxpose.xlu0.c.b16.cont [5/8] %v1086, 128
        %5848 = vxpose.xlu0.c.b16.cont [6/8] %v1087, 128
        %5849 = vxpose.xlu0.c.b16.cont [7/8] %v1088, 128
        %5850 = vxpose.xlu0.c.b16.end [8/8] %v1089, 128
        %v5851 = vpop.trf.xlu0
        %v5852 = vpop.trf.xlu0
        %v5853 = vpop.trf.xlu0
        %v5854 = vpop.trf.xlu0
        %v5855 = vpop.trf.xlu0
        %v5856 = vpop.trf.xlu0
        %v5857 = vpop.trf.xlu0
        %v5858 = vpop.trf.xlu0
        %5859 = vxpose.xlu0.c.b16.start [1/8] %v1090, 128
        %5860 = vxpose.xlu0.c.b16.cont [2/8] %v1091, 128
        %5861 = vxpose.xlu0.c.b16.cont [3/8] %v1092, 128
        %5862 = vxpose.xlu0.c.b16.cont [4/8] %v1093, 128
        %5863 = vxpose.xlu0.c.b16.cont [5/8] %v1094, 128
        %5864 = vxpose.xlu0.c.b16.cont [6/8] %v1095, 128
        %5865 = vxpose.xlu0.c.b16.cont [7/8] %v1096, 128
        %5866 = vxpose.xlu0.c.b16.end [8/8] %v1097, 128
        %v5867 = vpop.trf.xlu0
        %v5868 = vpop.trf.xlu0
        %v5869 = vpop.trf.xlu0
        %v5870 = vpop.trf.xlu0
        %v5871 = vpop.trf.xlu0
        %v5872 = vpop.trf.xlu0
        %v5873 = vpop.trf.xlu0
        %v5874 = vpop.trf.xlu0
        %5875 = vxpose.xlu0.c.b16.start [1/8] %v1098, 128
        %5876 = vxpose.xlu0.c.b16.cont [2/8] %v1099, 128
        %5877 = vxpose.xlu0.c.b16.cont [3/8] %v1100, 128
        %5878 = vxpose.xlu0.c.b16.cont [4/8] %v1101, 128
        %5879 = vxpose.xlu0.c.b16.cont [5/8] %v1102, 128
        %5880 = vxpose.xlu0.c.b16.cont [6/8] %v1103, 128
        %5881 = vxpose.xlu0.c.b16.cont [7/8] %v1104, 128
        %5882 = vxpose.xlu0.c.b16.end [8/8] %v1105, 128
        %v5883 = vpop.trf.xlu0
        %v5884 = vpop.trf.xlu0
        %v5885 = vpop.trf.xlu0
        %v5886 = vpop.trf.xlu0
        %v5887 = vpop.trf.xlu0
        %v5888 = vpop.trf.xlu0
        %v5889 = vpop.trf.xlu0
        %v5890 = vpop.trf.xlu0
        %5891 = vmatprep.subr.bf16.mxu0 0
        %5892 = vmatpush1.bf16.msra.mxu0 %v5503
        %5893 = vmatprep.subr.bf16.mxu0 0
        %5894 = vmatpush1.bf16.msra.mxu0 %v5504
        %5895 = vmatprep.subr.bf16.mxu0 0
        %5896 = vmatpush1.bf16.msra.mxu0 %v5505
        %5897 = vmatprep.subr.bf16.mxu0 0
        %5898 = vmatpush1.bf16.msra.mxu0 %v5506
        %5899 = vmatprep.subr.bf16.mxu0 0
        %5900 = vmatpush1.bf16.msra.mxu0 %v5507
        %5901 = vmatprep.subr.bf16.mxu0 0
        %5902 = vmatpush1.bf16.msra.mxu0 %v5508
        %5903 = vmatprep.subr.bf16.mxu0 0
        %5904 = vmatpush1.bf16.msra.mxu0 %v5509
        %5905 = vmatprep.subr.bf16.mxu0 0
        %5906 = vmatpush1.bf16.msra.mxu0 %v5510
        %5907 = vmatprep.subr.bf16.mxu0 0
        %5908 = vmatpush1.bf16.msra.mxu0 %v5511
        %5909 = vmatprep.subr.bf16.mxu0 0
        %5910 = vmatpush1.bf16.msra.mxu0 %v5512
        %5911 = vmatprep.subr.bf16.mxu0 0
        %5912 = vmatpush1.bf16.msra.mxu0 %v5513
        %5913 = vmatprep.subr.bf16.mxu0 0
        %5914 = vmatpush1.bf16.msra.mxu0 %v5514
        %5915 = vmatprep.subr.bf16.mxu0 0
        %5916 = vmatpush1.bf16.msra.mxu0 %v5515
        %5917 = vmatprep.subr.bf16.mxu0 0
        %5918 = vmatpush1.bf16.msra.mxu0 %v5516
        %5919 = vmatprep.subr.bf16.mxu0 0
        %5920 = vmatpush1.bf16.msra.mxu0 %v5517
        %5921 = vmatprep.subr.bf16.mxu0 0
        %5922 = vmatpush1.bf16.msra.mxu0 %v5518
        %5923 = vmatprep.mubr.bf16.mxu0 %v5851
        %5924 = vmatmul.mubr.bf16.gmra.mrb[0].mxu0 %v5835
        %v5925 = vpop.f32.mrb[0].mxu0
        %v5926 = vadd.f32 0.0, %v5925
        %v5927 = vpop.f32.mrb[0].mxu0
        %v5928 = vpop.f32.mrb[0].mxu0
        %v5929 = vadd.f32 0.0, %v5928
        %v5930 = vpop.f32.mrb[0].mxu0
        %5931 = vmatprep.mubr.bf16.mxu0 %v5852
        %5932 = vmatmul.mubr.bf16.gmra.mrb[0].mxu0 %v5836
        %v5933 = vpop.f32.mrb[0].mxu0
        %v5934 = vadd.f32 0.0, %v5933
        %v5935 = vpop.f32.mrb[0].mxu0
        %v5936 = vpop.f32.mrb[0].mxu0
        %v5937 = vadd.f32 0.0, %v5936
        %v5938 = vpop.f32.mrb[0].mxu0
        %5939 = vdwg.mxu0
        %5940 = vmatprep.subr.bf16.mxu0 0
        %5941 = vmatpush1.bf16.msra.mxu0 %v5519
        %5942 = vmatprep.subr.bf16.mxu0 0
        %5943 = vmatpush1.bf16.msra.mxu0 %v5520
        %5944 = vmatprep.subr.bf16.mxu0 0
        %5945 = vmatpush1.bf16.msra.mxu0 %v5521
        %5946 = vmatprep.subr.bf16.mxu0 0
        %5947 = vmatpush1.bf16.msra.mxu0 %v5522
        %5948 = vmatprep.subr.bf16.mxu0 0
        %5949 = vmatpush1.bf16.msra.mxu0 %v5523
        %5950 = vmatprep.subr.bf16.mxu0 0
        %5951 = vmatpush1.bf16.msra.mxu0 %v5524
        %5952 = vmatprep.subr.bf16.mxu0 0
        %5953 = vmatpush1.bf16.msra.mxu0 %v5525
        %5954 = vmatprep.subr.bf16.mxu0 0
        %5955 = vmatpush1.bf16.msra.mxu0 %v5526
        %5956 = vmatprep.subr.bf16.mxu0 0
        %5957 = vmatpush1.bf16.msra.mxu0 %v5527
        %5958 = vmatprep.subr.bf16.mxu0 0
        %5959 = vmatpush1.bf16.msra.mxu0 %v5528
        %5960 = vmatprep.subr.bf16.mxu0 0
        %5961 = vmatpush1.bf16.msra.mxu0 %v5529
        %5962 = vmatprep.subr.bf16.mxu0 0
        %5963 = vmatpush1.bf16.msra.mxu0 %v5530
        %5964 = vmatprep.subr.bf16.mxu0 0
        %5965 = vmatpush1.bf16.msra.mxu0 %v5531
        %5966 = vmatprep.subr.bf16.mxu0 0
        %5967 = vmatpush1.bf16.msra.mxu0 %v5532
        %5968 = vmatprep.subr.bf16.mxu0 0
        %5969 = vmatpush1.bf16.msra.mxu0 %v5533
        %5970 = vmatprep.subr.bf16.mxu0 0
        %5971 = vmatpush1.bf16.msra.mxu0 %v5534
        %5972 = vmatprep.mubr.bf16.mxu0 %v5883
        %5973 = vmatmul.mubr.bf16.gmra.mrb[0].mxu0 %v5867
        %v5974 = vpop.f32.mrb[0].mxu0
        %v5975 = vadd.f32 %v5926, %v5974
        %v5976 = vpop.f32.mrb[0].mxu0
        %v5977 = vpop.f32.mrb[0].mxu0
        %v5978 = vadd.f32 %v5929, %v5977
        %v5979 = vpop.f32.mrb[0].mxu0
        %5980 = vmatprep.mubr.bf16.mxu0 %v5884
        %5981 = vmatmul.mubr.bf16.gmra.mrb[0].mxu0 %v5868
        %v5982 = vpop.f32.mrb[0].mxu0
        %v5983 = vadd.f32 %v5934, %v5982
        %v5984 = vpop.f32.mrb[0].mxu0
        %v5985 = vpop.f32.mrb[0].mxu0
        %v5986 = vadd.f32 %v5937, %v5985
        %v5987 = vpop.f32.mrb[0].mxu0
        %5988 = vdwg.mxu0
        %v5989 = vadd.f32 %v5823, %v5975
        %v5990 = vadd.f32 %v5824, %v5978
        %v5991 = vadd.f32 %v5825, %v5983
        %v5992 = vadd.f32 %v5826, %v5986
        %5993 = vst [vmem:[#allocation2] sm:$0xff] %v5989
        %5994 = vst [vmem:[#allocation2 + $0x8] sm:$0xff] %v5990
        %5995 = vst [vmem:[#allocation2 + $0x10] sm:$0xff] %v5991
        %5996 = vst [vmem:[#allocation2 + $0x18] sm:$0xff] %v5992
        %p5997 = scmp.eq.s32.totalorder %s33, 1
        // Predicated region
        $region89: #{tpu_custom_call.1} parent=83 // pred_check
          %p5998 = pneg %p5997
        $region90: #{tpu_custom_call.1} parent=83 // pred_check_branch
          %6000 = sbr.rel (%p5998) target = $region92
        $region91: #{tpu_custom_call.1} parent=83 // pred_region
          %v6001 = vld [vmem:[#allocation2] sm:$0xff]
          %v6002 = vld [vmem:[#allocation2 + $0x8] sm:$0xff]
          %v6003 = vld [vmem:[#allocation2 + $0x10] sm:$0xff]
          %v6004 = vld [vmem:[#allocation2 + $0x18] sm:$0xff]
          %v6005 = vpack.c.bf16 %v6002, %v6001
          %v6006 = vpack.c.bf16 %v6004, %v6003
          %v6007 = vld [vmem:[%s11] sm:$0xf]
          %v6008 = vld [vmem:[%s11 + $0x4] sm:$0xf]
          %v6009 = vld [vmem:[%s11 + $0x8] sm:$0xf]
          %v6010 = vld [vmem:[%s11 + $0xc] sm:$0xf]
          %v6011 = vld [vmem:[%s12] sm:$0xf]
          %v6012 = vld [vmem:[%s12 + $0x4] sm:$0xf]
          %v6013 = vld [vmem:[%s12 + $0x8] sm:$0xf]
          %v6014 = vld [vmem:[%s12 + $0xc] sm:$0xf]
          %v6015 = vld [vmem:[%s12 + $0x10] sm:$0xf]
          %v6016 = vld [vmem:[%s12 + $0x14] sm:$0xf]
          %v6017 = vld [vmem:[%s12 + $0x18] sm:$0xf]
          %v6018 = vld [vmem:[%s12 + $0x1c] sm:$0xf]
          %v6019 = vld [vmem:[%s12 + $0x20] sm:$0xf]
          %v6020 = vld [vmem:[%s12 + $0x24] sm:$0xf]
          %v6021 = vld [vmem:[%s12 + $0x28] sm:$0xf]
          %v6022 = vld [vmem:[%s12 + $0x2c] sm:$0xf]
          %v6023 = vld [vmem:[%s12 + $0x30] sm:$0xf]
          %v6024 = vld [vmem:[%s12 + $0x34] sm:$0xf]
          %v6025 = vld [vmem:[%s12 + $0x38] sm:$0xf]
          %v6026 = vld [vmem:[%s12 + $0x3c] sm:$0xf]
          %v6043 = vunpack.c.l.b16 %v6011
          %v6044 = vunpack.c.l.b16 %v6012
          %v6045 = vunpack.c.l.b16 %v6013
          %v6046 = vunpack.c.l.b16 %v6014
          %v6047 = vunpack.c.l.b16 %v6015
          %v6048 = vunpack.c.l.b16 %v6016
          %v6049 = vunpack.c.l.b16 %v6017
          %v6050 = vunpack.c.l.b16 %v6018
          %v6051 = vunpack.c.l.b16 %v6019
          %v6052 = vunpack.c.l.b16 %v6020
          %v6053 = vunpack.c.l.b16 %v6021
          %v6054 = vunpack.c.l.b16 %v6022
          %v6055 = vunpack.c.l.b16 %v6023
          %v6056 = vunpack.c.l.b16 %v6024
          %v6057 = vunpack.c.l.b16 %v6025
          %v6058 = vunpack.c.l.b16 %v6026
          %v6059 = vpack.c.b16 %v6044, %v6043
          %v6060 = vpack.c.b16 %v6046, %v6045
          %v6061 = vpack.c.b16 %v6048, %v6047
          %v6062 = vpack.c.b16 %v6050, %v6049
          %v6063 = vpack.c.b16 %v6052, %v6051
          %v6064 = vpack.c.b16 %v6054, %v6053
          %v6065 = vpack.c.b16 %v6056, %v6055
          %v6066 = vpack.c.b16 %v6058, %v6057
          %6075 = vmatprep.subr.bf16.mxu0 0
          %6076 = vmatpush1.bf16.msra.mxu0 %v6059
          %6077 = vmatprep.subr.bf16.mxu0 0
          %6078 = vmatpush1.bf16.msra.mxu0 %v6060
          %6079 = vmatprep.subr.bf16.mxu0 0
          %6080 = vmatpush1.bf16.msra.mxu0 %v6061
          %6081 = vmatprep.subr.bf16.mxu0 0
          %6082 = vmatpush1.bf16.msra.mxu0 %v6062
          %6083 = vmatprep.subr.bf16.mxu0 0
          %6084 = vmatpush1.bf16.msra.mxu0 %v6063
          %6085 = vmatprep.subr.bf16.mxu0 0
          %6086 = vmatpush1.bf16.msra.mxu0 %v6064
          %6087 = vmatprep.subr.bf16.mxu0 0
          %6088 = vmatpush1.bf16.msra.mxu0 %v6065
          %6089 = vmatprep.subr.bf16.mxu0 0
          %6090 = vmatpush1.bf16.msra.mxu0 %v6066
          %6091 = vmatprep.subr.bf16.mxu0 0
          %6092 = vmatpush1.bf16.msra.mxu0 0
          %6093 = vmatprep.subr.bf16.mxu0 0
          %6094 = vmatpush1.bf16.msra.mxu0 0
          %6095 = vmatprep.subr.bf16.mxu0 0
          %6096 = vmatpush1.bf16.msra.mxu0 0
          %6097 = vmatprep.subr.bf16.mxu0 0
          %6098 = vmatpush1.bf16.msra.mxu0 0
          %6099 = vmatprep.subr.bf16.mxu0 0
          %6100 = vmatpush1.bf16.msra.mxu0 0
          %6101 = vmatprep.subr.bf16.mxu0 0
          %6102 = vmatpush1.bf16.msra.mxu0 0
          %6103 = vmatprep.subr.bf16.mxu0 0
          %6104 = vmatpush1.bf16.msra.mxu0 0
          %6105 = vmatprep.subr.bf16.mxu0 0
          %6106 = vmatpush1.bf16.msra.mxu0 0
          %6107 = vmatprep.mubr.bf16.mxu0 0
          %6108 = vmatmul.mubr.bf16.gmra.mrb[0].mxu0 %v6005
          %v6109 = vpop.f32.mrb[0].mxu0
          %v6110 = vadd.f32 0.0, %v6109
          %v6111 = vpop.f32.mrb[0].mxu0
          %v6112 = vpop.f32.mrb[0].mxu0
          %v6113 = vadd.f32 0.0, %v6112
          %v6114 = vpop.f32.mrb[0].mxu0
          %6115 = vmatprep.mubr.bf16.mxu0 0
          %6116 = vmatmul.mubr.bf16.gmra.mrb[0].mxu0 %v6006
          %v6117 = vpop.f32.mrb[0].mxu0
          %v6118 = vadd.f32 0.0, %v6117
          %v6119 = vpop.f32.mrb[0].mxu0
          %v6120 = vpop.f32.mrb[0].mxu0
          %v6121 = vadd.f32 0.0, %v6120
          %v6122 = vpop.f32.mrb[0].mxu0
          %6123 = vdwg.mxu0
          %v6128 = vunpack.c.l.b16 %v6007
          %v6129 = vunpack.c.l.b16 %v6008
          %v6130 = vunpack.c.l.b16 %v6009
          %v6131 = vunpack.c.l.b16 %v6010
          %v6132 = vpack.c.b16 %v6129, %v6128
          %v6133 = vpack.c.b16 %v6131, %v6130
          %v6137 = vsel %vm1602, %v1598, 0
          %v6140 = vsel %vm1602, %v1599, 0
          %6142 = vmatprep.subr.bf16.mxu0 0
          %6143 = vmatpush1.bf16.msra.mxu0 %v6132
          %6144 = vmatprep.subr.bf16.mxu0 0
          %6145 = vmatpush1.bf16.msra.mxu0 %v6133
          %6146 = vmatprep.subr.bf16.mxu0 0
          %6147 = vmatpush1.bf16.msra.mxu0 0
          %6148 = vmatprep.subr.bf16.mxu0 0
          %6149 = vmatpush1.bf16.msra.mxu0 0
          %6150 = vmatprep.subr.bf16.mxu0 0
          %6151 = vmatpush1.bf16.msra.mxu0 0
          %6152 = vmatprep.subr.bf16.mxu0 0
          %6153 = vmatpush1.bf16.msra.mxu0 0
          %6154 = vmatprep.subr.bf16.mxu0 0
          %6155 = vmatpush1.bf16.msra.mxu0 0
          %6156 = vmatprep.subr.bf16.mxu0 0
          %6157 = vmatpush1.bf16.msra.mxu0 0
          %6158 = vmatprep.subr.bf16.mxu0 0
          %6159 = vmatpush1.bf16.msra.mxu0 0
          %6160 = vmatprep.subr.bf16.mxu0 0
          %6161 = vmatpush1.bf16.msra.mxu0 0
          %6162 = vmatprep.subr.bf16.mxu0 0
          %6163 = vmatpush1.bf16.msra.mxu0 0
          %6164 = vmatprep.subr.bf16.mxu0 0
          %6165 = vmatpush1.bf16.msra.mxu0 0
          %6166 = vmatprep.subr.bf16.mxu0 0
          %6167 = vmatpush1.bf16.msra.mxu0 0
          %6168 = vmatprep.subr.bf16.mxu0 0
          %6169 = vmatpush1.bf16.msra.mxu0 0
          %6170 = vmatprep.subr.bf16.mxu0 0
          %6171 = vmatpush1.bf16.msra.mxu0 0
          %6172 = vmatprep.subr.bf16.mxu0 0
          %6173 = vmatpush1.bf16.msra.mxu0 0
          %6174 = vmatprep.mubr.bf16.mxu0 0
          %6175 = vmatmul.mubr.bf16.gmra.mrb[0].mxu0 %v6137
          %v6176 = vpop.f32.mrb[0].mxu0
          %v6177 = vadd.f32 %v6110, %v6176
          %v6178 = vpop.f32.mrb[0].mxu0
          %v6179 = vpop.f32.mrb[0].mxu0
          %v6180 = vadd.f32 %v6113, %v6179
          %v6181 = vpop.f32.mrb[0].mxu0
          %6182 = vmatprep.mubr.bf16.mxu0 0
          %6183 = vmatmul.mubr.bf16.gmra.mrb[0].mxu0 %v6140
          %v6184 = vpop.f32.mrb[0].mxu0
          %v6185 = vadd.f32 %v6118, %v6184
          %v6186 = vpop.f32.mrb[0].mxu0
          %v6187 = vpop.f32.mrb[0].mxu0
          %v6188 = vadd.f32 %v6121, %v6187
          %v6189 = vpop.f32.mrb[0].mxu0
          %6190 = vdwg.mxu0
          %v6191 = vpack.c.bf16 %v6180, %v6177
          %v6192 = vpack.c.bf16 %v6188, %v6185
          %v6193 = vld [vmem:[%s13] sm:$0x1]
          %v6195 = vpack.i.b16 %v6193, %v6193
          %v6197 = vlaneseq
          %v6198 = vshrl.u32 %v6197, 7
          %v6199 = vsub.s32 0, %v6198
          %v6200 = vrot.slane %v6195, %v6199
          %v6201 = vadd.bf16 %v6191, %v6200
          %v6202 = vadd.bf16 %v6192, %v6200
          %v6203 = vmax.bf16 %v6201, 0
          %v6204 = vmax.bf16 %v6202, 0
          %v6205 = vld [vmem:[%s14] sm:$0xf]
          %v6206 = vld [vmem:[%s14 + $0x4] sm:$0xf]
          %v6207 = vld [vmem:[%s14 + $0x8] sm:$0xf]
          %v6208 = vld [vmem:[%s14 + $0xc] sm:$0xf]
          %v6209 = vld [vmem:[%s14 + $0x10] sm:$0xf]
          %v6210 = vld [vmem:[%s14 + $0x14] sm:$0xf]
          %v6211 = vld [vmem:[%s14 + $0x18] sm:$0xf]
          %v6212 = vld [vmem:[%s14 + $0x1c] sm:$0xf]
          %v6213 = vld [vmem:[%s14 + $0x20] sm:$0xf]
          %v6214 = vld [vmem:[%s14 + $0x24] sm:$0xf]
          %v6215 = vld [vmem:[%s14 + $0x28] sm:$0xf]
          %v6216 = vld [vmem:[%s14 + $0x2c] sm:$0xf]
          %v6217 = vld [vmem:[%s14 + $0x30] sm:$0xf]
          %v6218 = vld [vmem:[%s14 + $0x34] sm:$0xf]
          %v6219 = vld [vmem:[%s14 + $0x38] sm:$0xf]
          %v6220 = vld [vmem:[%s14 + $0x3c] sm:$0xf]
          %v6221 = vld [vmem:[%s15] sm:$0x1]
          %v6223 = vlaneseq
          %v6224 = vshrl.u32 %v6223, 7
          %v6225 = vsub.s32 0, %v6224
          %v6226 = vrot.slane %v6221, %v6225
          %v6244 = vunpack.c.l.b16 %v6205
          %v6245 = vunpack.c.l.b16 %v6206
          %v6246 = vunpack.c.l.b16 %v6207
          %v6247 = vunpack.c.l.b16 %v6208
          %v6248 = vunpack.c.l.b16 %v6209
          %v6249 = vunpack.c.l.b16 %v6210
          %v6250 = vunpack.c.l.b16 %v6211
          %v6251 = vunpack.c.l.b16 %v6212
          %v6252 = vunpack.c.l.b16 %v6213
          %v6253 = vunpack.c.l.b16 %v6214
          %v6254 = vunpack.c.l.b16 %v6215
          %v6255 = vunpack.c.l.b16 %v6216
          %v6256 = vunpack.c.l.b16 %v6217
          %v6257 = vunpack.c.l.b16 %v6218
          %v6258 = vunpack.c.l.b16 %v6219
          %v6259 = vunpack.c.l.b16 %v6220
          %v6260 = vpack.c.b16 %v6245, %v6244
          %v6261 = vpack.c.b16 %v6247, %v6246
          %v6262 = vpack.c.b16 %v6249, %v6248
          %v6263 = vpack.c.b16 %v6251, %v6250
          %v6264 = vpack.c.b16 %v6253, %v6252
          %v6265 = vpack.c.b16 %v6255, %v6254
          %v6266 = vpack.c.b16 %v6257, %v6256
          %v6267 = vpack.c.b16 %v6259, %v6258
          %6276 = vmatprep.subr.bf16.mxu0 0
          %6277 = vmatpush1.bf16.msra.mxu0 %v6260
          %6278 = vmatprep.subr.bf16.mxu0 0
          %6279 = vmatpush1.bf16.msra.mxu0 %v6261
          %6280 = vmatprep.subr.bf16.mxu0 0
          %6281 = vmatpush1.bf16.msra.mxu0 %v6262
          %6282 = vmatprep.subr.bf16.mxu0 0
          %6283 = vmatpush1.bf16.msra.mxu0 %v6263
          %6284 = vmatprep.subr.bf16.mxu0 0
          %6285 = vmatpush1.bf16.msra.mxu0 %v6264
          %6286 = vmatprep.subr.bf16.mxu0 0
          %6287 = vmatpush1.bf16.msra.mxu0 %v6265
          %6288 = vmatprep.subr.bf16.mxu0 0
          %6289 = vmatpush1.bf16.msra.mxu0 %v6266
          %6290 = vmatprep.subr.bf16.mxu0 0
          %6291 = vmatpush1.bf16.msra.mxu0 %v6267
          %6292 = vmatprep.subr.bf16.mxu0 0
          %6293 = vmatpush1.bf16.msra.mxu0 0
          %6294 = vmatprep.subr.bf16.mxu0 0
          %6295 = vmatpush1.bf16.msra.mxu0 0
          %6296 = vmatprep.subr.bf16.mxu0 0
          %6297 = vmatpush1.bf16.msra.mxu0 0
          %6298 = vmatprep.subr.bf16.mxu0 0
          %6299 = vmatpush1.bf16.msra.mxu0 0
          %6300 = vmatprep.subr.bf16.mxu0 0
          %6301 = vmatpush1.bf16.msra.mxu0 0
          %6302 = vmatprep.subr.bf16.mxu0 0
          %6303 = vmatpush1.bf16.msra.mxu0 0
          %6304 = vmatprep.subr.bf16.mxu0 0
          %6305 = vmatpush1.bf16.msra.mxu0 0
          %6306 = vmatprep.subr.bf16.mxu0 0
          %6307 = vmatpush1.bf16.msra.mxu0 0
          %6308 = vmatprep.mubr.bf16.mxu0 0
          %6309 = vmatmul.mubr.bf16.gmra.mrb[0].mxu0 %v6203
          %v6310 = vpop.f32.mrb[0].mxu0
          %v6311 = vadd.f32 %v6226, %v6310
          %v6312 = vpop.f32.mrb[0].mxu0
          %v6313 = vpop.f32.mrb[0].mxu0
          %v6314 = vadd.f32 %v6226, %v6313
          %v6315 = vpop.f32.mrb[0].mxu0
          %6316 = vmatprep.mubr.bf16.mxu0 0
          %6317 = vmatmul.mubr.bf16.gmra.mrb[0].mxu0 %v6204
          %v6318 = vpop.f32.mrb[0].mxu0
          %v6319 = vadd.f32 %v6226, %v6318
          %v6320 = vpop.f32.mrb[0].mxu0
          %v6321 = vpop.f32.mrb[0].mxu0
          %v6322 = vadd.f32 %v6226, %v6321
          %v6323 = vpop.f32.mrb[0].mxu0
          %6324 = vdwg.mxu0
          %6325 = vst [vmem:[#allocation3] sm:$0xff] %v6311
          %6326 = vst [vmem:[#allocation3 + $0x8] sm:$0xff] %v6314
          %6327 = vst [vmem:[#allocation3 + $0x10] sm:$0xff] %v6319
          %6328 = vst [vmem:[#allocation3 + $0x18] sm:$0xff] %v6322
        $region92: #{tpu_custom_call.1} parent=83 // pred_fallthru
          _
        %s6329 = sand.u32 %s418, 1
        %s6330 = scalar_lea.sflag [#allocation6], %s6329
        %s6331 = sand.u32 %s418, 1
        %s6332 = smul.addr %s6331, 256
        %s6333 = scalar_lea.vmem [#allocation5], %s6332
        // Predicated region
        $region93: #{tpu_custom_call.1} parent=83 // pred_check
          %p6334 = pneg %p402
        $region94: #{tpu_custom_call.1} parent=83 // pred_check_branch
          %6336 = sbr.rel (%p6334) target = $region96
        $region95: #{tpu_custom_call.1} parent=83 // pred_region
          %s6338 = ssub.s32 512, 512
          %6339 = vsyncadd [#allocation4], %s6338
          %s6340 = sshll.u32 [#allocation3], 4
          %s6341 = int_to_ptr.vmem [resolvable:$true] %s6340
          %6346 = dma.vmem_to_hbm [thread:$0]  %s6341, 512, %s16, [#allocation4], 128, 128, 8
        $region96: #{tpu_custom_call.1} parent=83 // pred_fallthru
          _
        // Predicated region
        $region97: #{tpu_custom_call.1} parent=83 // pred_check
          %p6347 = pneg %p428
        $region98: #{tpu_custom_call.1} parent=83 // pred_check_branch
          %6349 = sbr.rel (%p6347) target = $region100
        $region99: #{tpu_custom_call.1} parent=83 // pred_region
          %s6350 = smul.u32 64, %s33
          %s6352 = ssub.s32 4096, 4096
          %6353 = vsyncadd %s6330, %s6352
          %s6354 = smul.addr %s6350, 64
          %s6355 = scalar_lea.hbm %s17, %s6354
          %s6356 = sshll.u32 %s6333, 4
          %s6357 = int_to_ptr.vmem [resolvable:$true] %s6356
          %6362 = dma.vmem_to_hbm [thread:$0]  %s6357, 4096, %s6355, %s6330, 64, 64, 4
        $region100: #{tpu_custom_call.1} parent=83 // pred_fallthru
          _
        // Predicated region
        $region101: #{tpu_custom_call.1} parent=83 // pred_check
          %p6363 = pneg %p402
        $region102: #{tpu_custom_call.1} parent=83 // pred_check_branch
          %6365 = sbr.rel (%p6363) target = $region104
        $region103: #{tpu_custom_call.1} parent=83 // pred_region
          %6366 = dma.done [#allocation4], 512
        $region104: #{tpu_custom_call.1} parent=83 // pred_fallthru
          _
      $region84: #{tpu_custom_call.1} parent=5 // pred_fallthru
        _
      %p6367 = scmp.le.s32.totalorder 2, %s28
      // Predicated region
      $region105: #{tpu_custom_call.1} parent=5 // pred_check
        %p6368 = pneg %p6367
      $region106: #{tpu_custom_call.1} parent=5 // pred_check_branch
        %6370 = sbr.rel (%p6368) target = $region108
      $region107: #{tpu_custom_call.1} parent=5 // pred_region
        %s6371 = ssub.s32 %s28, 2
        // Predicated region
        $region109: #{tpu_custom_call.1} parent=107 // pred_check
          %p6372 = pneg %p434
        $region110: #{tpu_custom_call.1} parent=107 // pred_check_branch
          %6374 = sbr.rel (%p6372) target = $region112
        $region111: #{tpu_custom_call.1} parent=107 // pred_region
          %s6375 = sand.u32 %s419, 1
          %s6376 = scalar_lea.sflag [#allocation6], %s6375
          %s6377 = sand.u32 %s419, 1
          %s6378 = smul.addr %s6377, 256
          %s6379 = scalar_lea.vmem [#allocation5], %s6378
          %6380 = dma.done %s6376, 4096
        $region112: #{tpu_custom_call.1} parent=107 // pred_fallthru
          _
      $region108: #{tpu_custom_call.1} parent=5 // pred_fallthru
        _
    $region6: #{tpu_custom_call.1} parent=1 // loop_footer
      %s32 = sadd.s32 1, %s28
    $region7: #{tpu_custom_call.1} parent=1 // loop_footer_branch
      %27 = sbr.rel target = $region3
    $region8: #{tpu_custom_call.1} parent=1 // loop_exit
      _
    %6381 = vsyncpa [#allocation4], 1
    %s6382 = scalar_lea.sflag [#allocation4], 1
    %6383 = vsyncpa %s6382, 1
    %6384 = vsyncpa [#allocation6], 1
    %s6385 = scalar_lea.sflag [#allocation6], 1
    %6386 = vsyncpa %s6385, 1

</llo_original>
